<compile_context>
chip_gen: v5e
topology: v5e:2x2
jax: 0.10.0
libtpu: 0.0.40
codegen_flags: <defaults>
</compile_context>

<pallas_src>
import jax
import jax.numpy as jnp
from jax import lax
from jax.experimental import pallas as pl
from jax.experimental.pallas import tpu as pltpu

_BT = 8  # images per grid step; multiple of 8 keeps every sublane slice tile-aligned


# ----------------------------- fused Pallas kernel ---------------------------

def _lenet_fused_kernel(x_ref, w1_ref, b1_ref, s1r_ref, s1c_ref,
                        w2_ref, b2_ref, s2r_ref, s2c_ref,
                        w1p_ref, fb1_ref, w2t_ref, fb2_ref, w3t_ref, fb3_ref,
                        o_ref):
    f32, bf16 = jnp.float32, jnp.bfloat16
    bt = o_ref.shape[0]                                  # batch tile (= _BT)

    # ---- conv1 (3->6, k5, valid): 5 banded-weight matmuls over row-shifted slabs --
    acc1 = None
    for kh in range(5):
        slab = x_ref[kh * bt:(kh + 28) * bt, :]          # [28*bt, 128] bf16
        d = jnp.dot(slab, w1_ref[kh], preferred_element_type=f32)
        acc1 = d if acc1 is None else acc1 + d           # [28*bt, 168] f32
    a1 = jnp.maximum(acc1 + b1_ref[...], 0.0)

    # ---- maxpool 2x2/2: row shifted-max + 0/1 compaction, col shifted-max + 0/1 ---
    rm1 = jnp.maximum(a1[:27 * bt, :], a1[bt:, :]).astype(bf16)          # [27*bt, 168]
    pr1 = jnp.dot(s1r_ref[...], rm1, preferred_element_type=f32)         # [14*bt, 168]
    cm1 = jnp.maximum(pr1[:, 0:162], pr1[:, 6:168]).astype(bf16)         # [14*bt, 162]
    p1 = jnp.dot(cm1, s1c_ref[...], preferred_element_type=f32).astype(bf16)  # [14*bt, 84]

    # ---- conv2 (6->16, k5, valid) -------------------------------------------------
    acc2 = None
    for kh in range(5):
        d = jnp.dot(p1[kh * bt:(kh + 10) * bt, :], w2_ref[kh],
                    preferred_element_type=f32)
        acc2 = d if acc2 is None else acc2 + d           # [10*bt, 160] f32
    a2 = jnp.maximum(acc2 + b2_ref[...], 0.0)

    # ---- maxpool 2x2/2 -------------------------------------------------------------
    rm2 = jnp.maximum(a2[:9 * bt, :], a2[bt:, :]).astype(bf16)           # [9*bt, 160]
    pr2 = jnp.dot(s2r_ref[...], rm2, preferred_element_type=f32)         # [5*bt, 160]
    cm2 = jnp.maximum(pr2[:, 0:144], pr2[:, 16:160]).astype(bf16)        # [5*bt, 144]
    p2 = jnp.dot(cm2, s2c_ref[...], preferred_element_type=f32).astype(bf16)  # [5*bt, 80]

    # ---- classifier head (fc1 = 5 independent per-pooled-row dots, tree-summed) ---
    parts = [jnp.dot(p2[j * bt:(j + 1) * bt, :], w1p_ref[j],
                     preferred_element_type=f32) for j in range(5)]
    h1 = ((parts[0] + parts[1]) + (parts[2] + parts[3])) + parts[4] + fb1_ref[...]
    h1 = jnp.maximum(h1, 0.0).astype(bf16)                               # [bt, 120]
    h2 = jnp.maximum(jnp.dot(h1, w2t_ref[...], preferred_element_type=f32)
                     + fb2_ref[...], 0.0).astype(bf16)                   # [bt, 84]
    o_ref[...] = (jnp.dot(h2, w3t_ref[...], preferred_element_type=f32)
                  + fb3_ref[...])                                        # [bt, 128]


# ----------------------------- wrapper ---------------------------------------

_WEIGHT_ORDER = ("w1", "b1t", "s1r", "s1c", "w2", "b2t", "s2r", "s2c",
                 "w1p", "fb1", "w2t", "fb2", "w3t", "fb3")


def forward(kparams, x_nchw):
    b = x_nchw.shape[0]
    g = -(-b // _BT)                                   # grid steps (ceil-div)
    bp = g * _BT
    x = x_nchw.astype(jnp.float32)
    if bp != b:                                        # pad batch to a multiple of _BT
        x = jnp.pad(x, ((0, bp - b), (0, 0), (0, 0), (0, 0)))
    # NCHW -> interleaved, lane-padded slab: row = h*_BT + image, col = w*3 + c
    x = jnp.transpose(x.reshape(g, _BT, 3, 32, 32), (0, 3, 1, 4, 2))   # [g,32,_BT,32,3]
    x = x.reshape(g, 32 * _BT, 96)
    x = jnp.pad(x, ((0, 0), (0, 0), (0, 32)))                          # 96 -> 128 lanes
    x = x.reshape(g * 32 * _BT, 128).astype(jnp.bfloat16)

    weights = [kparams[k] for k in _WEIGHT_ORDER]

    def full_spec(arr):
        nd = arr.ndim
        return pl.BlockSpec(arr.shape, lambda i, _nd=nd: (0,) * _nd)   # VMEM-resident

    out = pl.pallas_call(
        _lenet_fused_kernel,
        out_shape=jax.ShapeDtypeStruct((g * _BT, 128), jnp.float32),
        grid=(g,),
        in_specs=[pl.BlockSpec((32 * _BT, 128), lambda i: (i, 0))]
                 + [full_spec(w) for w in weights],
        out_specs=pl.BlockSpec((_BT, 128), lambda i: (i, 0)),
        compiler_params=pltpu.CompilerParams(
            dimension_semantics=("parallel",)),
    )(x, *weights)
    return out[:b, :10]


# ----------------------------- parameter prep --------------------------------

def _bf16_round(a):
    return a.astype(jnp.bfloat16).astype(jnp.float32)


def init_params(key):
    """Deterministic PyTorch-style (uniform +/- 1/sqrt(fan_in)) initialization."""
    def u(k, shape, fan_in):
        bound = 1.0 / float(fan_in) ** 0.5
        return _bf16_round(jax.random.uniform(k, shape, jnp.float32, -bound, bound))

    ks = jax.random.split(key, 10)
    return {
        "conv1_w": u(ks[0], (6, 3, 5, 5), 3 * 25),     # [Cout, Cin, KH, KW]
        "conv1_b": u(ks[1], (6,), 3 * 25),
        "conv2_w": u(ks[2], (16, 6, 5, 5), 6 * 25),
        "conv2_b": u(ks[3], (16,), 6 * 25),
        "fc1_w": u(ks[4], (120, 400), 400),            # [out, in]
        "fc1_b": u(ks[5], (120,), 400),
        "fc2_w": u(ks[6], (84, 120), 120),
        "fc2_b": u(ks[7], (84,), 120),
        "fc3_w": u(ks[8], (10, 84), 84),
        "fc3_b": u(ks[9], (10,), 84),
    }


def _banded_conv_weights(conv_w, w_out, pad_rows):
    """Fold the kw taps into one [pad_rows, w_out*Cout] banded matrix per kh."""
    f32 = jnp.float32
    blk = jnp.transpose(conv_w, (2, 3, 1, 0)).astype(f32)     # [KH, KW, Cin, Cout]
    kh_n, kw_n, cin, cout = blk.shape
    taps = []
    for kh in range(kh_n):
        w = jnp.zeros((pad_rows, w_out * cout), f32)
        for kw in range(kw_n):
            bd = jnp.kron(jnp.eye(w_out, dtype=f32), blk[kh, kw])   # [w_out*cin, w_out*cout]
            w = w.at[kw * cin:kw * cin + w_out * cin, :].add(bd)
        taps.append(w)
    return jnp.stack(taps)                                    # [KH, pad_rows, w_out*cout]


def prepare_kernel_params(params):
    """One-time re-layout of the PyTorch-layout weights for the fused kernel."""
    f32, bf16 = jnp.float32, jnp.bfloat16
    bt = _BT

    # banded conv weights (kw taps collapsed); conv1 rows padded to the 128 input lanes
    w1 = _banded_conv_weights(params["conv1_w"], 28, 128)     # [5, 128, 168]
    w2 = _banded_conv_weights(params["conv2_w"], 10, 84)      # [5, 84, 160]
    b1t = jnp.tile(params["conv1_b"], 28).reshape(1, 168)
    b2t = jnp.tile(params["conv2_b"], 10).reshape(1, 160)

    # 0/1 pooling-compaction matrices (rows: batched block-diag; cols: shared)
    e14 = (jnp.arange(27)[None, :] == (2 * jnp.arange(14))[:, None]).astype(f32)  # [14, 27]
    e5 = (jnp.arange(9)[None, :] == (2 * jnp.arange(5))[:, None]).astype(f32)     # [5, 9]
    s1r = jnp.kron(e14, jnp.eye(bt, dtype=f32))               # [14*bt, 27*bt]
    s2r = jnp.kron(e5, jnp.eye(bt, dtype=f32))                # [5*bt, 9*bt]
    k84 = jnp.arange(84)
    s1c = (jnp.arange(162)[:, None] ==
           ((k84 // 6) * 12 + k84 % 6)[None, :]).astype(f32)  # [162, 84]
    k80 = jnp.arange(80)
    s2c = (jnp.arange(144)[:, None] ==
           ((k80 // 16) * 32 + k80 % 16)[None, :]).astype(f32)  # [144, 80]

    # fc1 split per pooled row, columns re-ordered to (w, c) to fold the NCHW flatten
    w1p = jnp.transpose(params["fc1_w"].reshape(120, 16, 5, 5),
                        (2, 3, 1, 0)).reshape(5, 80, 120)     # [5, 80, 120]

    # fc3 zero-padded to 128 output lanes (lane-dense output slab)
    w3t = jnp.zeros((84, 128), f32).at[:, :10].set(params["fc3_w"].T)
    fb3 = jnp.zeros((1, 128), f32).at[:, :10].set(params["fc3_b"])

    return {
        "w1": w1.astype(bf16), "b1t": b1t,
        "w2": w2.astype(bf16), "b2t": b2t,
        "s1r": s1r.astype(bf16), "s1c": s1c.astype(bf16),
        "s2r": s2r.astype(bf16), "s2c": s2c.astype(bf16),
        "w1p": w1p.astype(bf16),
        "fb1": params["fc1_b"].reshape(1, 120),
        "w2t": params["fc2_w"].T.astype(bf16),
        "fb2": params["fc2_b"].reshape(1, 84),
        "w3t": w3t.astype(bf16), "fb3": fb3,
    }


# ----------------------------- pure-JAX reference ----------------------------

def reference_forward(params, x):
    hp = lax.Precision.HIGHEST
    y = lax.conv_general_dilated(x, params["conv1_w"], (1, 1), "VALID",
                                 dimension_numbers=("NCHW", "OIHW", "NCHW"),
                                 precision=hp)
    y = jnp.maximum(y + params["conv1_b"][None, :, None, None], 0.0)
    y = lax.reduce_window(y, -jnp.inf, lax.max, (1, 1, 2, 2), (1, 1, 2, 2), "VALID")
    y = lax.conv_general_dilated(y, params["conv2_w"], (1, 1), "VALID",
                                 dimension_numbers=("NCHW", "OIHW", "NCHW"),
                                 precision=hp)
    y = jnp.maximum(y + params["conv2_b"][None, :, None, None], 0.0)
    y = lax.reduce_window(y, -jnp.inf, lax.max, (1, 1, 2, 2), (1, 1, 2, 2), "VALID")
    f = y.reshape(y.shape[0], 400)                             # torch .view(-1, 400)
    h = jnp.maximum(jnp.dot(f, params["fc1_w"].T, precision=hp) + params["fc1_b"], 0.0)
    h = jnp.maximum(jnp.dot(h, params["fc2_w"].T, precision=hp) + params["fc2_b"], 0.0)
    return jnp.dot(h, params["fc3_w"].T, precision=hp) + params["fc3_b"]


# ----------------------------- main -------------------------------------------

if __name__ == "__main__":
    key = jax.random.PRNGKey(0)
    k_params, k_x = jax.random.split(key)
    params = init_params(k_params)
    kparams = prepare_kernel_params(params)
    x = _bf16_round(jax.random.normal(k_x, (2, 3, 32, 32), dtype=jnp.float32))  # NCHW

    out = jax.jit(forward)(kparams, x)
    out = jax.block_until_ready(out)

    assert out.shape == (2, 10), out.shape
    assert out.dtype == jnp.float32, out.dtype
    assert bool(jnp.all(jnp.isfinite(out)))

    ref = reference_forward(params, x)
    max_err = float(jnp.max(jnp.abs(out - ref)))
    # bf16 MXU operands with f32 accumulation: activations are rounded to bf16 at the
    # pool stages, so ~1e-3-level deviation from the f32 HIGHEST reference is expected.
    assert max_err < 1e-2, f"mismatch vs reference, max abs err = {max_err}"

    print("KERNEL_OK")
</pallas_src>

<mosaic_0001>
module attributes {stable_mosaic.version = 11 : i64} {
  func.func @_lenet_fused_kernel(%arg0: i32, %arg1: memref<256x128xbf16, #tpu.memory_space<vmem>>, %arg2: memref<5x128x168xbf16, #tpu.memory_space<vmem>>, %arg3: memref<1x168xf32, #tpu.memory_space<vmem>>, %arg4: memref<112x216xbf16, #tpu.memory_space<vmem>>, %arg5: memref<162x84xbf16, #tpu.memory_space<vmem>>, %arg6: memref<5x84x160xbf16, #tpu.memory_space<vmem>>, %arg7: memref<1x160xf32, #tpu.memory_space<vmem>>, %arg8: memref<40x72xbf16, #tpu.memory_space<vmem>>, %arg9: memref<144x80xbf16, #tpu.memory_space<vmem>>, %arg10: memref<5x80x120xbf16, #tpu.memory_space<vmem>>, %arg11: memref<1x120xf32, #tpu.memory_space<vmem>>, %arg12: memref<120x84xbf16, #tpu.memory_space<vmem>>, %arg13: memref<1x84xf32, #tpu.memory_space<vmem>>, %arg14: memref<84x128xbf16, #tpu.memory_space<vmem>>, %arg15: memref<1x128xf32, #tpu.memory_space<vmem>>, %arg16: memref<8x128xf32, #tpu.memory_space<vmem>>) attributes {dimension_semantics = [#tpu.dimension_semantics<parallel>], iteration_bounds = array<i64: 1>, scalar_prefetch = 0 : i64, scratch_operands = 0 : i64, tpu.core_type = #tpu.core_type<tc>, window_params = [{transform_indices = @transform_0, window_bounds = array<i64: 256, 128>}, {pipeline_mode = #tpu.pipeline_mode<synchronous>, transform_indices = @transform_1, window_bounds = array<i64: 5, 128, 168>}, {pipeline_mode = #tpu.pipeline_mode<synchronous>, transform_indices = @transform_2, window_bounds = array<i64: 1, 168>}, {pipeline_mode = #tpu.pipeline_mode<synchronous>, transform_indices = @transform_3, window_bounds = array<i64: 112, 216>}, {pipeline_mode = #tpu.pipeline_mode<synchronous>, transform_indices = @transform_4, window_bounds = array<i64: 162, 84>}, {pipeline_mode = #tpu.pipeline_mode<synchronous>, transform_indices = @transform_5, window_bounds = array<i64: 5, 84, 160>}, {pipeline_mode = #tpu.pipeline_mode<synchronous>, transform_indices = @transform_6, window_bounds = array<i64: 1, 160>}, {pipeline_mode = #tpu.pipeline_mode<synchronous>, transform_indices = @transform_7, window_bounds = array<i64: 40, 72>}, {pipeline_mode = #tpu.pipeline_mode<synchronous>, transform_indices = @transform_8, window_bounds = array<i64: 144, 80>}, {pipeline_mode = #tpu.pipeline_mode<synchronous>, transform_indices = @transform_9, window_bounds = array<i64: 5, 80, 120>}, {pipeline_mode = #tpu.pipeline_mode<synchronous>, transform_indices = @transform_10, window_bounds = array<i64: 1, 120>}, {pipeline_mode = #tpu.pipeline_mode<synchronous>, transform_indices = @transform_11, window_bounds = array<i64: 120, 84>}, {pipeline_mode = #tpu.pipeline_mode<synchronous>, transform_indices = @transform_12, window_bounds = array<i64: 1, 84>}, {pipeline_mode = #tpu.pipeline_mode<synchronous>, transform_indices = @transform_13, window_bounds = array<i64: 84, 128>}, {pipeline_mode = #tpu.pipeline_mode<synchronous>, transform_indices = @transform_14, window_bounds = array<i64: 1, 128>}, {transform_indices = @transform_15, window_bounds = array<i64: 8, 128>}]} {
    %c0 = arith.constant 0 : index
    %c0_0 = arith.constant 0 : index
    %0 = vector.load %arg1[%c0, %c0_0] : memref<256x128xbf16, #tpu.memory_space<vmem>>, vector<224x128xbf16>
    %c0_1 = arith.constant 0 : index
    %c0_2 = arith.constant 0 : index
    %c0_3 = arith.constant 0 : index
    %1 = vector.load %arg2[%c0_1, %c0_2, %c0_3] : memref<5x128x168xbf16, #tpu.memory_space<vmem>>, vector<1x128x168xbf16>
    %2 = vector.shape_cast %1 : vector<1x128x168xbf16> to vector<128x168xbf16>
    %cst = arith.constant dense<0.000000e+00> : vector<224x168xf32>
    %3 = tpu.matmul %0, %2, %cst {dimension_numbers = #tpu.dot_dimension_numbers<[1], [0], [0], [1], [0, 0, 1, 1], [], []>} : vector<224x128xbf16>, vector<128x168xbf16>, vector<224x168xf32> -> vector<224x168xf32>
    %c8 = arith.constant 8 : index
    %c0_4 = arith.constant 0 : index
    %4 = vector.load %arg1[%c8, %c0_4] : memref<256x128xbf16, #tpu.memory_space<vmem>>, vector<224x128xbf16>
    %c1 = arith.constant 1 : index
    %c0_5 = arith.constant 0 : index
    %c0_6 = arith.constant 0 : index
    %5 = vector.load %arg2[%c1, %c0_5, %c0_6] : memref<5x128x168xbf16, #tpu.memory_space<vmem>>, vector<1x128x168xbf16>
    %6 = vector.shape_cast %5 : vector<1x128x168xbf16> to vector<128x168xbf16>
    %cst_7 = arith.constant dense<0.000000e+00> : vector<224x168xf32>
    %7 = tpu.matmul %4, %6, %cst_7 {dimension_numbers = #tpu.dot_dimension_numbers<[1], [0], [0], [1], [0, 0, 1, 1], [], []>} : vector<224x128xbf16>, vector<128x168xbf16>, vector<224x168xf32> -> vector<224x168xf32>
    %8 = arith.addf %3, %7 : vector<224x168xf32>
    %c16 = arith.constant 16 : index
    %c0_8 = arith.constant 0 : index
    %9 = vector.load %arg1[%c16, %c0_8] : memref<256x128xbf16, #tpu.memory_space<vmem>>, vector<224x128xbf16>
    %c2 = arith.constant 2 : index
    %c0_9 = arith.constant 0 : index
    %c0_10 = arith.constant 0 : index
    %10 = vector.load %arg2[%c2, %c0_9, %c0_10] : memref<5x128x168xbf16, #tpu.memory_space<vmem>>, vector<1x128x168xbf16>
    %11 = vector.shape_cast %10 : vector<1x128x168xbf16> to vector<128x168xbf16>
    %cst_11 = arith.constant dense<0.000000e+00> : vector<224x168xf32>
    %12 = tpu.matmul %9, %11, %cst_11 {dimension_numbers = #tpu.dot_dimension_numbers<[1], [0], [0], [1], [0, 0, 1, 1], [], []>} : vector<224x128xbf16>, vector<128x168xbf16>, vector<224x168xf32> -> vector<224x168xf32>
    %13 = arith.addf %8, %12 : vector<224x168xf32>
    %c24 = arith.constant 24 : index
    %c0_12 = arith.constant 0 : index
    %14 = vector.load %arg1[%c24, %c0_12] : memref<256x128xbf16, #tpu.memory_space<vmem>>, vector<224x128xbf16>
    %c3 = arith.constant 3 : index
    %c0_13 = arith.constant 0 : index
    %c0_14 = arith.constant 0 : index
    %15 = vector.load %arg2[%c3, %c0_13, %c0_14] : memref<5x128x168xbf16, #tpu.memory_space<vmem>>, vector<1x128x168xbf16>
    %16 = vector.shape_cast %15 : vector<1x128x168xbf16> to vector<128x168xbf16>
    %cst_15 = arith.constant dense<0.000000e+00> : vector<224x168xf32>
    %17 = tpu.matmul %14, %16, %cst_15 {dimension_numbers = #tpu.dot_dimension_numbers<[1], [0], [0], [1], [0, 0, 1, 1], [], []>} : vector<224x128xbf16>, vector<128x168xbf16>, vector<224x168xf32> -> vector<224x168xf32>
    %18 = arith.addf %13, %17 : vector<224x168xf32>
    %c32 = arith.constant 32 : index
    %c0_16 = arith.constant 0 : index
    %19 = vector.load %arg1[%c32, %c0_16] : memref<256x128xbf16, #tpu.memory_space<vmem>>, vector<224x128xbf16>
    %c4 = arith.constant 4 : index
    %c0_17 = arith.constant 0 : index
    %c0_18 = arith.constant 0 : index
    %20 = vector.load %arg2[%c4, %c0_17, %c0_18] : memref<5x128x168xbf16, #tpu.memory_space<vmem>>, vector<1x128x168xbf16>
    %21 = vector.shape_cast %20 : vector<1x128x168xbf16> to vector<128x168xbf16>
    %cst_19 = arith.constant dense<0.000000e+00> : vector<224x168xf32>
    %22 = tpu.matmul %19, %21, %cst_19 {dimension_numbers = #tpu.dot_dimension_numbers<[1], [0], [0], [1], [0, 0, 1, 1], [], []>} : vector<224x128xbf16>, vector<128x168xbf16>, vector<224x168xf32> -> vector<224x168xf32>
    %23 = arith.addf %18, %22 : vector<224x168xf32>
    %c0_20 = arith.constant 0 : index
    %c0_21 = arith.constant 0 : index
    %24 = vector.load %arg3[%c0_20, %c0_21] : memref<1x168xf32, #tpu.memory_space<vmem>>, vector<1x168xf32>
    %25 = vector.broadcast %24 : vector<1x168xf32> to vector<224x168xf32>
    %26 = arith.addf %23, %25 : vector<224x168xf32>
    %cst_22 = arith.constant 0.000000e+00 : f32
    %27 = vector.broadcast %cst_22 : f32 to vector<224x168xf32>
    %28 = arith.maximumf %26, %27 : vector<224x168xf32>
    %29 = vector.extract_strided_slice %28 {offsets = [0, 0], sizes = [216, 168], strides = [1, 1]} : vector<224x168xf32> to vector<216x168xf32>
    %30 = vector.extract_strided_slice %28 {offsets = [8, 0], sizes = [216, 168], strides = [1, 1]} : vector<224x168xf32> to vector<216x168xf32>
    %31 = arith.maximumf %29, %30 : vector<216x168xf32>
    %32 = arith.truncf %31 : vector<216x168xf32> to vector<216x168xbf16>
    %c0_23 = arith.constant 0 : index
    %c0_24 = arith.constant 0 : index
    %33 = vector.load %arg4[%c0_23, %c0_24] : memref<112x216xbf16, #tpu.memory_space<vmem>>, vector<112x216xbf16>
    %cst_25 = arith.constant dense<0.000000e+00> : vector<112x168xf32>
    %34 = tpu.matmul %33, %32, %cst_25 {dimension_numbers = #tpu.dot_dimension_numbers<[1], [0], [0], [1], [0, 0, 1, 1], [], []>} : vector<112x216xbf16>, vector<216x168xbf16>, vector<112x168xf32> -> vector<112x168xf32>
    %35 = vector.extract_strided_slice %34 {offsets = [0, 0], sizes = [112, 162], strides = [1, 1]} : vector<112x168xf32> to vector<112x162xf32>
    %36 = vector.extract_strided_slice %34 {offsets = [0, 6], sizes = [112, 162], strides = [1, 1]} : vector<112x168xf32> to vector<112x162xf32>
    %37 = arith.maximumf %35, %36 : vector<112x162xf32>
    %38 = arith.truncf %37 : vector<112x162xf32> to vector<112x162xbf16>
    %c0_26 = arith.constant 0 : index
    %c0_27 = arith.constant 0 : index
    %39 = vector.load %arg5[%c0_26, %c0_27] : memref<162x84xbf16, #tpu.memory_space<vmem>>, vector<162x84xbf16>
    %cst_28 = arith.constant dense<0.000000e+00> : vector<112x84xf32>
    %40 = tpu.matmul %38, %39, %cst_28 {dimension_numbers = #tpu.dot_dimension_numbers<[1], [0], [0], [1], [0, 0, 1, 1], [], []>} : vector<112x162xbf16>, vector<162x84xbf16>, vector<112x84xf32> -> vector<112x84xf32>
    %41 = arith.truncf %40 : vector<112x84xf32> to vector<112x84xbf16>
    %42 = vector.extract_strided_slice %41 {offsets = [0, 0], sizes = [80, 84], strides = [1, 1]} : vector<112x84xbf16> to vector<80x84xbf16>
    %c0_29 = arith.constant 0 : index
    %c0_30 = arith.constant 0 : index
    %c0_31 = arith.constant 0 : index
    %43 = vector.load %arg6[%c0_29, %c0_30, %c0_31] : memref<5x84x160xbf16, #tpu.memory_space<vmem>>, vector<1x84x160xbf16>
    %44 = vector.shape_cast %43 : vector<1x84x160xbf16> to vector<84x160xbf16>
    %cst_32 = arith.constant dense<0.000000e+00> : vector<80x160xf32>
    %45 = tpu.matmul %42, %44, %cst_32 {dimension_numbers = #tpu.dot_dimension_numbers<[1], [0], [0], [1], [0, 0, 1, 1], [], []>} : vector<80x84xbf16>, vector<84x160xbf16>, vector<80x160xf32> -> vector<80x160xf32>
    %46 = vector.extract_strided_slice %41 {offsets = [8, 0], sizes = [80, 84], strides = [1, 1]} : vector<112x84xbf16> to vector<80x84xbf16>
    %c1_33 = arith.constant 1 : index
    %c0_34 = arith.constant 0 : index
    %c0_35 = arith.constant 0 : index
    %47 = vector.load %arg6[%c1_33, %c0_34, %c0_35] : memref<5x84x160xbf16, #tpu.memory_space<vmem>>, vector<1x84x160xbf16>
    %48 = vector.shape_cast %47 : vector<1x84x160xbf16> to vector<84x160xbf16>
    %cst_36 = arith.constant dense<0.000000e+00> : vector<80x160xf32>
    %49 = tpu.matmul %46, %48, %cst_36 {dimension_numbers = #tpu.dot_dimension_numbers<[1], [0], [0], [1], [0, 0, 1, 1], [], []>} : vector<80x84xbf16>, vector<84x160xbf16>, vector<80x160xf32> -> vector<80x160xf32>
    %50 = arith.addf %45, %49 : vector<80x160xf32>
    %51 = vector.extract_strided_slice %41 {offsets = [16, 0], sizes = [80, 84], strides = [1, 1]} : vector<112x84xbf16> to vector<80x84xbf16>
    %c2_37 = arith.constant 2 : index
    %c0_38 = arith.constant 0 : index
    %c0_39 = arith.constant 0 : index
    %52 = vector.load %arg6[%c2_37, %c0_38, %c0_39] : memref<5x84x160xbf16, #tpu.memory_space<vmem>>, vector<1x84x160xbf16>
    %53 = vector.shape_cast %52 : vector<1x84x160xbf16> to vector<84x160xbf16>
    %cst_40 = arith.constant dense<0.000000e+00> : vector<80x160xf32>
    %54 = tpu.matmul %51, %53, %cst_40 {dimension_numbers = #tpu.dot_dimension_numbers<[1], [0], [0], [1], [0, 0, 1, 1], [], []>} : vector<80x84xbf16>, vector<84x160xbf16>, vector<80x160xf32> -> vector<80x160xf32>
    %55 = arith.addf %50, %54 : vector<80x160xf32>
    %56 = vector.extract_strided_slice %41 {offsets = [24, 0], sizes = [80, 84], strides = [1, 1]} : vector<112x84xbf16> to vector<80x84xbf16>
    %c3_41 = arith.constant 3 : index
    %c0_42 = arith.constant 0 : index
    %c0_43 = arith.constant 0 : index
    %57 = vector.load %arg6[%c3_41, %c0_42, %c0_43] : memref<5x84x160xbf16, #tpu.memory_space<vmem>>, vector<1x84x160xbf16>
    %58 = vector.shape_cast %57 : vector<1x84x160xbf16> to vector<84x160xbf16>
    %cst_44 = arith.constant dense<0.000000e+00> : vector<80x160xf32>
    %59 = tpu.matmul %56, %58, %cst_44 {dimension_numbers = #tpu.dot_dimension_numbers<[1], [0], [0], [1], [0, 0, 1, 1], [], []>} : vector<80x84xbf16>, vector<84x160xbf16>, vector<80x160xf32> -> vector<80x160xf32>
    %60 = arith.addf %55, %59 : vector<80x160xf32>
    %61 = vector.extract_strided_slice %41 {offsets = [32, 0], sizes = [80, 84], strides = [1, 1]} : vector<112x84xbf16> to vector<80x84xbf16>
    %c4_45 = arith.constant 4 : index
    %c0_46 = arith.constant 0 : index
    %c0_47 = arith.constant 0 : index
    %62 = vector.load %arg6[%c4_45, %c0_46, %c0_47] : memref<5x84x160xbf16, #tpu.memory_space<vmem>>, vector<1x84x160xbf16>
    %63 = vector.shape_cast %62 : vector<1x84x160xbf16> to vector<84x160xbf16>
    %cst_48 = arith.constant dense<0.000000e+00> : vector<80x160xf32>
    %64 = tpu.matmul %61, %63, %cst_48 {dimension_numbers = #tpu.dot_dimension_numbers<[1], [0], [0], [1], [0, 0, 1, 1], [], []>} : vector<80x84xbf16>, vector<84x160xbf16>, vector<80x160xf32> -> vector<80x160xf32>
    %65 = arith.addf %60, %64 : vector<80x160xf32>
    %c0_49 = arith.constant 0 : index
    %c0_50 = arith.constant 0 : index
    %66 = vector.load %arg7[%c0_49, %c0_50] : memref<1x160xf32, #tpu.memory_space<vmem>>, vector<1x160xf32>
    %67 = vector.broadcast %66 : vector<1x160xf32> to vector<80x160xf32>
    %68 = arith.addf %65, %67 : vector<80x160xf32>
    %cst_51 = arith.constant 0.000000e+00 : f32
    %69 = vector.broadcast %cst_51 : f32 to vector<80x160xf32>
    %70 = arith.maximumf %68, %69 : vector<80x160xf32>
    %71 = vector.extract_strided_slice %70 {offsets = [0, 0], sizes = [72, 160], strides = [1, 1]} : vector<80x160xf32> to vector<72x160xf32>
    %72 = vector.extract_strided_slice %70 {offsets = [8, 0], sizes = [72, 160], strides = [1, 1]} : vector<80x160xf32> to vector<72x160xf32>
    %73 = arith.maximumf %71, %72 : vector<72x160xf32>
    %74 = arith.truncf %73 : vector<72x160xf32> to vector<72x160xbf16>
    %c0_52 = arith.constant 0 : index
    %c0_53 = arith.constant 0 : index
    %75 = vector.load %arg8[%c0_52, %c0_53] : memref<40x72xbf16, #tpu.memory_space<vmem>>, vector<40x72xbf16>
    %cst_54 = arith.constant dense<0.000000e+00> : vector<40x160xf32>
    %76 = tpu.matmul %75, %74, %cst_54 {dimension_numbers = #tpu.dot_dimension_numbers<[1], [0], [0], [1], [0, 0, 1, 1], [], []>} : vector<40x72xbf16>, vector<72x160xbf16>, vector<40x160xf32> -> vector<40x160xf32>
    %77 = vector.extract_strided_slice %76 {offsets = [0, 0], sizes = [40, 144], strides = [1, 1]} : vector<40x160xf32> to vector<40x144xf32>
    %78 = vector.extract_strided_slice %76 {offsets = [0, 16], sizes = [40, 144], strides = [1, 1]} : vector<40x160xf32> to vector<40x144xf32>
    %79 = arith.maximumf %77, %78 : vector<40x144xf32>
    %80 = arith.truncf %79 : vector<40x144xf32> to vector<40x144xbf16>
    %c0_55 = arith.constant 0 : index
    %c0_56 = arith.constant 0 : index
    %81 = vector.load %arg9[%c0_55, %c0_56] : memref<144x80xbf16, #tpu.memory_space<vmem>>, vector<144x80xbf16>
    %cst_57 = arith.constant dense<0.000000e+00> : vector<40x80xf32>
    %82 = tpu.matmul %80, %81, %cst_57 {dimension_numbers = #tpu.dot_dimension_numbers<[1], [0], [0], [1], [0, 0, 1, 1], [], []>} : vector<40x144xbf16>, vector<144x80xbf16>, vector<40x80xf32> -> vector<40x80xf32>
    %83 = arith.truncf %82 : vector<40x80xf32> to vector<40x80xbf16>
    %84 = vector.extract_strided_slice %83 {offsets = [0, 0], sizes = [8, 80], strides = [1, 1]} : vector<40x80xbf16> to vector<8x80xbf16>
    %c0_58 = arith.constant 0 : index
    %c0_59 = arith.constant 0 : index
    %c0_60 = arith.constant 0 : index
    %85 = vector.load %arg10[%c0_58, %c0_59, %c0_60] : memref<5x80x120xbf16, #tpu.memory_space<vmem>>, vector<1x80x120xbf16>
    %86 = vector.shape_cast %85 : vector<1x80x120xbf16> to vector<80x120xbf16>
    %cst_61 = arith.constant dense<0.000000e+00> : vector<8x120xf32>
    %87 = tpu.matmul %84, %86, %cst_61 {dimension_numbers = #tpu.dot_dimension_numbers<[1], [0], [0], [1], [0, 0, 1, 1], [], []>} : vector<8x80xbf16>, vector<80x120xbf16>, vector<8x120xf32> -> vector<8x120xf32>
    %88 = vector.extract_strided_slice %83 {offsets = [8, 0], sizes = [8, 80], strides = [1, 1]} : vector<40x80xbf16> to vector<8x80xbf16>
    %c1_62 = arith.constant 1 : index
    %c0_63 = arith.constant 0 : index
    %c0_64 = arith.constant 0 : index
    %89 = vector.load %arg10[%c1_62, %c0_63, %c0_64] : memref<5x80x120xbf16, #tpu.memory_space<vmem>>, vector<1x80x120xbf16>
    %90 = vector.shape_cast %89 : vector<1x80x120xbf16> to vector<80x120xbf16>
    %cst_65 = arith.constant dense<0.000000e+00> : vector<8x120xf32>
    %91 = tpu.matmul %88, %90, %cst_65 {dimension_numbers = #tpu.dot_dimension_numbers<[1], [0], [0], [1], [0, 0, 1, 1], [], []>} : vector<8x80xbf16>, vector<80x120xbf16>, vector<8x120xf32> -> vector<8x120xf32>
    %92 = vector.extract_strided_slice %83 {offsets = [16, 0], sizes = [8, 80], strides = [1, 1]} : vector<40x80xbf16> to vector<8x80xbf16>
    %c2_66 = arith.constant 2 : index
    %c0_67 = arith.constant 0 : index
    %c0_68 = arith.constant 0 : index
    %93 = vector.load %arg10[%c2_66, %c0_67, %c0_68] : memref<5x80x120xbf16, #tpu.memory_space<vmem>>, vector<1x80x120xbf16>
    %94 = vector.shape_cast %93 : vector<1x80x120xbf16> to vector<80x120xbf16>
    %cst_69 = arith.constant dense<0.000000e+00> : vector<8x120xf32>
    %95 = tpu.matmul %92, %94, %cst_69 {dimension_numbers = #tpu.dot_dimension_numbers<[1], [0], [0], [1], [0, 0, 1, 1], [], []>} : vector<8x80xbf16>, vector<80x120xbf16>, vector<8x120xf32> -> vector<8x120xf32>
    %96 = vector.extract_strided_slice %83 {offsets = [24, 0], sizes = [8, 80], strides = [1, 1]} : vector<40x80xbf16> to vector<8x80xbf16>
    %c3_70 = arith.constant 3 : index
    %c0_71 = arith.constant 0 : index
    %c0_72 = arith.constant 0 : index
    %97 = vector.load %arg10[%c3_70, %c0_71, %c0_72] : memref<5x80x120xbf16, #tpu.memory_space<vmem>>, vector<1x80x120xbf16>
    %98 = vector.shape_cast %97 : vector<1x80x120xbf16> to vector<80x120xbf16>
    %cst_73 = arith.constant dense<0.000000e+00> : vector<8x120xf32>
    %99 = tpu.matmul %96, %98, %cst_73 {dimension_numbers = #tpu.dot_dimension_numbers<[1], [0], [0], [1], [0, 0, 1, 1], [], []>} : vector<8x80xbf16>, vector<80x120xbf16>, vector<8x120xf32> -> vector<8x120xf32>
    %100 = vector.extract_strided_slice %83 {offsets = [32, 0], sizes = [8, 80], strides = [1, 1]} : vector<40x80xbf16> to vector<8x80xbf16>
    %c4_74 = arith.constant 4 : index
    %c0_75 = arith.constant 0 : index
    %c0_76 = arith.constant 0 : index
    %101 = vector.load %arg10[%c4_74, %c0_75, %c0_76] : memref<5x80x120xbf16, #tpu.memory_space<vmem>>, vector<1x80x120xbf16>
    %102 = vector.shape_cast %101 : vector<1x80x120xbf16> to vector<80x120xbf16>
    %cst_77 = arith.constant dense<0.000000e+00> : vector<8x120xf32>
    %103 = tpu.matmul %100, %102, %cst_77 {dimension_numbers = #tpu.dot_dimension_numbers<[1], [0], [0], [1], [0, 0, 1, 1], [], []>} : vector<8x80xbf16>, vector<80x120xbf16>, vector<8x120xf32> -> vector<8x120xf32>
    %104 = arith.addf %87, %91 : vector<8x120xf32>
    %105 = arith.addf %95, %99 : vector<8x120xf32>
    %106 = arith.addf %104, %105 : vector<8x120xf32>
    %107 = arith.addf %106, %103 : vector<8x120xf32>
    %c0_78 = arith.constant 0 : index
    %c0_79 = arith.constant 0 : index
    %108 = vector.load %arg11[%c0_78, %c0_79] : memref<1x120xf32, #tpu.memory_space<vmem>>, vector<1x120xf32>
    %109 = vector.broadcast %108 : vector<1x120xf32> to vector<8x120xf32>
    %110 = arith.addf %107, %109 : vector<8x120xf32>
    %cst_80 = arith.constant 0.000000e+00 : f32
    %111 = vector.broadcast %cst_80 : f32 to vector<8x120xf32>
    %112 = arith.maximumf %110, %111 : vector<8x120xf32>
    %113 = arith.truncf %112 : vector<8x120xf32> to vector<8x120xbf16>
    %c0_81 = arith.constant 0 : index
    %c0_82 = arith.constant 0 : index
    %114 = vector.load %arg12[%c0_81, %c0_82] : memref<120x84xbf16, #tpu.memory_space<vmem>>, vector<120x84xbf16>
    %cst_83 = arith.constant dense<0.000000e+00> : vector<8x84xf32>
    %115 = tpu.matmul %113, %114, %cst_83 {dimension_numbers = #tpu.dot_dimension_numbers<[1], [0], [0], [1], [0, 0, 1, 1], [], []>} : vector<8x120xbf16>, vector<120x84xbf16>, vector<8x84xf32> -> vector<8x84xf32>
    %c0_84 = arith.constant 0 : index
    %c0_85 = arith.constant 0 : index
    %116 = vector.load %arg13[%c0_84, %c0_85] : memref<1x84xf32, #tpu.memory_space<vmem>>, vector<1x84xf32>
    %117 = vector.broadcast %116 : vector<1x84xf32> to vector<8x84xf32>
    %118 = arith.addf %115, %117 : vector<8x84xf32>
    %cst_86 = arith.constant 0.000000e+00 : f32
    %119 = vector.broadcast %cst_86 : f32 to vector<8x84xf32>
    %120 = arith.maximumf %118, %119 : vector<8x84xf32>
    %121 = arith.truncf %120 : vector<8x84xf32> to vector<8x84xbf16>
    %c0_87 = arith.constant 0 : index
    %c0_88 = arith.constant 0 : index
    %122 = vector.load %arg14[%c0_87, %c0_88] : memref<84x128xbf16, #tpu.memory_space<vmem>>, vector<84x128xbf16>
    %cst_89 = arith.constant dense<0.000000e+00> : vector<8x128xf32>
    %123 = tpu.matmul %121, %122, %cst_89 {dimension_numbers = #tpu.dot_dimension_numbers<[1], [0], [0], [1], [0, 0, 1, 1], [], []>} : vector<8x84xbf16>, vector<84x128xbf16>, vector<8x128xf32> -> vector<8x128xf32>
    %c0_90 = arith.constant 0 : index
    %c0_91 = arith.constant 0 : index
    %124 = vector.load %arg15[%c0_90, %c0_91] : memref<1x128xf32, #tpu.memory_space<vmem>>, vector<1x128xf32>
    %125 = vector.broadcast %124 : vector<1x128xf32> to vector<8x128xf32>
    %126 = arith.addf %123, %125 : vector<8x128xf32>
    %c0_92 = arith.constant 0 : index
    %c0_93 = arith.constant 0 : index
    %127 = vector.load %arg16[%c0_92, %c0_93] : memref<8x128xf32, #tpu.memory_space<vmem>>, vector<8x128xf32>
    tpu.vector_store %arg16[%c0_92, %c0_93], %126 {strides = array<i32>} : memref<8x128xf32, #tpu.memory_space<vmem>>, vector<8x128xf32>,
    return
  }
  func.func @transform_0(%arg0: i32) -> (i32, i32) {
    %c0_i32 = arith.constant 0 : i32
    %c0_i32_0 = arith.constant 0 : i32
    return %arg0, %c0_i32 : i32, i32
  }
  func.func @transform_1(%arg0: i32) -> (i32, i32, i32) {
    %c0_i32 = arith.constant 0 : i32
    %c0_i32_0 = arith.constant 0 : i32
    %c0_i32_1 = arith.constant 0 : i32
    %c0_i32_2 = arith.constant 0 : i32
    return %c0_i32, %c0_i32_0, %c0_i32_1 : i32, i32, i32
  }
  func.func @transform_2(%arg0: i32) -> (i32, i32) {
    %c0_i32 = arith.constant 0 : i32
    %c0_i32_0 = arith.constant 0 : i32
    %c0_i32_1 = arith.constant 0 : i32
    return %c0_i32, %c0_i32_0 : i32, i32
  }
  func.func @transform_3(%arg0: i32) -> (i32, i32) {
    %c0_i32 = arith.constant 0 : i32
    %c0_i32_0 = arith.constant 0 : i32
    %c0_i32_1 = arith.constant 0 : i32
    return %c0_i32, %c0_i32_0 : i32, i32
  }
  func.func @transform_4(%arg0: i32) -> (i32, i32) {
    %c0_i32 = arith.constant 0 : i32
    %c0_i32_0 = arith.constant 0 : i32
    %c0_i32_1 = arith.constant 0 : i32
    return %c0_i32, %c0_i32_0 : i32, i32
  }
  func.func @transform_5(%arg0: i32) -> (i32, i32, i32) {
    %c0_i32 = arith.constant 0 : i32
    %c0_i32_0 = arith.constant 0 : i32
    %c0_i32_1 = arith.constant 0 : i32
    %c0_i32_2 = arith.constant 0 : i32
    return %c0_i32, %c0_i32_0, %c0_i32_1 : i32, i32, i32
  }
  func.func @transform_6(%arg0: i32) -> (i32, i32) {
    %c0_i32 = arith.constant 0 : i32
    %c0_i32_0 = arith.constant 0 : i32
    %c0_i32_1 = arith.constant 0 : i32
    return %c0_i32, %c0_i32_0 : i32, i32
  }
  func.func @transform_7(%arg0: i32) -> (i32, i32) {
    %c0_i32 = arith.constant 0 : i32
    %c0_i32_0 = arith.constant 0 : i32
    %c0_i32_1 = arith.constant 0 : i32
    return %c0_i32, %c0_i32_0 : i32, i32
  }
  func.func @transform_8(%arg0: i32) -> (i32, i32) {
    %c0_i32 = arith.constant 0 : i32
    %c0_i32_0 = arith.constant 0 : i32
    %c0_i32_1 = arith.constant 0 : i32
    return %c0_i32, %c0_i32_0 : i32, i32
  }
  func.func @transform_9(%arg0: i32) -> (i32, i32, i32) {
    %c0_i32 = arith.constant 0 : i32
    %c0_i32_0 = arith.constant 0 : i32
    %c0_i32_1 = arith.constant 0 : i32
    %c0_i32_2 = arith.constant 0 : i32
    return %c0_i32, %c0_i32_0, %c0_i32_1 : i32, i32, i32
  }
  func.func @transform_10(%arg0: i32) -> (i32, i32) {
    %c0_i32 = arith.constant 0 : i32
    %c0_i32_0 = arith.constant 0 : i32
    %c0_i32_1 = arith.constant 0 : i32
    return %c0_i32, %c0_i32_0 : i32, i32
  }
  func.func @transform_11(%arg0: i32) -> (i32, i32) {
    %c0_i32 = arith.constant 0 : i32
    %c0_i32_0 = arith.constant 0 : i32
    %c0_i32_1 = arith.constant 0 : i32
    return %c0_i32, %c0_i32_0 : i32, i32
  }
  func.func @transform_12(%arg0: i32) -> (i32, i32) {
    %c0_i32 = arith.constant 0 : i32
    %c0_i32_0 = arith.constant 0 : i32
    %c0_i32_1 = arith.constant 0 : i32
    return %c0_i32, %c0_i32_0 : i32, i32
  }
  func.func @transform_13(%arg0: i32) -> (i32, i32) {
    %c0_i32 = arith.constant 0 : i32
    %c0_i32_0 = arith.constant 0 : i32
    %c0_i32_1 = arith.constant 0 : i32
    return %c0_i32, %c0_i32_0 : i32, i32
  }
  func.func @transform_14(%arg0: i32) -> (i32, i32) {
    %c0_i32 = arith.constant 0 : i32
    %c0_i32_0 = arith.constant 0 : i32
    %c0_i32_1 = arith.constant 0 : i32
    return %c0_i32, %c0_i32_0 : i32, i32
  }
  func.func @transform_15(%arg0: i32) -> (i32, i32) {
    %c0_i32 = arith.constant 0 : i32
    %c0_i32_0 = arith.constant 0 : i32
    return %arg0, %c0_i32 : i32, i32
  }
}

</mosaic_0001>

<llo_original>
// kernel: forward.1
$region0: #{forward.1}
  #allocation0 [shape = 'u32[]', space=smem, size = 0x4, offset = 0x4, fixed_abs, tag = 'smem constant byte address 0x4 - core index']
  #allocation1 [shape = 'u32[72,128]{1,0:T(1,128)}', space=vmem, size = 0x9000, scoped, tag = 'internal scratch']
  %s0 = inlined_call_operand.vmem [shape: bf16[256,128], index: 0, kind: input, shape index: {}]
  %s1 = inlined_call_operand.vmem [shape: bf16[5,128,168], index: 1, kind: input, shape index: {}]
  %s2 = inlined_call_operand.vmem [shape: f32[1,168], index: 2, kind: input, shape index: {}]
  %s3 = inlined_call_operand.vmem [shape: bf16[112,216], index: 3, kind: input, shape index: {}]
  %s4 = inlined_call_operand.vmem [shape: bf16[162,84], index: 4, kind: input, shape index: {}]
  %s5 = inlined_call_operand.vmem [shape: bf16[5,84,160], index: 5, kind: input, shape index: {}]
  %s6 = inlined_call_operand.vmem [shape: f32[1,160], index: 6, kind: input, shape index: {}]
  %s7 = inlined_call_operand.vmem [shape: bf16[40,72], index: 7, kind: input, shape index: {}]
  %s8 = inlined_call_operand.vmem [shape: bf16[144,80], index: 8, kind: input, shape index: {}]
  %s9 = inlined_call_operand.vmem [shape: bf16[5,80,120], index: 9, kind: input, shape index: {}]
  %s10 = inlined_call_operand.vmem [shape: f32[1,120], index: 10, kind: input, shape index: {}]
  %s11 = inlined_call_operand.vmem [shape: bf16[120,84], index: 11, kind: input, shape index: {}]
  %s12 = inlined_call_operand.vmem [shape: f32[1,84], index: 12, kind: input, shape index: {}]
  %s13 = inlined_call_operand.vmem [shape: bf16[84,128], index: 13, kind: input, shape index: {}]
  %s14 = inlined_call_operand.vmem [shape: f32[1,128], index: 14, kind: input, shape index: {}]
  %s15 = inlined_call_operand.vmem [shape: f32[8,128], index: 15, kind: output, shape index: {}]
  %s16 = sld [smem:[#allocation0]]
  $region70: #{forward.1} parent=0
    _
  %s18 = ssub.s32 1, %s16
  %s19 = scalar_select 0, %s18, %s16
  // Predicated region
  $region2: #{forward.1} parent=0 // pred_check
    _
  $region3: #{forward.1} parent=0 // pred_check_branch
    %21 = sbr.rel (0) target = $region5
  $region4: #{forward.1} parent=0 // pred_region
    _
  $region5: #{forward.1} parent=0 // pred_fallthru
    _
  // Predicated region
  $region6: #{forward.1} parent=0 // pred_check
    _
  $region7: #{forward.1} parent=0 // pred_check_branch
    %23 = sbr.rel (0) target = $region9
  $region8: #{forward.1} parent=0 // pred_region
    _
  $region9: #{forward.1} parent=0 // pred_fallthru
    _
  // Predicated region
  $region10: #{forward.1} parent=0 // pred_check
    _
  $region11: #{forward.1} parent=0 // pred_check_branch
    %25 = sbr.rel (0) target = $region13
  $region12: #{forward.1} parent=0 // pred_region
    _
  $region13: #{forward.1} parent=0 // pred_fallthru
    _
  // Predicated region
  $region14: #{forward.1} parent=0 // pred_check
    _
  $region15: #{forward.1} parent=0 // pred_check_branch
    %27 = sbr.rel (0) target = $region17
  $region16: #{forward.1} parent=0 // pred_region
    _
  $region17: #{forward.1} parent=0 // pred_fallthru
    _
  // Predicated region
  $region18: #{forward.1} parent=0 // pred_check
    _
  $region19: #{forward.1} parent=0 // pred_check_branch
    %29 = sbr.rel (0) target = $region21
  $region20: #{forward.1} parent=0 // pred_region
    _
  $region21: #{forward.1} parent=0 // pred_fallthru
    _
  // Predicated region
  $region22: #{forward.1} parent=0 // pred_check
    _
  $region23: #{forward.1} parent=0 // pred_check_branch
    %31 = sbr.rel (0) target = $region25
  $region24: #{forward.1} parent=0 // pred_region
    _
  $region25: #{forward.1} parent=0 // pred_fallthru
    _
  // Predicated region
  $region26: #{forward.1} parent=0 // pred_check
    _
  $region27: #{forward.1} parent=0 // pred_check_branch
    %33 = sbr.rel (0) target = $region29
  $region28: #{forward.1} parent=0 // pred_region
    _
  $region29: #{forward.1} parent=0 // pred_fallthru
    _
  // Predicated region
  $region30: #{forward.1} parent=0 // pred_check
    _
  $region31: #{forward.1} parent=0 // pred_check_branch
    %35 = sbr.rel (0) target = $region33
  $region32: #{forward.1} parent=0 // pred_region
    _
  $region33: #{forward.1} parent=0 // pred_fallthru
    _
  // Predicated region
  $region34: #{forward.1} parent=0 // pred_check
    _
  $region35: #{forward.1} parent=0 // pred_check_branch
    %37 = sbr.rel (0) target = $region37
  $region36: #{forward.1} parent=0 // pred_region
    _
  $region37: #{forward.1} parent=0 // pred_fallthru
    _
  // Predicated region
  $region38: #{forward.1} parent=0 // pred_check
    _
  $region39: #{forward.1} parent=0 // pred_check_branch
    %39 = sbr.rel (0) target = $region41
  $region40: #{forward.1} parent=0 // pred_region
    _
  $region41: #{forward.1} parent=0 // pred_fallthru
    _
  // Predicated region
  $region42: #{forward.1} parent=0 // pred_check
    _
  $region43: #{forward.1} parent=0 // pred_check_branch
    %41 = sbr.rel (0) target = $region45
  $region44: #{forward.1} parent=0 // pred_region
    _
  $region45: #{forward.1} parent=0 // pred_fallthru
    _
  // Predicated region
  $region46: #{forward.1} parent=0 // pred_check
    _
  $region47: #{forward.1} parent=0 // pred_check_branch
    %43 = sbr.rel (0) target = $region49
  $region48: #{forward.1} parent=0 // pred_region
    _
  $region49: #{forward.1} parent=0 // pred_fallthru
    _
  // Predicated region
  $region50: #{forward.1} parent=0 // pred_check
    _
  $region51: #{forward.1} parent=0 // pred_check_branch
    %45 = sbr.rel (0) target = $region53
  $region52: #{forward.1} parent=0 // pred_region
    _
  $region53: #{forward.1} parent=0 // pred_fallthru
    _
  // Predicated region
  $region54: #{forward.1} parent=0 // pred_check
    _
  $region55: #{forward.1} parent=0 // pred_check_branch
    %47 = sbr.rel (0) target = $region57
  $region56: #{forward.1} parent=0 // pred_region
    _
  $region57: #{forward.1} parent=0 // pred_fallthru
    _
  // Predicated region
  $region58: #{forward.1} parent=0 // pred_check
    _
  $region59: #{forward.1} parent=0 // pred_check_branch
    %49 = sbr.rel (0) target = $region61
  $region60: #{forward.1} parent=0 // pred_region
    _
  $region61: #{forward.1} parent=0 // pred_fallthru
    _
  %v51 = vld [vmem:[%s0] sm:$0xf]
  %v52 = vld [vmem:[%s0 + $0x4] sm:$0xf]
  %v53 = vld [vmem:[%s0 + $0x8] sm:$0xf]
  %v54 = vld [vmem:[%s0 + $0xc] sm:$0xf]
  %v55 = vld [vmem:[%s0 + $0x10] sm:$0xf]
  %v56 = vld [vmem:[%s0 + $0x14] sm:$0xf]
  %v57 = vld [vmem:[%s0 + $0x18] sm:$0xf]
  %v58 = vld [vmem:[%s0 + $0x1c] sm:$0xf]
  %v59 = vld [vmem:[%s0 + $0x20] sm:$0xf]
  %v60 = vld [vmem:[%s0 + $0x24] sm:$0xf]
  %v61 = vld [vmem:[%s0 + $0x28] sm:$0xf]
  %v62 = vld [vmem:[%s0 + $0x2c] sm:$0xf]
  %v63 = vld [vmem:[%s0 + $0x30] sm:$0xf]
  %v64 = vld [vmem:[%s0 + $0x34] sm:$0xf]
  %v65 = vld [vmem:[%s0 + $0x38] sm:$0xf]
  %v66 = vld [vmem:[%s0 + $0x3c] sm:$0xf]
  %v67 = vld [vmem:[%s0 + $0x40] sm:$0xf]
  %v68 = vld [vmem:[%s0 + $0x44] sm:$0xf]
  %v69 = vld [vmem:[%s0 + $0x48] sm:$0xf]
  %v70 = vld [vmem:[%s0 + $0x4c] sm:$0xf]
  %v71 = vld [vmem:[%s0 + $0x50] sm:$0xf]
  %v72 = vld [vmem:[%s0 + $0x54] sm:$0xf]
  %v73 = vld [vmem:[%s0 + $0x58] sm:$0xf]
  %v74 = vld [vmem:[%s0 + $0x5c] sm:$0xf]
  %v75 = vld [vmem:[%s0 + $0x60] sm:$0xf]
  %v76 = vld [vmem:[%s0 + $0x64] sm:$0xf]
  %v77 = vld [vmem:[%s0 + $0x68] sm:$0xf]
  %v78 = vld [vmem:[%s0 + $0x6c] sm:$0xf]
  %v79 = vld [vmem:[%s1] sm:$0xff]
  %v80 = vld [vmem:[%s1 + $0x8] sm:$0xff]
  %v81 = vld [vmem:[%s1 + $0x10] sm:$0xff]
  %v82 = vld [vmem:[%s1 + $0x18] sm:$0xff]
  %v83 = vld [vmem:[%s1 + $0x20] sm:$0xff]
  %v84 = vld [vmem:[%s1 + $0x28] sm:$0xff]
  %v85 = vld [vmem:[%s1 + $0x30] sm:$0xff]
  %v86 = vld [vmem:[%s1 + $0x38] sm:$0xff]
  %v87 = vld [vmem:[%s1 + $0x40] sm:$0xff]
  %v88 = vld [vmem:[%s1 + $0x48] sm:$0xff]
  %v89 = vld [vmem:[%s1 + $0x50] sm:$0xff]
  %v90 = vld [vmem:[%s1 + $0x58] sm:$0xff]
  %v91 = vld [vmem:[%s1 + $0x60] sm:$0xff]
  %v92 = vld [vmem:[%s1 + $0x68] sm:$0xff]
  %v93 = vld [vmem:[%s1 + $0x70] sm:$0xff]
  %v94 = vld [vmem:[%s1 + $0x78] sm:$0xff]
  %v95 = vld [vmem:[%s0 + $0x70] sm:$0xf]
  %s96 = scalar_lea.vmem %s1, 128
  %v97 = vld [vmem:[%s96] sm:$0xff]
  %v98 = vld [vmem:[%s96 + $0x8] sm:$0xff]
  %v99 = vld [vmem:[%s96 + $0x10] sm:$0xff]
  %v100 = vld [vmem:[%s96 + $0x18] sm:$0xff]
  %v101 = vld [vmem:[%s96 + $0x20] sm:$0xff]
  %v102 = vld [vmem:[%s96 + $0x28] sm:$0xff]
  %v103 = vld [vmem:[%s96 + $0x30] sm:$0xff]
  %v104 = vld [vmem:[%s96 + $0x38] sm:$0xff]
  %v105 = vld [vmem:[%s96 + $0x40] sm:$0xff]
  %v106 = vld [vmem:[%s96 + $0x48] sm:$0xff]
  %v107 = vld [vmem:[%s96 + $0x50] sm:$0xff]
  %v108 = vld [vmem:[%s96 + $0x58] sm:$0xff]
  %v109 = vld [vmem:[%s96 + $0x60] sm:$0xff]
  %v110 = vld [vmem:[%s96 + $0x68] sm:$0xff]
  %v111 = vld [vmem:[%s96 + $0x70] sm:$0xff]
  %v112 = vld [vmem:[%s96 + $0x78] sm:$0xff]
  %v141 = vunpack.c.l.b16 %v52
  %v142 = vunpack.c.l.b16 %v53
  %v143 = vunpack.c.l.b16 %v54
  %v144 = vunpack.c.l.b16 %v55
  %v145 = vunpack.c.l.b16 %v56
  %v146 = vunpack.c.l.b16 %v57
  %v147 = vunpack.c.l.b16 %v58
  %v148 = vunpack.c.l.b16 %v59
  %v149 = vunpack.c.l.b16 %v60
  %v150 = vunpack.c.l.b16 %v61
  %v151 = vunpack.c.l.b16 %v62
  %v152 = vunpack.c.l.b16 %v63
  %v153 = vunpack.c.l.b16 %v64
  %v154 = vunpack.c.l.b16 %v65
  %v155 = vunpack.c.l.b16 %v66
  %v156 = vunpack.c.l.b16 %v67
  %v157 = vunpack.c.l.b16 %v68
  %v158 = vunpack.c.l.b16 %v69
  %v159 = vunpack.c.l.b16 %v70
  %v160 = vunpack.c.l.b16 %v71
  %v161 = vunpack.c.l.b16 %v72
  %v162 = vunpack.c.l.b16 %v73
  %v163 = vunpack.c.l.b16 %v74
  %v164 = vunpack.c.l.b16 %v75
  %v165 = vunpack.c.l.b16 %v76
  %v166 = vunpack.c.l.b16 %v77
  %v167 = vunpack.c.l.b16 %v78
  %v168 = vunpack.c.l.b16 %v95
  %v169 = vpack.c.b16 %v142, %v141
  %v170 = vpack.c.b16 %v144, %v143
  %v171 = vpack.c.b16 %v146, %v145
  %v172 = vpack.c.b16 %v148, %v147
  %v173 = vpack.c.b16 %v150, %v149
  %v174 = vpack.c.b16 %v152, %v151
  %v175 = vpack.c.b16 %v154, %v153
  %v176 = vpack.c.b16 %v156, %v155
  %v177 = vpack.c.b16 %v158, %v157
  %v178 = vpack.c.b16 %v160, %v159
  %v179 = vpack.c.b16 %v162, %v161
  %v180 = vpack.c.b16 %v164, %v163
  %v181 = vpack.c.b16 %v166, %v165
  %v182 = vpack.c.b16 %v168, %v167
  %v213 = vunpack.c.l.b16 %v97
  %v214 = vunpack.c.h.b16 %v97
  %v215 = vunpack.c.l.b16 %v98
  %v216 = vunpack.c.h.b16 %v98
  %v217 = vunpack.c.l.b16 %v99
  %v218 = vunpack.c.h.b16 %v99
  %v219 = vunpack.c.l.b16 %v100
  %v220 = vunpack.c.h.b16 %v100
  %v221 = vunpack.c.l.b16 %v101
  %v222 = vunpack.c.h.b16 %v101
  %v223 = vunpack.c.l.b16 %v102
  %v224 = vunpack.c.h.b16 %v102
  %v225 = vunpack.c.l.b16 %v103
  %v226 = vunpack.c.h.b16 %v103
  %v227 = vunpack.c.l.b16 %v104
  %v228 = vunpack.c.h.b16 %v104
  %v229 = vunpack.c.l.b16 %v105
  %v230 = vunpack.c.h.b16 %v105
  %v231 = vunpack.c.l.b16 %v106
  %v232 = vunpack.c.h.b16 %v106
  %v233 = vunpack.c.l.b16 %v107
  %v234 = vunpack.c.h.b16 %v107
  %v235 = vunpack.c.l.b16 %v108
  %v236 = vunpack.c.h.b16 %v108
  %v237 = vunpack.c.l.b16 %v109
  %v238 = vunpack.c.h.b16 %v109
  %v239 = vunpack.c.l.b16 %v110
  %v240 = vunpack.c.h.b16 %v110
  %v241 = vunpack.c.l.b16 %v111
  %v242 = vunpack.c.h.b16 %v111
  %v243 = vunpack.c.l.b16 %v112
  %v244 = vunpack.c.h.b16 %v112
  %v245 = vpack.c.b16 %v215, %v213
  %v246 = vpack.c.b16 %v216, %v214
  %v247 = vpack.c.b16 %v219, %v217
  %v248 = vpack.c.b16 %v220, %v218
  %v249 = vpack.c.b16 %v223, %v221
  %v250 = vpack.c.b16 %v224, %v222
  %v251 = vpack.c.b16 %v227, %v225
  %v252 = vpack.c.b16 %v228, %v226
  %v253 = vpack.c.b16 %v231, %v229
  %v254 = vpack.c.b16 %v232, %v230
  %v255 = vpack.c.b16 %v235, %v233
  %v256 = vpack.c.b16 %v236, %v234
  %v257 = vpack.c.b16 %v239, %v237
  %v258 = vpack.c.b16 %v240, %v238
  %v259 = vpack.c.b16 %v243, %v241
  %v260 = vpack.c.b16 %v244, %v242
  %277 = vmatpush.bf16.msra.mxu0 %v259
  %278 = vmatpush.bf16.msra.mxu0 %v257
  %279 = vmatpush.bf16.msra.mxu0 %v255
  %280 = vmatpush.bf16.msra.mxu0 %v253
  %281 = vmatpush.bf16.msra.mxu0 %v251
  %282 = vmatpush.bf16.msra.mxu0 %v249
  %283 = vmatpush.bf16.msra.mxu0 %v247
  %284 = vmatpush.bf16.msra.mxu0 %v245
  %285 = vmatmul.bf16.gmra.mxu0 %v169
  %v286 = vpop.f32.mrf.mxu0
  %v287 = vadd.f32 0.0, %v286
  %v288 = vpop.f32.mrf.mxu0
  %v289 = vadd.f32 0.0, %v288
  %290 = vmatmul.bf16.gmra.mxu0 %v170
  %v291 = vpop.f32.mrf.mxu0
  %v292 = vadd.f32 0.0, %v291
  %v293 = vpop.f32.mrf.mxu0
  %v294 = vadd.f32 0.0, %v293
  %295 = vmatmul.bf16.gmra.mxu0 %v171
  %v296 = vpop.f32.mrf.mxu0
  %v297 = vadd.f32 0.0, %v296
  %v298 = vpop.f32.mrf.mxu0
  %v299 = vadd.f32 0.0, %v298
  %300 = vmatmul.bf16.gmra.mxu0 %v172
  %v301 = vpop.f32.mrf.mxu0
  %v302 = vadd.f32 0.0, %v301
  %v303 = vpop.f32.mrf.mxu0
  %v304 = vadd.f32 0.0, %v303
  %305 = vmatmul.bf16.gmra.mxu0 %v173
  %v306 = vpop.f32.mrf.mxu0
  %v307 = vadd.f32 0.0, %v306
  %v308 = vpop.f32.mrf.mxu0
  %v309 = vadd.f32 0.0, %v308
  %310 = vmatmul.bf16.gmra.mxu0 %v174
  %v311 = vpop.f32.mrf.mxu0
  %v312 = vadd.f32 0.0, %v311
  %v313 = vpop.f32.mrf.mxu0
  %v314 = vadd.f32 0.0, %v313
  %315 = vmatmul.bf16.gmra.mxu0 %v175
  %v316 = vpop.f32.mrf.mxu0
  %v317 = vadd.f32 0.0, %v316
  %v318 = vpop.f32.mrf.mxu0
  %v319 = vadd.f32 0.0, %v318
  %320 = vmatmul.bf16.gmra.mxu0 %v176
  %v321 = vpop.f32.mrf.mxu0
  %v322 = vadd.f32 0.0, %v321
  %v323 = vpop.f32.mrf.mxu0
  %v324 = vadd.f32 0.0, %v323
  %325 = vmatmul.bf16.gmra.mxu0 %v177
  %v326 = vpop.f32.mrf.mxu0
  %v327 = vadd.f32 0.0, %v326
  %v328 = vpop.f32.mrf.mxu0
  %v329 = vadd.f32 0.0, %v328
  %330 = vmatmul.bf16.gmra.mxu0 %v178
  %v331 = vpop.f32.mrf.mxu0
  %v332 = vadd.f32 0.0, %v331
  %v333 = vpop.f32.mrf.mxu0
  %v334 = vadd.f32 0.0, %v333
  %335 = vmatmul.bf16.gmra.mxu0 %v179
  %v336 = vpop.f32.mrf.mxu0
  %v337 = vadd.f32 0.0, %v336
  %v338 = vpop.f32.mrf.mxu0
  %v339 = vadd.f32 0.0, %v338
  %340 = vmatmul.bf16.gmra.mxu0 %v180
  %v341 = vpop.f32.mrf.mxu0
  %v342 = vadd.f32 0.0, %v341
  %v343 = vpop.f32.mrf.mxu0
  %v344 = vadd.f32 0.0, %v343
  %345 = vmatmul.bf16.gmra.mxu0 %v181
  %v346 = vpop.f32.mrf.mxu0
  %v347 = vadd.f32 0.0, %v346
  %v348 = vpop.f32.mrf.mxu0
  %v349 = vadd.f32 0.0, %v348
  %350 = vmatmul.bf16.gmra.mxu0 %v182
  %v351 = vpop.f32.mrf.mxu0
  %v352 = vadd.f32 0.0, %v351
  %v353 = vpop.f32.mrf.mxu0
  %v354 = vadd.f32 0.0, %v353
  %355 = vdwg.mxu0
  %356 = vmatpush.bf16.msra.mxu0 %v260
  %357 = vmatpush.bf16.msra.mxu0 %v258
  %358 = vmatpush.bf16.msra.mxu0 %v256
  %359 = vmatpush.bf16.msra.mxu0 %v254
  %360 = vmatpush.bf16.msra.mxu0 %v252
  %361 = vmatpush.bf16.msra.mxu0 %v250
  %362 = vmatpush.bf16.msra.mxu0 %v248
  %363 = vmatpush.bf16.msra.mxu0 %v246
  %364 = vmatmul.bf16.gmra.mxu0 %v169
  %v365 = vpop.f32.mrf.mxu0
  %v366 = vadd.f32 0.0, %v365
  %v367 = vpop.f32.mrf.mxu0
  %v368 = vadd.f32 0.0, %v367
  %369 = vmatmul.bf16.gmra.mxu0 %v170
  %v370 = vpop.f32.mrf.mxu0
  %v371 = vadd.f32 0.0, %v370
  %v372 = vpop.f32.mrf.mxu0
  %v373 = vadd.f32 0.0, %v372
  %374 = vmatmul.bf16.gmra.mxu0 %v171
  %v375 = vpop.f32.mrf.mxu0
  %v376 = vadd.f32 0.0, %v375
  %v377 = vpop.f32.mrf.mxu0
  %v378 = vadd.f32 0.0, %v377
  %379 = vmatmul.bf16.gmra.mxu0 %v172
  %v380 = vpop.f32.mrf.mxu0
  %v381 = vadd.f32 0.0, %v380
  %v382 = vpop.f32.mrf.mxu0
  %v383 = vadd.f32 0.0, %v382
  %384 = vmatmul.bf16.gmra.mxu0 %v173
  %v385 = vpop.f32.mrf.mxu0
  %v386 = vadd.f32 0.0, %v385
  %v387 = vpop.f32.mrf.mxu0
  %v388 = vadd.f32 0.0, %v387
  %389 = vmatmul.bf16.gmra.mxu0 %v174
  %v390 = vpop.f32.mrf.mxu0
  %v391 = vadd.f32 0.0, %v390
  %v392 = vpop.f32.mrf.mxu0
  %v393 = vadd.f32 0.0, %v392
  %394 = vmatmul.bf16.gmra.mxu0 %v175
  %v395 = vpop.f32.mrf.mxu0
  %v396 = vadd.f32 0.0, %v395
  %v397 = vpop.f32.mrf.mxu0
  %v398 = vadd.f32 0.0, %v397
  %399 = vmatmul.bf16.gmra.mxu0 %v176
  %v400 = vpop.f32.mrf.mxu0
  %v401 = vadd.f32 0.0, %v400
  %v402 = vpop.f32.mrf.mxu0
  %v403 = vadd.f32 0.0, %v402
  %404 = vmatmul.bf16.gmra.mxu0 %v177
  %v405 = vpop.f32.mrf.mxu0
  %v406 = vadd.f32 0.0, %v405
  %v407 = vpop.f32.mrf.mxu0
  %v408 = vadd.f32 0.0, %v407
  %409 = vmatmul.bf16.gmra.mxu0 %v178
  %v410 = vpop.f32.mrf.mxu0
  %v411 = vadd.f32 0.0, %v410
  %v412 = vpop.f32.mrf.mxu0
  %v413 = vadd.f32 0.0, %v412
  %414 = vmatmul.bf16.gmra.mxu0 %v179
  %v415 = vpop.f32.mrf.mxu0
  %v416 = vadd.f32 0.0, %v415
  %v417 = vpop.f32.mrf.mxu0
  %v418 = vadd.f32 0.0, %v417
  %419 = vmatmul.bf16.gmra.mxu0 %v180
  %v420 = vpop.f32.mrf.mxu0
  %v421 = vadd.f32 0.0, %v420
  %v422 = vpop.f32.mrf.mxu0
  %v423 = vadd.f32 0.0, %v422
  %424 = vmatmul.bf16.gmra.mxu0 %v181
  %v425 = vpop.f32.mrf.mxu0
  %v426 = vadd.f32 0.0, %v425
  %v427 = vpop.f32.mrf.mxu0
  %v428 = vadd.f32 0.0, %v427
  %429 = vmatmul.bf16.gmra.mxu0 %v182
  %v430 = vpop.f32.mrf.mxu0
  %v431 = vadd.f32 0.0, %v430
  %v432 = vpop.f32.mrf.mxu0
  %v433 = vadd.f32 0.0, %v432
  %434 = vdwg.mxu0
  %v436 = vunpack.c.l.b16 %v51
  %v437 = vpack.c.b16 %v141, %v436
  %v438 = vpack.c.b16 %v143, %v142
  %v439 = vpack.c.b16 %v145, %v144
  %v440 = vpack.c.b16 %v147, %v146
  %v441 = vpack.c.b16 %v149, %v148
  %v442 = vpack.c.b16 %v151, %v150
  %v443 = vpack.c.b16 %v153, %v152
  %v444 = vpack.c.b16 %v155, %v154
  %v445 = vpack.c.b16 %v157, %v156
  %v446 = vpack.c.b16 %v159, %v158
  %v447 = vpack.c.b16 %v161, %v160
  %v448 = vpack.c.b16 %v163, %v162
  %v449 = vpack.c.b16 %v165, %v164
  %v450 = vpack.c.b16 %v167, %v166
  %v481 = vunpack.c.l.b16 %v79
  %v482 = vunpack.c.h.b16 %v79
  %v483 = vunpack.c.l.b16 %v80
  %v484 = vunpack.c.h.b16 %v80
  %v485 = vunpack.c.l.b16 %v81
  %v486 = vunpack.c.h.b16 %v81
  %v487 = vunpack.c.l.b16 %v82
  %v488 = vunpack.c.h.b16 %v82
  %v489 = vunpack.c.l.b16 %v83
  %v490 = vunpack.c.h.b16 %v83
  %v491 = vunpack.c.l.b16 %v84
  %v492 = vunpack.c.h.b16 %v84
  %v493 = vunpack.c.l.b16 %v85
  %v494 = vunpack.c.h.b16 %v85
  %v495 = vunpack.c.l.b16 %v86
  %v496 = vunpack.c.h.b16 %v86
  %v497 = vunpack.c.l.b16 %v87
  %v498 = vunpack.c.h.b16 %v87
  %v499 = vunpack.c.l.b16 %v88
  %v500 = vunpack.c.h.b16 %v88
  %v501 = vunpack.c.l.b16 %v89
  %v502 = vunpack.c.h.b16 %v89
  %v503 = vunpack.c.l.b16 %v90
  %v504 = vunpack.c.h.b16 %v90
  %v505 = vunpack.c.l.b16 %v91
  %v506 = vunpack.c.h.b16 %v91
  %v507 = vunpack.c.l.b16 %v92
  %v508 = vunpack.c.h.b16 %v92
  %v509 = vunpack.c.l.b16 %v93
  %v510 = vunpack.c.h.b16 %v93
  %v511 = vunpack.c.l.b16 %v94
  %v512 = vunpack.c.h.b16 %v94
  %v513 = vpack.c.b16 %v483, %v481
  %v514 = vpack.c.b16 %v484, %v482
  %v515 = vpack.c.b16 %v487, %v485
  %v516 = vpack.c.b16 %v488, %v486
  %v517 = vpack.c.b16 %v491, %v489
  %v518 = vpack.c.b16 %v492, %v490
  %v519 = vpack.c.b16 %v495, %v493
  %v520 = vpack.c.b16 %v496, %v494
  %v521 = vpack.c.b16 %v499, %v497
  %v522 = vpack.c.b16 %v500, %v498
  %v523 = vpack.c.b16 %v503, %v501
  %v524 = vpack.c.b16 %v504, %v502
  %v525 = vpack.c.b16 %v507, %v505
  %v526 = vpack.c.b16 %v508, %v506
  %v527 = vpack.c.b16 %v511, %v509
  %v528 = vpack.c.b16 %v512, %v510
  %545 = vmatpush.bf16.msra.mxu0 %v527
  %546 = vmatpush.bf16.msra.mxu0 %v525
  %547 = vmatpush.bf16.msra.mxu0 %v523
  %548 = vmatpush.bf16.msra.mxu0 %v521
  %549 = vmatpush.bf16.msra.mxu0 %v519
  %550 = vmatpush.bf16.msra.mxu0 %v517
  %551 = vmatpush.bf16.msra.mxu0 %v515
  %552 = vmatpush.bf16.msra.mxu0 %v513
  %553 = vmatmul.bf16.gmra.mxu0 %v437
  %v554 = vpop.f32.mrf.mxu0
  %v555 = vadd.f32 %v287, %v554
  %v556 = vpop.f32.mrf.mxu0
  %v557 = vadd.f32 %v289, %v556
  %558 = vmatmul.bf16.gmra.mxu0 %v438
  %v559 = vpop.f32.mrf.mxu0
  %v560 = vadd.f32 %v292, %v559
  %v561 = vpop.f32.mrf.mxu0
  %v562 = vadd.f32 %v294, %v561
  %563 = vmatmul.bf16.gmra.mxu0 %v439
  %v564 = vpop.f32.mrf.mxu0
  %v565 = vadd.f32 %v297, %v564
  %v566 = vpop.f32.mrf.mxu0
  %v567 = vadd.f32 %v299, %v566
  %568 = vmatmul.bf16.gmra.mxu0 %v440
  %v569 = vpop.f32.mrf.mxu0
  %v570 = vadd.f32 %v302, %v569
  %v571 = vpop.f32.mrf.mxu0
  %v572 = vadd.f32 %v304, %v571
  %573 = vmatmul.bf16.gmra.mxu0 %v441
  %v574 = vpop.f32.mrf.mxu0
  %v575 = vadd.f32 %v307, %v574
  %v576 = vpop.f32.mrf.mxu0
  %v577 = vadd.f32 %v309, %v576
  %578 = vmatmul.bf16.gmra.mxu0 %v442
  %v579 = vpop.f32.mrf.mxu0
  %v580 = vadd.f32 %v312, %v579
  %v581 = vpop.f32.mrf.mxu0
  %v582 = vadd.f32 %v314, %v581
  %583 = vmatmul.bf16.gmra.mxu0 %v443
  %v584 = vpop.f32.mrf.mxu0
  %v585 = vadd.f32 %v317, %v584
  %v586 = vpop.f32.mrf.mxu0
  %v587 = vadd.f32 %v319, %v586
  %588 = vmatmul.bf16.gmra.mxu0 %v444
  %v589 = vpop.f32.mrf.mxu0
  %v590 = vadd.f32 %v322, %v589
  %v591 = vpop.f32.mrf.mxu0
  %v592 = vadd.f32 %v324, %v591
  %593 = vmatmul.bf16.gmra.mxu0 %v445
  %v594 = vpop.f32.mrf.mxu0
  %v595 = vadd.f32 %v327, %v594
  %v596 = vpop.f32.mrf.mxu0
  %v597 = vadd.f32 %v329, %v596
  %598 = vmatmul.bf16.gmra.mxu0 %v446
  %v599 = vpop.f32.mrf.mxu0
  %v600 = vadd.f32 %v332, %v599
  %v601 = vpop.f32.mrf.mxu0
  %v602 = vadd.f32 %v334, %v601
  %603 = vmatmul.bf16.gmra.mxu0 %v447
  %v604 = vpop.f32.mrf.mxu0
  %v605 = vadd.f32 %v337, %v604
  %v606 = vpop.f32.mrf.mxu0
  %v607 = vadd.f32 %v339, %v606
  %608 = vmatmul.bf16.gmra.mxu0 %v448
  %v609 = vpop.f32.mrf.mxu0
  %v610 = vadd.f32 %v342, %v609
  %v611 = vpop.f32.mrf.mxu0
  %v612 = vadd.f32 %v344, %v611
  %613 = vmatmul.bf16.gmra.mxu0 %v449
  %v614 = vpop.f32.mrf.mxu0
  %v615 = vadd.f32 %v347, %v614
  %v616 = vpop.f32.mrf.mxu0
  %v617 = vadd.f32 %v349, %v616
  %618 = vmatmul.bf16.gmra.mxu0 %v450
  %v619 = vpop.f32.mrf.mxu0
  %v620 = vadd.f32 %v352, %v619
  %v621 = vpop.f32.mrf.mxu0
  %v622 = vadd.f32 %v354, %v621
  %623 = vdwg.mxu0
  %624 = vmatpush.bf16.msra.mxu0 %v528
  %625 = vmatpush.bf16.msra.mxu0 %v526
  %626 = vmatpush.bf16.msra.mxu0 %v524
  %627 = vmatpush.bf16.msra.mxu0 %v522
  %628 = vmatpush.bf16.msra.mxu0 %v520
  %629 = vmatpush.bf16.msra.mxu0 %v518
  %630 = vmatpush.bf16.msra.mxu0 %v516
  %631 = vmatpush.bf16.msra.mxu0 %v514
  %632 = vmatmul.bf16.gmra.mxu0 %v437
  %v633 = vpop.f32.mrf.mxu0
  %v634 = vadd.f32 %v366, %v633
  %v635 = vpop.f32.mrf.mxu0
  %v636 = vadd.f32 %v368, %v635
  %637 = vmatmul.bf16.gmra.mxu0 %v438
  %v638 = vpop.f32.mrf.mxu0
  %v639 = vadd.f32 %v371, %v638
  %v640 = vpop.f32.mrf.mxu0
  %v641 = vadd.f32 %v373, %v640
  %642 = vmatmul.bf16.gmra.mxu0 %v439
  %v643 = vpop.f32.mrf.mxu0
  %v644 = vadd.f32 %v376, %v643
  %v645 = vpop.f32.mrf.mxu0
  %v646 = vadd.f32 %v378, %v645
  %647 = vmatmul.bf16.gmra.mxu0 %v440
  %v648 = vpop.f32.mrf.mxu0
  %v649 = vadd.f32 %v381, %v648
  %v650 = vpop.f32.mrf.mxu0
  %v651 = vadd.f32 %v383, %v650
  %652 = vmatmul.bf16.gmra.mxu0 %v441
  %v653 = vpop.f32.mrf.mxu0
  %v654 = vadd.f32 %v386, %v653
  %v655 = vpop.f32.mrf.mxu0
  %v656 = vadd.f32 %v388, %v655
  %657 = vmatmul.bf16.gmra.mxu0 %v442
  %v658 = vpop.f32.mrf.mxu0
  %v659 = vadd.f32 %v391, %v658
  %v660 = vpop.f32.mrf.mxu0
  %v661 = vadd.f32 %v393, %v660
  %662 = vmatmul.bf16.gmra.mxu0 %v443
  %v663 = vpop.f32.mrf.mxu0
  %v664 = vadd.f32 %v396, %v663
  %v665 = vpop.f32.mrf.mxu0
  %v666 = vadd.f32 %v398, %v665
  %667 = vmatmul.bf16.gmra.mxu0 %v444
  %v668 = vpop.f32.mrf.mxu0
  %v669 = vadd.f32 %v401, %v668
  %v670 = vpop.f32.mrf.mxu0
  %v671 = vadd.f32 %v403, %v670
  %672 = vmatmul.bf16.gmra.mxu0 %v445
  %v673 = vpop.f32.mrf.mxu0
  %v674 = vadd.f32 %v406, %v673
  %v675 = vpop.f32.mrf.mxu0
  %v676 = vadd.f32 %v408, %v675
  %677 = vmatmul.bf16.gmra.mxu0 %v446
  %v678 = vpop.f32.mrf.mxu0
  %v679 = vadd.f32 %v411, %v678
  %v680 = vpop.f32.mrf.mxu0
  %v681 = vadd.f32 %v413, %v680
  %682 = vmatmul.bf16.gmra.mxu0 %v447
  %v683 = vpop.f32.mrf.mxu0
  %v684 = vadd.f32 %v416, %v683
  %v685 = vpop.f32.mrf.mxu0
  %v686 = vadd.f32 %v418, %v685
  %687 = vmatmul.bf16.gmra.mxu0 %v448
  %v688 = vpop.f32.mrf.mxu0
  %v689 = vadd.f32 %v421, %v688
  %v690 = vpop.f32.mrf.mxu0
  %v691 = vadd.f32 %v423, %v690
  %692 = vmatmul.bf16.gmra.mxu0 %v449
  %v693 = vpop.f32.mrf.mxu0
  %v694 = vadd.f32 %v426, %v693
  %v695 = vpop.f32.mrf.mxu0
  %v696 = vadd.f32 %v428, %v695
  %697 = vmatmul.bf16.gmra.mxu0 %v450
  %v698 = vpop.f32.mrf.mxu0
  %v699 = vadd.f32 %v431, %v698
  %v700 = vpop.f32.mrf.mxu0
  %v701 = vadd.f32 %v433, %v700
  %702 = vdwg.mxu0
  %v703 = vld [vmem:[%s0 + $0x8] sm:$0xf]
  %v704 = vld [vmem:[%s0 + $0xc] sm:$0xf]
  %v705 = vld [vmem:[%s0 + $0x10] sm:$0xf]
  %v706 = vld [vmem:[%s0 + $0x14] sm:$0xf]
  %v707 = vld [vmem:[%s0 + $0x18] sm:$0xf]
  %v708 = vld [vmem:[%s0 + $0x1c] sm:$0xf]
  %v709 = vld [vmem:[%s0 + $0x20] sm:$0xf]
  %v710 = vld [vmem:[%s0 + $0x24] sm:$0xf]
  %v711 = vld [vmem:[%s0 + $0x28] sm:$0xf]
  %v712 = vld [vmem:[%s0 + $0x2c] sm:$0xf]
  %v713 = vld [vmem:[%s0 + $0x30] sm:$0xf]
  %v714 = vld [vmem:[%s0 + $0x34] sm:$0xf]
  %v715 = vld [vmem:[%s0 + $0x38] sm:$0xf]
  %v716 = vld [vmem:[%s0 + $0x3c] sm:$0xf]
  %v717 = vld [vmem:[%s0 + $0x40] sm:$0xf]
  %v718 = vld [vmem:[%s0 + $0x44] sm:$0xf]
  %v719 = vld [vmem:[%s0 + $0x48] sm:$0xf]
  %v720 = vld [vmem:[%s0 + $0x4c] sm:$0xf]
  %v721 = vld [vmem:[%s0 + $0x50] sm:$0xf]
  %v722 = vld [vmem:[%s0 + $0x54] sm:$0xf]
  %v723 = vld [vmem:[%s0 + $0x58] sm:$0xf]
  %v724 = vld [vmem:[%s0 + $0x5c] sm:$0xf]
  %v725 = vld [vmem:[%s0 + $0x60] sm:$0xf]
  %v726 = vld [vmem:[%s0 + $0x64] sm:$0xf]
  %v727 = vld [vmem:[%s0 + $0x68] sm:$0xf]
  %v728 = vld [vmem:[%s0 + $0x6c] sm:$0xf]
  %v729 = vld [vmem:[%s0 + $0x70] sm:$0xf]
  %v730 = vld [vmem:[%s0 + $0x74] sm:$0xf]
  %s731 = scalar_lea.vmem %s1, 256
  %v732 = vld [vmem:[%s731] sm:$0xff]
  %v733 = vld [vmem:[%s731 + $0x8] sm:$0xff]
  %v734 = vld [vmem:[%s731 + $0x10] sm:$0xff]
  %v735 = vld [vmem:[%s731 + $0x18] sm:$0xff]
  %v736 = vld [vmem:[%s731 + $0x20] sm:$0xff]
  %v737 = vld [vmem:[%s731 + $0x28] sm:$0xff]
  %v738 = vld [vmem:[%s731 + $0x30] sm:$0xff]
  %v739 = vld [vmem:[%s731 + $0x38] sm:$0xff]
  %v740 = vld [vmem:[%s731 + $0x40] sm:$0xff]
  %v741 = vld [vmem:[%s731 + $0x48] sm:$0xff]
  %v742 = vld [vmem:[%s731 + $0x50] sm:$0xff]
  %v743 = vld [vmem:[%s731 + $0x58] sm:$0xff]
  %v744 = vld [vmem:[%s731 + $0x60] sm:$0xff]
  %v745 = vld [vmem:[%s731 + $0x68] sm:$0xff]
  %v746 = vld [vmem:[%s731 + $0x70] sm:$0xff]
  %v747 = vld [vmem:[%s731 + $0x78] sm:$0xff]
  %v776 = vunpack.c.l.b16 %v703
  %v777 = vunpack.c.l.b16 %v704
  %v778 = vunpack.c.l.b16 %v705
  %v779 = vunpack.c.l.b16 %v706
  %v780 = vunpack.c.l.b16 %v707
  %v781 = vunpack.c.l.b16 %v708
  %v782 = vunpack.c.l.b16 %v709
  %v783 = vunpack.c.l.b16 %v710
  %v784 = vunpack.c.l.b16 %v711
  %v785 = vunpack.c.l.b16 %v712
  %v786 = vunpack.c.l.b16 %v713
  %v787 = vunpack.c.l.b16 %v714
  %v788 = vunpack.c.l.b16 %v715
  %v789 = vunpack.c.l.b16 %v716
  %v790 = vunpack.c.l.b16 %v717
  %v791 = vunpack.c.l.b16 %v718
  %v792 = vunpack.c.l.b16 %v719
  %v793 = vunpack.c.l.b16 %v720
  %v794 = vunpack.c.l.b16 %v721
  %v795 = vunpack.c.l.b16 %v722
  %v796 = vunpack.c.l.b16 %v723
  %v797 = vunpack.c.l.b16 %v724
  %v798 = vunpack.c.l.b16 %v725
  %v799 = vunpack.c.l.b16 %v726
  %v800 = vunpack.c.l.b16 %v727
  %v801 = vunpack.c.l.b16 %v728
  %v802 = vunpack.c.l.b16 %v729
  %v803 = vunpack.c.l.b16 %v730
  %v804 = vpack.c.b16 %v777, %v776
  %v805 = vpack.c.b16 %v779, %v778
  %v806 = vpack.c.b16 %v781, %v780
  %v807 = vpack.c.b16 %v783, %v782
  %v808 = vpack.c.b16 %v785, %v784
  %v809 = vpack.c.b16 %v787, %v786
  %v810 = vpack.c.b16 %v789, %v788
  %v811 = vpack.c.b16 %v791, %v790
  %v812 = vpack.c.b16 %v793, %v792
  %v813 = vpack.c.b16 %v795, %v794
  %v814 = vpack.c.b16 %v797, %v796
  %v815 = vpack.c.b16 %v799, %v798
  %v816 = vpack.c.b16 %v801, %v800
  %v817 = vpack.c.b16 %v803, %v802
  %v848 = vunpack.c.l.b16 %v732
  %v849 = vunpack.c.h.b16 %v732
  %v850 = vunpack.c.l.b16 %v733
  %v851 = vunpack.c.h.b16 %v733
  %v852 = vunpack.c.l.b16 %v734
  %v853 = vunpack.c.h.b16 %v734
  %v854 = vunpack.c.l.b16 %v735
  %v855 = vunpack.c.h.b16 %v735
  %v856 = vunpack.c.l.b16 %v736
  %v857 = vunpack.c.h.b16 %v736
  %v858 = vunpack.c.l.b16 %v737
  %v859 = vunpack.c.h.b16 %v737
  %v860 = vunpack.c.l.b16 %v738
  %v861 = vunpack.c.h.b16 %v738
  %v862 = vunpack.c.l.b16 %v739
  %v863 = vunpack.c.h.b16 %v739
  %v864 = vunpack.c.l.b16 %v740
  %v865 = vunpack.c.h.b16 %v740
  %v866 = vunpack.c.l.b16 %v741
  %v867 = vunpack.c.h.b16 %v741
  %v868 = vunpack.c.l.b16 %v742
  %v869 = vunpack.c.h.b16 %v742
  %v870 = vunpack.c.l.b16 %v743
  %v871 = vunpack.c.h.b16 %v743
  %v872 = vunpack.c.l.b16 %v744
  %v873 = vunpack.c.h.b16 %v744
  %v874 = vunpack.c.l.b16 %v745
  %v875 = vunpack.c.h.b16 %v745
  %v876 = vunpack.c.l.b16 %v746
  %v877 = vunpack.c.h.b16 %v746
  %v878 = vunpack.c.l.b16 %v747
  %v879 = vunpack.c.h.b16 %v747
  %v880 = vpack.c.b16 %v850, %v848
  %v881 = vpack.c.b16 %v851, %v849
  %v882 = vpack.c.b16 %v854, %v852
  %v883 = vpack.c.b16 %v855, %v853
  %v884 = vpack.c.b16 %v858, %v856
  %v885 = vpack.c.b16 %v859, %v857
  %v886 = vpack.c.b16 %v862, %v860
  %v887 = vpack.c.b16 %v863, %v861
  %v888 = vpack.c.b16 %v866, %v864
  %v889 = vpack.c.b16 %v867, %v865
  %v890 = vpack.c.b16 %v870, %v868
  %v891 = vpack.c.b16 %v871, %v869
  %v892 = vpack.c.b16 %v874, %v872
  %v893 = vpack.c.b16 %v875, %v873
  %v894 = vpack.c.b16 %v878, %v876
  %v895 = vpack.c.b16 %v879, %v877
  %912 = vmatpush.bf16.msra.mxu0 %v894
  %913 = vmatpush.bf16.msra.mxu0 %v892
  %914 = vmatpush.bf16.msra.mxu0 %v890
  %915 = vmatpush.bf16.msra.mxu0 %v888
  %916 = vmatpush.bf16.msra.mxu0 %v886
  %917 = vmatpush.bf16.msra.mxu0 %v884
  %918 = vmatpush.bf16.msra.mxu0 %v882
  %919 = vmatpush.bf16.msra.mxu0 %v880
  %920 = vmatmul.bf16.gmra.mxu0 %v804
  %v921 = vpop.f32.mrf.mxu0
  %v922 = vadd.f32 0.0, %v921
  %v923 = vpop.f32.mrf.mxu0
  %v924 = vadd.f32 0.0, %v923
  %925 = vmatmul.bf16.gmra.mxu0 %v805
  %v926 = vpop.f32.mrf.mxu0
  %v927 = vadd.f32 0.0, %v926
  %v928 = vpop.f32.mrf.mxu0
  %v929 = vadd.f32 0.0, %v928
  %930 = vmatmul.bf16.gmra.mxu0 %v806
  %v931 = vpop.f32.mrf.mxu0
  %v932 = vadd.f32 0.0, %v931
  %v933 = vpop.f32.mrf.mxu0
  %v934 = vadd.f32 0.0, %v933
  %935 = vmatmul.bf16.gmra.mxu0 %v807
  %v936 = vpop.f32.mrf.mxu0
  %v937 = vadd.f32 0.0, %v936
  %v938 = vpop.f32.mrf.mxu0
  %v939 = vadd.f32 0.0, %v938
  %940 = vmatmul.bf16.gmra.mxu0 %v808
  %v941 = vpop.f32.mrf.mxu0
  %v942 = vadd.f32 0.0, %v941
  %v943 = vpop.f32.mrf.mxu0
  %v944 = vadd.f32 0.0, %v943
  %945 = vmatmul.bf16.gmra.mxu0 %v809
  %v946 = vpop.f32.mrf.mxu0
  %v947 = vadd.f32 0.0, %v946
  %v948 = vpop.f32.mrf.mxu0
  %v949 = vadd.f32 0.0, %v948
  %950 = vmatmul.bf16.gmra.mxu0 %v810
  %v951 = vpop.f32.mrf.mxu0
  %v952 = vadd.f32 0.0, %v951
  %v953 = vpop.f32.mrf.mxu0
  %v954 = vadd.f32 0.0, %v953
  %955 = vmatmul.bf16.gmra.mxu0 %v811
  %v956 = vpop.f32.mrf.mxu0
  %v957 = vadd.f32 0.0, %v956
  %v958 = vpop.f32.mrf.mxu0
  %v959 = vadd.f32 0.0, %v958
  %960 = vmatmul.bf16.gmra.mxu0 %v812
  %v961 = vpop.f32.mrf.mxu0
  %v962 = vadd.f32 0.0, %v961
  %v963 = vpop.f32.mrf.mxu0
  %v964 = vadd.f32 0.0, %v963
  %965 = vmatmul.bf16.gmra.mxu0 %v813
  %v966 = vpop.f32.mrf.mxu0
  %v967 = vadd.f32 0.0, %v966
  %v968 = vpop.f32.mrf.mxu0
  %v969 = vadd.f32 0.0, %v968
  %970 = vmatmul.bf16.gmra.mxu0 %v814
  %v971 = vpop.f32.mrf.mxu0
  %v972 = vadd.f32 0.0, %v971
  %v973 = vpop.f32.mrf.mxu0
  %v974 = vadd.f32 0.0, %v973
  %975 = vmatmul.bf16.gmra.mxu0 %v815
  %v976 = vpop.f32.mrf.mxu0
  %v977 = vadd.f32 0.0, %v976
  %v978 = vpop.f32.mrf.mxu0
  %v979 = vadd.f32 0.0, %v978
  %980 = vmatmul.bf16.gmra.mxu0 %v816
  %v981 = vpop.f32.mrf.mxu0
  %v982 = vadd.f32 0.0, %v981
  %v983 = vpop.f32.mrf.mxu0
  %v984 = vadd.f32 0.0, %v983
  %985 = vmatmul.bf16.gmra.mxu0 %v817
  %v986 = vpop.f32.mrf.mxu0
  %v987 = vadd.f32 0.0, %v986
  %v988 = vpop.f32.mrf.mxu0
  %v989 = vadd.f32 0.0, %v988
  %990 = vdwg.mxu0
  %991 = vmatpush.bf16.msra.mxu0 %v895
  %992 = vmatpush.bf16.msra.mxu0 %v893
  %993 = vmatpush.bf16.msra.mxu0 %v891
  %994 = vmatpush.bf16.msra.mxu0 %v889
  %995 = vmatpush.bf16.msra.mxu0 %v887
  %996 = vmatpush.bf16.msra.mxu0 %v885
  %997 = vmatpush.bf16.msra.mxu0 %v883
  %998 = vmatpush.bf16.msra.mxu0 %v881
  %999 = vmatmul.bf16.gmra.mxu0 %v804
  %v1000 = vpop.f32.mrf.mxu0
  %v1001 = vadd.f32 0.0, %v1000
  %v1002 = vpop.f32.mrf.mxu0
  %v1003 = vadd.f32 0.0, %v1002
  %1004 = vmatmul.bf16.gmra.mxu0 %v805
  %v1005 = vpop.f32.mrf.mxu0
  %v1006 = vadd.f32 0.0, %v1005
  %v1007 = vpop.f32.mrf.mxu0
  %v1008 = vadd.f32 0.0, %v1007
  %1009 = vmatmul.bf16.gmra.mxu0 %v806
  %v1010 = vpop.f32.mrf.mxu0
  %v1011 = vadd.f32 0.0, %v1010
  %v1012 = vpop.f32.mrf.mxu0
  %v1013 = vadd.f32 0.0, %v1012
  %1014 = vmatmul.bf16.gmra.mxu0 %v807
  %v1015 = vpop.f32.mrf.mxu0
  %v1016 = vadd.f32 0.0, %v1015
  %v1017 = vpop.f32.mrf.mxu0
  %v1018 = vadd.f32 0.0, %v1017
  %1019 = vmatmul.bf16.gmra.mxu0 %v808
  %v1020 = vpop.f32.mrf.mxu0
  %v1021 = vadd.f32 0.0, %v1020
  %v1022 = vpop.f32.mrf.mxu0
  %v1023 = vadd.f32 0.0, %v1022
  %1024 = vmatmul.bf16.gmra.mxu0 %v809
  %v1025 = vpop.f32.mrf.mxu0
  %v1026 = vadd.f32 0.0, %v1025
  %v1027 = vpop.f32.mrf.mxu0
  %v1028 = vadd.f32 0.0, %v1027
  %1029 = vmatmul.bf16.gmra.mxu0 %v810
  %v1030 = vpop.f32.mrf.mxu0
  %v1031 = vadd.f32 0.0, %v1030
  %v1032 = vpop.f32.mrf.mxu0
  %v1033 = vadd.f32 0.0, %v1032
  %1034 = vmatmul.bf16.gmra.mxu0 %v811
  %v1035 = vpop.f32.mrf.mxu0
  %v1036 = vadd.f32 0.0, %v1035
  %v1037 = vpop.f32.mrf.mxu0
  %v1038 = vadd.f32 0.0, %v1037
  %1039 = vmatmul.bf16.gmra.mxu0 %v812
  %v1040 = vpop.f32.mrf.mxu0
  %v1041 = vadd.f32 0.0, %v1040
  %v1042 = vpop.f32.mrf.mxu0
  %v1043 = vadd.f32 0.0, %v1042
  %1044 = vmatmul.bf16.gmra.mxu0 %v813
  %v1045 = vpop.f32.mrf.mxu0
  %v1046 = vadd.f32 0.0, %v1045
  %v1047 = vpop.f32.mrf.mxu0
  %v1048 = vadd.f32 0.0, %v1047
  %1049 = vmatmul.bf16.gmra.mxu0 %v814
  %v1050 = vpop.f32.mrf.mxu0
  %v1051 = vadd.f32 0.0, %v1050
  %v1052 = vpop.f32.mrf.mxu0
  %v1053 = vadd.f32 0.0, %v1052
  %1054 = vmatmul.bf16.gmra.mxu0 %v815
  %v1055 = vpop.f32.mrf.mxu0
  %v1056 = vadd.f32 0.0, %v1055
  %v1057 = vpop.f32.mrf.mxu0
  %v1058 = vadd.f32 0.0, %v1057
  %1059 = vmatmul.bf16.gmra.mxu0 %v816
  %v1060 = vpop.f32.mrf.mxu0
  %v1061 = vadd.f32 0.0, %v1060
  %v1062 = vpop.f32.mrf.mxu0
  %v1063 = vadd.f32 0.0, %v1062
  %1064 = vmatmul.bf16.gmra.mxu0 %v817
  %v1065 = vpop.f32.mrf.mxu0
  %v1066 = vadd.f32 0.0, %v1065
  %v1067 = vpop.f32.mrf.mxu0
  %v1068 = vadd.f32 0.0, %v1067
  %1069 = vdwg.mxu0
  %v1070 = vadd.f32 %v555, %v922
  %v1071 = vadd.f32 %v634, %v1001
  %v1072 = vadd.f32 %v557, %v924
  %v1073 = vadd.f32 %v636, %v1003
  %v1074 = vadd.f32 %v560, %v927
  %v1075 = vadd.f32 %v639, %v1006
  %v1076 = vadd.f32 %v562, %v929
  %v1077 = vadd.f32 %v641, %v1008
  %v1078 = vadd.f32 %v565, %v932
  %v1079 = vadd.f32 %v644, %v1011
  %v1080 = vadd.f32 %v567, %v934
  %v1081 = vadd.f32 %v646, %v1013
  %v1082 = vadd.f32 %v570, %v937
  %v1083 = vadd.f32 %v649, %v1016
  %v1084 = vadd.f32 %v572, %v939
  %v1085 = vadd.f32 %v651, %v1018
  %v1086 = vadd.f32 %v575, %v942
  %v1087 = vadd.f32 %v654, %v1021
  %v1088 = vadd.f32 %v577, %v944
  %v1089 = vadd.f32 %v656, %v1023
  %v1090 = vadd.f32 %v580, %v947
  %v1091 = vadd.f32 %v659, %v1026
  %v1092 = vadd.f32 %v582, %v949
  %v1093 = vadd.f32 %v661, %v1028
  %v1094 = vadd.f32 %v585, %v952
  %v1095 = vadd.f32 %v664, %v1031
  %v1096 = vadd.f32 %v587, %v954
  %v1097 = vadd.f32 %v666, %v1033
  %v1098 = vadd.f32 %v590, %v957
  %v1099 = vadd.f32 %v669, %v1036
  %v1100 = vadd.f32 %v592, %v959
  %v1101 = vadd.f32 %v671, %v1038
  %v1102 = vadd.f32 %v595, %v962
  %v1103 = vadd.f32 %v674, %v1041
  %v1104 = vadd.f32 %v597, %v964
  %v1105 = vadd.f32 %v676, %v1043
  %v1106 = vadd.f32 %v600, %v967
  %v1107 = vadd.f32 %v679, %v1046
  %v1108 = vadd.f32 %v602, %v969
  %v1109 = vadd.f32 %v681, %v1048
  %v1110 = vadd.f32 %v605, %v972
  %v1111 = vadd.f32 %v684, %v1051
  %v1112 = vadd.f32 %v607, %v974
  %v1113 = vadd.f32 %v686, %v1053
  %v1114 = vadd.f32 %v610, %v977
  %v1115 = vadd.f32 %v689, %v1056
  %v1116 = vadd.f32 %v612, %v979
  %v1117 = vadd.f32 %v691, %v1058
  %v1118 = vadd.f32 %v615, %v982
  %v1119 = vadd.f32 %v694, %v1061
  %v1120 = vadd.f32 %v617, %v984
  %v1121 = vadd.f32 %v696, %v1063
  %v1122 = vadd.f32 %v620, %v987
  %v1123 = vadd.f32 %v699, %v1066
  %v1124 = vadd.f32 %v622, %v989
  %v1125 = vadd.f32 %v701, %v1068
  %v1126 = vld [vmem:[%s0 + $0xc] sm:$0xf]
  %v1127 = vld [vmem:[%s0 + $0x10] sm:$0xf]
  %v1128 = vld [vmem:[%s0 + $0x14] sm:$0xf]
  %v1129 = vld [vmem:[%s0 + $0x18] sm:$0xf]
  %v1130 = vld [vmem:[%s0 + $0x1c] sm:$0xf]
  %v1131 = vld [vmem:[%s0 + $0x20] sm:$0xf]
  %v1132 = vld [vmem:[%s0 + $0x24] sm:$0xf]
  %v1133 = vld [vmem:[%s0 + $0x28] sm:$0xf]
  %v1134 = vld [vmem:[%s0 + $0x2c] sm:$0xf]
  %v1135 = vld [vmem:[%s0 + $0x30] sm:$0xf]
  %v1136 = vld [vmem:[%s0 + $0x34] sm:$0xf]
  %v1137 = vld [vmem:[%s0 + $0x38] sm:$0xf]
  %v1138 = vld [vmem:[%s0 + $0x3c] sm:$0xf]
  %v1139 = vld [vmem:[%s0 + $0x40] sm:$0xf]
  %v1140 = vld [vmem:[%s0 + $0x44] sm:$0xf]
  %v1141 = vld [vmem:[%s0 + $0x48] sm:$0xf]
  %v1142 = vld [vmem:[%s0 + $0x4c] sm:$0xf]
  %v1143 = vld [vmem:[%s0 + $0x50] sm:$0xf]
  %v1144 = vld [vmem:[%s0 + $0x54] sm:$0xf]
  %v1145 = vld [vmem:[%s0 + $0x58] sm:$0xf]
  %v1146 = vld [vmem:[%s0 + $0x5c] sm:$0xf]
  %v1147 = vld [vmem:[%s0 + $0x60] sm:$0xf]
  %v1148 = vld [vmem:[%s0 + $0x64] sm:$0xf]
  %v1149 = vld [vmem:[%s0 + $0x68] sm:$0xf]
  %v1150 = vld [vmem:[%s0 + $0x6c] sm:$0xf]
  %v1151 = vld [vmem:[%s0 + $0x70] sm:$0xf]
  %v1152 = vld [vmem:[%s0 + $0x74] sm:$0xf]
  %v1153 = vld [vmem:[%s0 + $0x78] sm:$0xf]
  %s1154 = scalar_lea.vmem %s1, 384
  %v1155 = vld [vmem:[%s1154] sm:$0xff]
  %v1156 = vld [vmem:[%s1154 + $0x8] sm:$0xff]
  %v1157 = vld [vmem:[%s1154 + $0x10] sm:$0xff]
  %v1158 = vld [vmem:[%s1154 + $0x18] sm:$0xff]
  %v1159 = vld [vmem:[%s1154 + $0x20] sm:$0xff]
  %v1160 = vld [vmem:[%s1154 + $0x28] sm:$0xff]
  %v1161 = vld [vmem:[%s1154 + $0x30] sm:$0xff]
  %v1162 = vld [vmem:[%s1154 + $0x38] sm:$0xff]
  %v1163 = vld [vmem:[%s1154 + $0x40] sm:$0xff]
  %v1164 = vld [vmem:[%s1154 + $0x48] sm:$0xff]
  %v1165 = vld [vmem:[%s1154 + $0x50] sm:$0xff]
  %v1166 = vld [vmem:[%s1154 + $0x58] sm:$0xff]
  %v1167 = vld [vmem:[%s1154 + $0x60] sm:$0xff]
  %v1168 = vld [vmem:[%s1154 + $0x68] sm:$0xff]
  %v1169 = vld [vmem:[%s1154 + $0x70] sm:$0xff]
  %v1170 = vld [vmem:[%s1154 + $0x78] sm:$0xff]
  %v1199 = vunpack.c.l.b16 %v1126
  %v1200 = vunpack.c.l.b16 %v1127
  %v1201 = vunpack.c.l.b16 %v1128
  %v1202 = vunpack.c.l.b16 %v1129
  %v1203 = vunpack.c.l.b16 %v1130
  %v1204 = vunpack.c.l.b16 %v1131
  %v1205 = vunpack.c.l.b16 %v1132
  %v1206 = vunpack.c.l.b16 %v1133
  %v1207 = vunpack.c.l.b16 %v1134
  %v1208 = vunpack.c.l.b16 %v1135
  %v1209 = vunpack.c.l.b16 %v1136
  %v1210 = vunpack.c.l.b16 %v1137
  %v1211 = vunpack.c.l.b16 %v1138
  %v1212 = vunpack.c.l.b16 %v1139
  %v1213 = vunpack.c.l.b16 %v1140
  %v1214 = vunpack.c.l.b16 %v1141
  %v1215 = vunpack.c.l.b16 %v1142
  %v1216 = vunpack.c.l.b16 %v1143
  %v1217 = vunpack.c.l.b16 %v1144
  %v1218 = vunpack.c.l.b16 %v1145
  %v1219 = vunpack.c.l.b16 %v1146
  %v1220 = vunpack.c.l.b16 %v1147
  %v1221 = vunpack.c.l.b16 %v1148
  %v1222 = vunpack.c.l.b16 %v1149
  %v1223 = vunpack.c.l.b16 %v1150
  %v1224 = vunpack.c.l.b16 %v1151
  %v1225 = vunpack.c.l.b16 %v1152
  %v1226 = vunpack.c.l.b16 %v1153
  %v1227 = vpack.c.b16 %v1200, %v1199
  %v1228 = vpack.c.b16 %v1202, %v1201
  %v1229 = vpack.c.b16 %v1204, %v1203
  %v1230 = vpack.c.b16 %v1206, %v1205
  %v1231 = vpack.c.b16 %v1208, %v1207
  %v1232 = vpack.c.b16 %v1210, %v1209
  %v1233 = vpack.c.b16 %v1212, %v1211
  %v1234 = vpack.c.b16 %v1214, %v1213
  %v1235 = vpack.c.b16 %v1216, %v1215
  %v1236 = vpack.c.b16 %v1218, %v1217
  %v1237 = vpack.c.b16 %v1220, %v1219
  %v1238 = vpack.c.b16 %v1222, %v1221
  %v1239 = vpack.c.b16 %v1224, %v1223
  %v1240 = vpack.c.b16 %v1226, %v1225
  %v1271 = vunpack.c.l.b16 %v1155
  %v1272 = vunpack.c.h.b16 %v1155
  %v1273 = vunpack.c.l.b16 %v1156
  %v1274 = vunpack.c.h.b16 %v1156
  %v1275 = vunpack.c.l.b16 %v1157
  %v1276 = vunpack.c.h.b16 %v1157
  %v1277 = vunpack.c.l.b16 %v1158
  %v1278 = vunpack.c.h.b16 %v1158
  %v1279 = vunpack.c.l.b16 %v1159
  %v1280 = vunpack.c.h.b16 %v1159
  %v1281 = vunpack.c.l.b16 %v1160
  %v1282 = vunpack.c.h.b16 %v1160
  %v1283 = vunpack.c.l.b16 %v1161
  %v1284 = vunpack.c.h.b16 %v1161
  %v1285 = vunpack.c.l.b16 %v1162
  %v1286 = vunpack.c.h.b16 %v1162
  %v1287 = vunpack.c.l.b16 %v1163
  %v1288 = vunpack.c.h.b16 %v1163
  %v1289 = vunpack.c.l.b16 %v1164
  %v1290 = vunpack.c.h.b16 %v1164
  %v1291 = vunpack.c.l.b16 %v1165
  %v1292 = vunpack.c.h.b16 %v1165
  %v1293 = vunpack.c.l.b16 %v1166
  %v1294 = vunpack.c.h.b16 %v1166
  %v1295 = vunpack.c.l.b16 %v1167
  %v1296 = vunpack.c.h.b16 %v1167
  %v1297 = vunpack.c.l.b16 %v1168
  %v1298 = vunpack.c.h.b16 %v1168
  %v1299 = vunpack.c.l.b16 %v1169
  %v1300 = vunpack.c.h.b16 %v1169
  %v1301 = vunpack.c.l.b16 %v1170
  %v1302 = vunpack.c.h.b16 %v1170
  %v1303 = vpack.c.b16 %v1273, %v1271
  %v1304 = vpack.c.b16 %v1274, %v1272
  %v1305 = vpack.c.b16 %v1277, %v1275
  %v1306 = vpack.c.b16 %v1278, %v1276
  %v1307 = vpack.c.b16 %v1281, %v1279
  %v1308 = vpack.c.b16 %v1282, %v1280
  %v1309 = vpack.c.b16 %v1285, %v1283
  %v1310 = vpack.c.b16 %v1286, %v1284
  %v1311 = vpack.c.b16 %v1289, %v1287
  %v1312 = vpack.c.b16 %v1290, %v1288
  %v1313 = vpack.c.b16 %v1293, %v1291
  %v1314 = vpack.c.b16 %v1294, %v1292
  %v1315 = vpack.c.b16 %v1297, %v1295
  %v1316 = vpack.c.b16 %v1298, %v1296
  %v1317 = vpack.c.b16 %v1301, %v1299
  %v1318 = vpack.c.b16 %v1302, %v1300
  %1335 = vmatpush.bf16.msra.mxu0 %v1317
  %1336 = vmatpush.bf16.msra.mxu0 %v1315
  %1337 = vmatpush.bf16.msra.mxu0 %v1313
  %1338 = vmatpush.bf16.msra.mxu0 %v1311
  %1339 = vmatpush.bf16.msra.mxu0 %v1309
  %1340 = vmatpush.bf16.msra.mxu0 %v1307
  %1341 = vmatpush.bf16.msra.mxu0 %v1305
  %1342 = vmatpush.bf16.msra.mxu0 %v1303
  %1343 = vmatmul.bf16.gmra.mxu0 %v1227
  %v1344 = vpop.f32.mrf.mxu0
  %v1345 = vadd.f32 0.0, %v1344
  %v1346 = vpop.f32.mrf.mxu0
  %v1347 = vadd.f32 0.0, %v1346
  %1348 = vmatmul.bf16.gmra.mxu0 %v1228
  %v1349 = vpop.f32.mrf.mxu0
  %v1350 = vadd.f32 0.0, %v1349
  %v1351 = vpop.f32.mrf.mxu0
  %v1352 = vadd.f32 0.0, %v1351
  %1353 = vmatmul.bf16.gmra.mxu0 %v1229
  %v1354 = vpop.f32.mrf.mxu0
  %v1355 = vadd.f32 0.0, %v1354
  %v1356 = vpop.f32.mrf.mxu0
  %v1357 = vadd.f32 0.0, %v1356
  %1358 = vmatmul.bf16.gmra.mxu0 %v1230
  %v1359 = vpop.f32.mrf.mxu0
  %v1360 = vadd.f32 0.0, %v1359
  %v1361 = vpop.f32.mrf.mxu0
  %v1362 = vadd.f32 0.0, %v1361
  %1363 = vmatmul.bf16.gmra.mxu0 %v1231
  %v1364 = vpop.f32.mrf.mxu0
  %v1365 = vadd.f32 0.0, %v1364
  %v1366 = vpop.f32.mrf.mxu0
  %v1367 = vadd.f32 0.0, %v1366
  %1368 = vmatmul.bf16.gmra.mxu0 %v1232
  %v1369 = vpop.f32.mrf.mxu0
  %v1370 = vadd.f32 0.0, %v1369
  %v1371 = vpop.f32.mrf.mxu0
  %v1372 = vadd.f32 0.0, %v1371
  %1373 = vmatmul.bf16.gmra.mxu0 %v1233
  %v1374 = vpop.f32.mrf.mxu0
  %v1375 = vadd.f32 0.0, %v1374
  %v1376 = vpop.f32.mrf.mxu0
  %v1377 = vadd.f32 0.0, %v1376
  %1378 = vmatmul.bf16.gmra.mxu0 %v1234
  %v1379 = vpop.f32.mrf.mxu0
  %v1380 = vadd.f32 0.0, %v1379
  %v1381 = vpop.f32.mrf.mxu0
  %v1382 = vadd.f32 0.0, %v1381
  %1383 = vmatmul.bf16.gmra.mxu0 %v1235
  %v1384 = vpop.f32.mrf.mxu0
  %v1385 = vadd.f32 0.0, %v1384
  %v1386 = vpop.f32.mrf.mxu0
  %v1387 = vadd.f32 0.0, %v1386
  %1388 = vmatmul.bf16.gmra.mxu0 %v1236
  %v1389 = vpop.f32.mrf.mxu0
  %v1390 = vadd.f32 0.0, %v1389
  %v1391 = vpop.f32.mrf.mxu0
  %v1392 = vadd.f32 0.0, %v1391
  %1393 = vmatmul.bf16.gmra.mxu0 %v1237
  %v1394 = vpop.f32.mrf.mxu0
  %v1395 = vadd.f32 0.0, %v1394
  %v1396 = vpop.f32.mrf.mxu0
  %v1397 = vadd.f32 0.0, %v1396
  %1398 = vmatmul.bf16.gmra.mxu0 %v1238
  %v1399 = vpop.f32.mrf.mxu0
  %v1400 = vadd.f32 0.0, %v1399
  %v1401 = vpop.f32.mrf.mxu0
  %v1402 = vadd.f32 0.0, %v1401
  %1403 = vmatmul.bf16.gmra.mxu0 %v1239
  %v1404 = vpop.f32.mrf.mxu0
  %v1405 = vadd.f32 0.0, %v1404
  %v1406 = vpop.f32.mrf.mxu0
  %v1407 = vadd.f32 0.0, %v1406
  %1408 = vmatmul.bf16.gmra.mxu0 %v1240
  %v1409 = vpop.f32.mrf.mxu0
  %v1410 = vadd.f32 0.0, %v1409
  %v1411 = vpop.f32.mrf.mxu0
  %v1412 = vadd.f32 0.0, %v1411
  %1413 = vdwg.mxu0
  %1414 = vmatpush.bf16.msra.mxu0 %v1318
  %1415 = vmatpush.bf16.msra.mxu0 %v1316
  %1416 = vmatpush.bf16.msra.mxu0 %v1314
  %1417 = vmatpush.bf16.msra.mxu0 %v1312
  %1418 = vmatpush.bf16.msra.mxu0 %v1310
  %1419 = vmatpush.bf16.msra.mxu0 %v1308
  %1420 = vmatpush.bf16.msra.mxu0 %v1306
  %1421 = vmatpush.bf16.msra.mxu0 %v1304
  %1422 = vmatmul.bf16.gmra.mxu0 %v1227
  %v1423 = vpop.f32.mrf.mxu0
  %v1424 = vadd.f32 0.0, %v1423
  %v1425 = vpop.f32.mrf.mxu0
  %v1426 = vadd.f32 0.0, %v1425
  %1427 = vmatmul.bf16.gmra.mxu0 %v1228
  %v1428 = vpop.f32.mrf.mxu0
  %v1429 = vadd.f32 0.0, %v1428
  %v1430 = vpop.f32.mrf.mxu0
  %v1431 = vadd.f32 0.0, %v1430
  %1432 = vmatmul.bf16.gmra.mxu0 %v1229
  %v1433 = vpop.f32.mrf.mxu0
  %v1434 = vadd.f32 0.0, %v1433
  %v1435 = vpop.f32.mrf.mxu0
  %v1436 = vadd.f32 0.0, %v1435
  %1437 = vmatmul.bf16.gmra.mxu0 %v1230
  %v1438 = vpop.f32.mrf.mxu0
  %v1439 = vadd.f32 0.0, %v1438
  %v1440 = vpop.f32.mrf.mxu0
  %v1441 = vadd.f32 0.0, %v1440
  %1442 = vmatmul.bf16.gmra.mxu0 %v1231
  %v1443 = vpop.f32.mrf.mxu0
  %v1444 = vadd.f32 0.0, %v1443
  %v1445 = vpop.f32.mrf.mxu0
  %v1446 = vadd.f32 0.0, %v1445
  %1447 = vmatmul.bf16.gmra.mxu0 %v1232
  %v1448 = vpop.f32.mrf.mxu0
  %v1449 = vadd.f32 0.0, %v1448
  %v1450 = vpop.f32.mrf.mxu0
  %v1451 = vadd.f32 0.0, %v1450
  %1452 = vmatmul.bf16.gmra.mxu0 %v1233
  %v1453 = vpop.f32.mrf.mxu0
  %v1454 = vadd.f32 0.0, %v1453
  %v1455 = vpop.f32.mrf.mxu0
  %v1456 = vadd.f32 0.0, %v1455
  %1457 = vmatmul.bf16.gmra.mxu0 %v1234
  %v1458 = vpop.f32.mrf.mxu0
  %v1459 = vadd.f32 0.0, %v1458
  %v1460 = vpop.f32.mrf.mxu0
  %v1461 = vadd.f32 0.0, %v1460
  %1462 = vmatmul.bf16.gmra.mxu0 %v1235
  %v1463 = vpop.f32.mrf.mxu0
  %v1464 = vadd.f32 0.0, %v1463
  %v1465 = vpop.f32.mrf.mxu0
  %v1466 = vadd.f32 0.0, %v1465
  %1467 = vmatmul.bf16.gmra.mxu0 %v1236
  %v1468 = vpop.f32.mrf.mxu0
  %v1469 = vadd.f32 0.0, %v1468
  %v1470 = vpop.f32.mrf.mxu0
  %v1471 = vadd.f32 0.0, %v1470
  %1472 = vmatmul.bf16.gmra.mxu0 %v1237
  %v1473 = vpop.f32.mrf.mxu0
  %v1474 = vadd.f32 0.0, %v1473
  %v1475 = vpop.f32.mrf.mxu0
  %v1476 = vadd.f32 0.0, %v1475
  %1477 = vmatmul.bf16.gmra.mxu0 %v1238
  %v1478 = vpop.f32.mrf.mxu0
  %v1479 = vadd.f32 0.0, %v1478
  %v1480 = vpop.f32.mrf.mxu0
  %v1481 = vadd.f32 0.0, %v1480
  %1482 = vmatmul.bf16.gmra.mxu0 %v1239
  %v1483 = vpop.f32.mrf.mxu0
  %v1484 = vadd.f32 0.0, %v1483
  %v1485 = vpop.f32.mrf.mxu0
  %v1486 = vadd.f32 0.0, %v1485
  %1487 = vmatmul.bf16.gmra.mxu0 %v1240
  %v1488 = vpop.f32.mrf.mxu0
  %v1489 = vadd.f32 0.0, %v1488
  %v1490 = vpop.f32.mrf.mxu0
  %v1491 = vadd.f32 0.0, %v1490
  %1492 = vdwg.mxu0
  %v1493 = vadd.f32 %v1070, %v1345
  %v1494 = vadd.f32 %v1071, %v1424
  %v1495 = vadd.f32 %v1072, %v1347
  %v1496 = vadd.f32 %v1073, %v1426
  %v1497 = vadd.f32 %v1074, %v1350
  %v1498 = vadd.f32 %v1075, %v1429
  %v1499 = vadd.f32 %v1076, %v1352
  %v1500 = vadd.f32 %v1077, %v1431
  %v1501 = vadd.f32 %v1078, %v1355
  %v1502 = vadd.f32 %v1079, %v1434
  %v1503 = vadd.f32 %v1080, %v1357
  %v1504 = vadd.f32 %v1081, %v1436
  %v1505 = vadd.f32 %v1082, %v1360
  %v1506 = vadd.f32 %v1083, %v1439
  %v1507 = vadd.f32 %v1084, %v1362
  %v1508 = vadd.f32 %v1085, %v1441
  %v1509 = vadd.f32 %v1086, %v1365
  %v1510 = vadd.f32 %v1087, %v1444
  %v1511 = vadd.f32 %v1088, %v1367
  %v1512 = vadd.f32 %v1089, %v1446
  %v1513 = vadd.f32 %v1090, %v1370
  %v1514 = vadd.f32 %v1091, %v1449
  %v1515 = vadd.f32 %v1092, %v1372
  %v1516 = vadd.f32 %v1093, %v1451
  %v1517 = vadd.f32 %v1094, %v1375
  %v1518 = vadd.f32 %v1095, %v1454
  %v1519 = vadd.f32 %v1096, %v1377
  %v1520 = vadd.f32 %v1097, %v1456
  %v1521 = vadd.f32 %v1098, %v1380
  %v1522 = vadd.f32 %v1099, %v1459
  %v1523 = vadd.f32 %v1100, %v1382
  %v1524 = vadd.f32 %v1101, %v1461
  %v1525 = vadd.f32 %v1102, %v1385
  %v1526 = vadd.f32 %v1103, %v1464
  %v1527 = vadd.f32 %v1104, %v1387
  %v1528 = vadd.f32 %v1105, %v1466
  %v1529 = vadd.f32 %v1106, %v1390
  %v1530 = vadd.f32 %v1107, %v1469
  %v1531 = vadd.f32 %v1108, %v1392
  %v1532 = vadd.f32 %v1109, %v1471
  %v1533 = vadd.f32 %v1110, %v1395
  %v1534 = vadd.f32 %v1111, %v1474
  %v1535 = vadd.f32 %v1112, %v1397
  %v1536 = vadd.f32 %v1113, %v1476
  %v1537 = vadd.f32 %v1114, %v1400
  %v1538 = vadd.f32 %v1115, %v1479
  %v1539 = vadd.f32 %v1116, %v1402
  %v1540 = vadd.f32 %v1117, %v1481
  %v1541 = vadd.f32 %v1118, %v1405
  %v1542 = vadd.f32 %v1119, %v1484
  %v1543 = vadd.f32 %v1120, %v1407
  %v1544 = vadd.f32 %v1121, %v1486
  %v1545 = vadd.f32 %v1122, %v1410
  %v1546 = vadd.f32 %v1123, %v1489
  %v1547 = vadd.f32 %v1124, %v1412
  %v1548 = vadd.f32 %v1125, %v1491
  %v1549 = vld [vmem:[%s0 + $0x10] sm:$0xf]
  %v1550 = vld [vmem:[%s0 + $0x14] sm:$0xf]
  %v1551 = vld [vmem:[%s0 + $0x18] sm:$0xf]
  %v1552 = vld [vmem:[%s0 + $0x1c] sm:$0xf]
  %v1553 = vld [vmem:[%s0 + $0x20] sm:$0xf]
  %v1554 = vld [vmem:[%s0 + $0x24] sm:$0xf]
  %v1555 = vld [vmem:[%s0 + $0x28] sm:$0xf]
  %v1556 = vld [vmem:[%s0 + $0x2c] sm:$0xf]
  %v1557 = vld [vmem:[%s0 + $0x30] sm:$0xf]
  %v1558 = vld [vmem:[%s0 + $0x34] sm:$0xf]
  %v1559 = vld [vmem:[%s0 + $0x38] sm:$0xf]
  %v1560 = vld [vmem:[%s0 + $0x3c] sm:$0xf]
  %v1561 = vld [vmem:[%s0 + $0x40] sm:$0xf]
  %v1562 = vld [vmem:[%s0 + $0x44] sm:$0xf]
  %v1563 = vld [vmem:[%s0 + $0x48] sm:$0xf]
  %v1564 = vld [vmem:[%s0 + $0x4c] sm:$0xf]
  %v1565 = vld [vmem:[%s0 + $0x50] sm:$0xf]
  %v1566 = vld [vmem:[%s0 + $0x54] sm:$0xf]
  %v1567 = vld [vmem:[%s0 + $0x58] sm:$0xf]
  %v1568 = vld [vmem:[%s0 + $0x5c] sm:$0xf]
  %v1569 = vld [vmem:[%s0 + $0x60] sm:$0xf]
  %v1570 = vld [vmem:[%s0 + $0x64] sm:$0xf]
  %v1571 = vld [vmem:[%s0 + $0x68] sm:$0xf]
  %v1572 = vld [vmem:[%s0 + $0x6c] sm:$0xf]
  %v1573 = vld [vmem:[%s0 + $0x70] sm:$0xf]
  %v1574 = vld [vmem:[%s0 + $0x74] sm:$0xf]
  %v1575 = vld [vmem:[%s0 + $0x78] sm:$0xf]
  %v1576 = vld [vmem:[%s0 + $0x7c] sm:$0xf]
  %s1577 = scalar_lea.vmem %s1, 512
  %v1578 = vld [vmem:[%s1577] sm:$0xff]
  %v1579 = vld [vmem:[%s1577 + $0x8] sm:$0xff]
  %v1580 = vld [vmem:[%s1577 + $0x10] sm:$0xff]
  %v1581 = vld [vmem:[%s1577 + $0x18] sm:$0xff]
  %v1582 = vld [vmem:[%s1577 + $0x20] sm:$0xff]
  %v1583 = vld [vmem:[%s1577 + $0x28] sm:$0xff]
  %v1584 = vld [vmem:[%s1577 + $0x30] sm:$0xff]
  %v1585 = vld [vmem:[%s1577 + $0x38] sm:$0xff]
  %v1586 = vld [vmem:[%s1577 + $0x40] sm:$0xff]
  %v1587 = vld [vmem:[%s1577 + $0x48] sm:$0xff]
  %v1588 = vld [vmem:[%s1577 + $0x50] sm:$0xff]
  %v1589 = vld [vmem:[%s1577 + $0x58] sm:$0xff]
  %v1590 = vld [vmem:[%s1577 + $0x60] sm:$0xff]
  %v1591 = vld [vmem:[%s1577 + $0x68] sm:$0xff]
  %v1592 = vld [vmem:[%s1577 + $0x70] sm:$0xff]
  %v1593 = vld [vmem:[%s1577 + $0x78] sm:$0xff]
  %v1622 = vunpack.c.l.b16 %v1549
  %v1623 = vunpack.c.l.b16 %v1550
  %v1624 = vunpack.c.l.b16 %v1551
  %v1625 = vunpack.c.l.b16 %v1552
  %v1626 = vunpack.c.l.b16 %v1553
  %v1627 = vunpack.c.l.b16 %v1554
  %v1628 = vunpack.c.l.b16 %v1555
  %v1629 = vunpack.c.l.b16 %v1556
  %v1630 = vunpack.c.l.b16 %v1557
  %v1631 = vunpack.c.l.b16 %v1558
  %v1632 = vunpack.c.l.b16 %v1559
  %v1633 = vunpack.c.l.b16 %v1560
  %v1634 = vunpack.c.l.b16 %v1561
  %v1635 = vunpack.c.l.b16 %v1562
  %v1636 = vunpack.c.l.b16 %v1563
  %v1637 = vunpack.c.l.b16 %v1564
  %v1638 = vunpack.c.l.b16 %v1565
  %v1639 = vunpack.c.l.b16 %v1566
  %v1640 = vunpack.c.l.b16 %v1567
  %v1641 = vunpack.c.l.b16 %v1568
  %v1642 = vunpack.c.l.b16 %v1569
  %v1643 = vunpack.c.l.b16 %v1570
  %v1644 = vunpack.c.l.b16 %v1571
  %v1645 = vunpack.c.l.b16 %v1572
  %v1646 = vunpack.c.l.b16 %v1573
  %v1647 = vunpack.c.l.b16 %v1574
  %v1648 = vunpack.c.l.b16 %v1575
  %v1649 = vunpack.c.l.b16 %v1576
  %v1650 = vpack.c.b16 %v1623, %v1622
  %v1651 = vpack.c.b16 %v1625, %v1624
  %v1652 = vpack.c.b16 %v1627, %v1626
  %v1653 = vpack.c.b16 %v1629, %v1628
  %v1654 = vpack.c.b16 %v1631, %v1630
  %v1655 = vpack.c.b16 %v1633, %v1632
  %v1656 = vpack.c.b16 %v1635, %v1634
  %v1657 = vpack.c.b16 %v1637, %v1636
  %v1658 = vpack.c.b16 %v1639, %v1638
  %v1659 = vpack.c.b16 %v1641, %v1640
  %v1660 = vpack.c.b16 %v1643, %v1642
  %v1661 = vpack.c.b16 %v1645, %v1644
  %v1662 = vpack.c.b16 %v1647, %v1646
  %v1663 = vpack.c.b16 %v1649, %v1648
  %v1694 = vunpack.c.l.b16 %v1578
  %v1695 = vunpack.c.h.b16 %v1578
  %v1696 = vunpack.c.l.b16 %v1579
  %v1697 = vunpack.c.h.b16 %v1579
  %v1698 = vunpack.c.l.b16 %v1580
  %v1699 = vunpack.c.h.b16 %v1580
  %v1700 = vunpack.c.l.b16 %v1581
  %v1701 = vunpack.c.h.b16 %v1581
  %v1702 = vunpack.c.l.b16 %v1582
  %v1703 = vunpack.c.h.b16 %v1582
  %v1704 = vunpack.c.l.b16 %v1583
  %v1705 = vunpack.c.h.b16 %v1583
  %v1706 = vunpack.c.l.b16 %v1584
  %v1707 = vunpack.c.h.b16 %v1584
  %v1708 = vunpack.c.l.b16 %v1585
  %v1709 = vunpack.c.h.b16 %v1585
  %v1710 = vunpack.c.l.b16 %v1586
  %v1711 = vunpack.c.h.b16 %v1586
  %v1712 = vunpack.c.l.b16 %v1587
  %v1713 = vunpack.c.h.b16 %v1587
  %v1714 = vunpack.c.l.b16 %v1588
  %v1715 = vunpack.c.h.b16 %v1588
  %v1716 = vunpack.c.l.b16 %v1589
  %v1717 = vunpack.c.h.b16 %v1589
  %v1718 = vunpack.c.l.b16 %v1590
  %v1719 = vunpack.c.h.b16 %v1590
  %v1720 = vunpack.c.l.b16 %v1591
  %v1721 = vunpack.c.h.b16 %v1591
  %v1722 = vunpack.c.l.b16 %v1592
  %v1723 = vunpack.c.h.b16 %v1592
  %v1724 = vunpack.c.l.b16 %v1593
  %v1725 = vunpack.c.h.b16 %v1593
  %v1726 = vpack.c.b16 %v1696, %v1694
  %v1727 = vpack.c.b16 %v1697, %v1695
  %v1728 = vpack.c.b16 %v1700, %v1698
  %v1729 = vpack.c.b16 %v1701, %v1699
  %v1730 = vpack.c.b16 %v1704, %v1702
  %v1731 = vpack.c.b16 %v1705, %v1703
  %v1732 = vpack.c.b16 %v1708, %v1706
  %v1733 = vpack.c.b16 %v1709, %v1707
  %v1734 = vpack.c.b16 %v1712, %v1710
  %v1735 = vpack.c.b16 %v1713, %v1711
  %v1736 = vpack.c.b16 %v1716, %v1714
  %v1737 = vpack.c.b16 %v1717, %v1715
  %v1738 = vpack.c.b16 %v1720, %v1718
  %v1739 = vpack.c.b16 %v1721, %v1719
  %v1740 = vpack.c.b16 %v1724, %v1722
  %v1741 = vpack.c.b16 %v1725, %v1723
  %1758 = vmatpush.bf16.msra.mxu0 %v1740
  %1759 = vmatpush.bf16.msra.mxu0 %v1738
  %1760 = vmatpush.bf16.msra.mxu0 %v1736
  %1761 = vmatpush.bf16.msra.mxu0 %v1734
  %1762 = vmatpush.bf16.msra.mxu0 %v1732
  %1763 = vmatpush.bf16.msra.mxu0 %v1730
  %1764 = vmatpush.bf16.msra.mxu0 %v1728
  %1765 = vmatpush.bf16.msra.mxu0 %v1726
  %1766 = vmatmul.bf16.gmra.mxu0 %v1650
  %v1767 = vpop.f32.mrf.mxu0
  %v1768 = vadd.f32 0.0, %v1767
  %v1769 = vpop.f32.mrf.mxu0
  %v1770 = vadd.f32 0.0, %v1769
  %1771 = vmatmul.bf16.gmra.mxu0 %v1651
  %v1772 = vpop.f32.mrf.mxu0
  %v1773 = vadd.f32 0.0, %v1772
  %v1774 = vpop.f32.mrf.mxu0
  %v1775 = vadd.f32 0.0, %v1774
  %1776 = vmatmul.bf16.gmra.mxu0 %v1652
  %v1777 = vpop.f32.mrf.mxu0
  %v1778 = vadd.f32 0.0, %v1777
  %v1779 = vpop.f32.mrf.mxu0
  %v1780 = vadd.f32 0.0, %v1779
  %1781 = vmatmul.bf16.gmra.mxu0 %v1653
  %v1782 = vpop.f32.mrf.mxu0
  %v1783 = vadd.f32 0.0, %v1782
  %v1784 = vpop.f32.mrf.mxu0
  %v1785 = vadd.f32 0.0, %v1784
  %1786 = vmatmul.bf16.gmra.mxu0 %v1654
  %v1787 = vpop.f32.mrf.mxu0
  %v1788 = vadd.f32 0.0, %v1787
  %v1789 = vpop.f32.mrf.mxu0
  %v1790 = vadd.f32 0.0, %v1789
  %1791 = vmatmul.bf16.gmra.mxu0 %v1655
  %v1792 = vpop.f32.mrf.mxu0
  %v1793 = vadd.f32 0.0, %v1792
  %v1794 = vpop.f32.mrf.mxu0
  %v1795 = vadd.f32 0.0, %v1794
  %1796 = vmatmul.bf16.gmra.mxu0 %v1656
  %v1797 = vpop.f32.mrf.mxu0
  %v1798 = vadd.f32 0.0, %v1797
  %v1799 = vpop.f32.mrf.mxu0
  %v1800 = vadd.f32 0.0, %v1799
  %1801 = vmatmul.bf16.gmra.mxu0 %v1657
  %v1802 = vpop.f32.mrf.mxu0
  %v1803 = vadd.f32 0.0, %v1802
  %v1804 = vpop.f32.mrf.mxu0
  %v1805 = vadd.f32 0.0, %v1804
  %1806 = vmatmul.bf16.gmra.mxu0 %v1658
  %v1807 = vpop.f32.mrf.mxu0
  %v1808 = vadd.f32 0.0, %v1807
  %v1809 = vpop.f32.mrf.mxu0
  %v1810 = vadd.f32 0.0, %v1809
  %1811 = vmatmul.bf16.gmra.mxu0 %v1659
  %v1812 = vpop.f32.mrf.mxu0
  %v1813 = vadd.f32 0.0, %v1812
  %v1814 = vpop.f32.mrf.mxu0
  %v1815 = vadd.f32 0.0, %v1814
  %1816 = vmatmul.bf16.gmra.mxu0 %v1660
  %v1817 = vpop.f32.mrf.mxu0
  %v1818 = vadd.f32 0.0, %v1817
  %v1819 = vpop.f32.mrf.mxu0
  %v1820 = vadd.f32 0.0, %v1819
  %1821 = vmatmul.bf16.gmra.mxu0 %v1661
  %v1822 = vpop.f32.mrf.mxu0
  %v1823 = vadd.f32 0.0, %v1822
  %v1824 = vpop.f32.mrf.mxu0
  %v1825 = vadd.f32 0.0, %v1824
  %1826 = vmatmul.bf16.gmra.mxu0 %v1662
  %v1827 = vpop.f32.mrf.mxu0
  %v1828 = vadd.f32 0.0, %v1827
  %v1829 = vpop.f32.mrf.mxu0
  %v1830 = vadd.f32 0.0, %v1829
  %1831 = vmatmul.bf16.gmra.mxu0 %v1663
  %v1832 = vpop.f32.mrf.mxu0
  %v1833 = vadd.f32 0.0, %v1832
  %v1834 = vpop.f32.mrf.mxu0
  %v1835 = vadd.f32 0.0, %v1834
  %1836 = vdwg.mxu0
  %1837 = vmatpush.bf16.msra.mxu0 %v1741
  %1838 = vmatpush.bf16.msra.mxu0 %v1739
  %1839 = vmatpush.bf16.msra.mxu0 %v1737
  %1840 = vmatpush.bf16.msra.mxu0 %v1735
  %1841 = vmatpush.bf16.msra.mxu0 %v1733
  %1842 = vmatpush.bf16.msra.mxu0 %v1731
  %1843 = vmatpush.bf16.msra.mxu0 %v1729
  %1844 = vmatpush.bf16.msra.mxu0 %v1727
  %1845 = vmatmul.bf16.gmra.mxu0 %v1650
  %v1846 = vpop.f32.mrf.mxu0
  %v1847 = vadd.f32 0.0, %v1846
  %v1848 = vpop.f32.mrf.mxu0
  %v1849 = vadd.f32 0.0, %v1848
  %1850 = vmatmul.bf16.gmra.mxu0 %v1651
  %v1851 = vpop.f32.mrf.mxu0
  %v1852 = vadd.f32 0.0, %v1851
  %v1853 = vpop.f32.mrf.mxu0
  %v1854 = vadd.f32 0.0, %v1853
  %1855 = vmatmul.bf16.gmra.mxu0 %v1652
  %v1856 = vpop.f32.mrf.mxu0
  %v1857 = vadd.f32 0.0, %v1856
  %v1858 = vpop.f32.mrf.mxu0
  %v1859 = vadd.f32 0.0, %v1858
  %1860 = vmatmul.bf16.gmra.mxu0 %v1653
  %v1861 = vpop.f32.mrf.mxu0
  %v1862 = vadd.f32 0.0, %v1861
  %v1863 = vpop.f32.mrf.mxu0
  %v1864 = vadd.f32 0.0, %v1863
  %1865 = vmatmul.bf16.gmra.mxu0 %v1654
  %v1866 = vpop.f32.mrf.mxu0
  %v1867 = vadd.f32 0.0, %v1866
  %v1868 = vpop.f32.mrf.mxu0
  %v1869 = vadd.f32 0.0, %v1868
  %1870 = vmatmul.bf16.gmra.mxu0 %v1655
  %v1871 = vpop.f32.mrf.mxu0
  %v1872 = vadd.f32 0.0, %v1871
  %v1873 = vpop.f32.mrf.mxu0
  %v1874 = vadd.f32 0.0, %v1873
  %1875 = vmatmul.bf16.gmra.mxu0 %v1656
  %v1876 = vpop.f32.mrf.mxu0
  %v1877 = vadd.f32 0.0, %v1876
  %v1878 = vpop.f32.mrf.mxu0
  %v1879 = vadd.f32 0.0, %v1878
  %1880 = vmatmul.bf16.gmra.mxu0 %v1657
  %v1881 = vpop.f32.mrf.mxu0
  %v1882 = vadd.f32 0.0, %v1881
  %v1883 = vpop.f32.mrf.mxu0
  %v1884 = vadd.f32 0.0, %v1883
  %1885 = vmatmul.bf16.gmra.mxu0 %v1658
  %v1886 = vpop.f32.mrf.mxu0
  %v1887 = vadd.f32 0.0, %v1886
  %v1888 = vpop.f32.mrf.mxu0
  %v1889 = vadd.f32 0.0, %v1888
  %1890 = vmatmul.bf16.gmra.mxu0 %v1659
  %v1891 = vpop.f32.mrf.mxu0
  %v1892 = vadd.f32 0.0, %v1891
  %v1893 = vpop.f32.mrf.mxu0
  %v1894 = vadd.f32 0.0, %v1893
  %1895 = vmatmul.bf16.gmra.mxu0 %v1660
  %v1896 = vpop.f32.mrf.mxu0
  %v1897 = vadd.f32 0.0, %v1896
  %v1898 = vpop.f32.mrf.mxu0
  %v1899 = vadd.f32 0.0, %v1898
  %1900 = vmatmul.bf16.gmra.mxu0 %v1661
  %v1901 = vpop.f32.mrf.mxu0
  %v1902 = vadd.f32 0.0, %v1901
  %v1903 = vpop.f32.mrf.mxu0
  %v1904 = vadd.f32 0.0, %v1903
  %1905 = vmatmul.bf16.gmra.mxu0 %v1662
  %v1906 = vpop.f32.mrf.mxu0
  %v1907 = vadd.f32 0.0, %v1906
  %v1908 = vpop.f32.mrf.mxu0
  %v1909 = vadd.f32 0.0, %v1908
  %1910 = vmatmul.bf16.gmra.mxu0 %v1663
  %v1911 = vpop.f32.mrf.mxu0
  %v1912 = vadd.f32 0.0, %v1911
  %v1913 = vpop.f32.mrf.mxu0
  %v1914 = vadd.f32 0.0, %v1913
  %1915 = vdwg.mxu0
  %v1916 = vadd.f32 %v1493, %v1768
  %v1917 = vadd.f32 %v1494, %v1847
  %v1918 = vadd.f32 %v1495, %v1770
  %v1919 = vadd.f32 %v1496, %v1849
  %v1920 = vadd.f32 %v1497, %v1773
  %v1921 = vadd.f32 %v1498, %v1852
  %v1922 = vadd.f32 %v1499, %v1775
  %v1923 = vadd.f32 %v1500, %v1854
  %v1924 = vadd.f32 %v1501, %v1778
  %v1925 = vadd.f32 %v1502, %v1857
  %v1926 = vadd.f32 %v1503, %v1780
  %v1927 = vadd.f32 %v1504, %v1859
  %v1928 = vadd.f32 %v1505, %v1783
  %v1929 = vadd.f32 %v1506, %v1862
  %v1930 = vadd.f32 %v1507, %v1785
  %v1931 = vadd.f32 %v1508, %v1864
  %v1932 = vadd.f32 %v1509, %v1788
  %v1933 = vadd.f32 %v1510, %v1867
  %v1934 = vadd.f32 %v1511, %v1790
  %v1935 = vadd.f32 %v1512, %v1869
  %v1936 = vadd.f32 %v1513, %v1793
  %v1937 = vadd.f32 %v1514, %v1872
  %v1938 = vadd.f32 %v1515, %v1795
  %v1939 = vadd.f32 %v1516, %v1874
  %v1940 = vadd.f32 %v1517, %v1798
  %v1941 = vadd.f32 %v1518, %v1877
  %v1942 = vadd.f32 %v1519, %v1800
  %v1943 = vadd.f32 %v1520, %v1879
  %v1944 = vadd.f32 %v1521, %v1803
  %v1945 = vadd.f32 %v1522, %v1882
  %v1946 = vadd.f32 %v1523, %v1805
  %v1947 = vadd.f32 %v1524, %v1884
  %v1948 = vadd.f32 %v1525, %v1808
  %v1949 = vadd.f32 %v1526, %v1887
  %v1950 = vadd.f32 %v1527, %v1810
  %v1951 = vadd.f32 %v1528, %v1889
  %v1952 = vadd.f32 %v1529, %v1813
  %v1953 = vadd.f32 %v1530, %v1892
  %v1954 = vadd.f32 %v1531, %v1815
  %v1955 = vadd.f32 %v1532, %v1894
  %v1956 = vadd.f32 %v1533, %v1818
  %v1957 = vadd.f32 %v1534, %v1897
  %v1958 = vadd.f32 %v1535, %v1820
  %v1959 = vadd.f32 %v1536, %v1899
  %v1960 = vadd.f32 %v1537, %v1823
  %v1961 = vadd.f32 %v1538, %v1902
  %v1962 = vadd.f32 %v1539, %v1825
  %v1963 = vadd.f32 %v1540, %v1904
  %v1964 = vadd.f32 %v1541, %v1828
  %v1965 = vadd.f32 %v1542, %v1907
  %v1966 = vadd.f32 %v1543, %v1830
  %v1967 = vadd.f32 %v1544, %v1909
  %v1968 = vadd.f32 %v1545, %v1833
  %v1969 = vadd.f32 %v1546, %v1912
  %v1970 = vadd.f32 %v1547, %v1835
  %v1971 = vadd.f32 %v1548, %v1914
  %v1972 = vld [vmem:[%s2] sm:$0x3]
  %v1974 = vperm.slane %v1972, 0
  %v1975 = vperm.slane %v1972, 1
  %v1978 = vadd.f32 %v1916, %v1974
  %v1979 = vadd.f32 %v1917, %v1975
  %v1980 = vadd.f32 %v1918, %v1974
  %v1981 = vadd.f32 %v1919, %v1975
  %v1982 = vadd.f32 %v1920, %v1974
  %v1983 = vadd.f32 %v1921, %v1975
  %v1984 = vadd.f32 %v1922, %v1974
  %v1985 = vadd.f32 %v1923, %v1975
  %v1986 = vadd.f32 %v1924, %v1974
  %v1987 = vadd.f32 %v1925, %v1975
  %v1988 = vadd.f32 %v1926, %v1974
  %v1989 = vadd.f32 %v1927, %v1975
  %v1990 = vadd.f32 %v1928, %v1974
  %v1991 = vadd.f32 %v1929, %v1975
  %v1992 = vadd.f32 %v1930, %v1974
  %v1993 = vadd.f32 %v1931, %v1975
  %v1994 = vadd.f32 %v1932, %v1974
  %v1995 = vadd.f32 %v1933, %v1975
  %v1996 = vadd.f32 %v1934, %v1974
  %v1997 = vadd.f32 %v1935, %v1975
  %v1998 = vadd.f32 %v1936, %v1974
  %v1999 = vadd.f32 %v1937, %v1975
  %v2000 = vadd.f32 %v1938, %v1974
  %v2001 = vadd.f32 %v1939, %v1975
  %v2002 = vadd.f32 %v1940, %v1974
  %v2003 = vadd.f32 %v1941, %v1975
  %v2004 = vadd.f32 %v1942, %v1974
  %v2005 = vadd.f32 %v1943, %v1975
  %v2006 = vadd.f32 %v1944, %v1974
  %v2007 = vadd.f32 %v1945, %v1975
  %v2008 = vadd.f32 %v1946, %v1974
  %v2009 = vadd.f32 %v1947, %v1975
  %v2010 = vadd.f32 %v1948, %v1974
  %v2011 = vadd.f32 %v1949, %v1975
  %v2012 = vadd.f32 %v1950, %v1974
  %v2013 = vadd.f32 %v1951, %v1975
  %v2014 = vadd.f32 %v1952, %v1974
  %v2015 = vadd.f32 %v1953, %v1975
  %v2016 = vadd.f32 %v1954, %v1974
  %v2017 = vadd.f32 %v1955, %v1975
  %v2018 = vadd.f32 %v1956, %v1974
  %v2019 = vadd.f32 %v1957, %v1975
  %v2020 = vadd.f32 %v1958, %v1974
  %v2021 = vadd.f32 %v1959, %v1975
  %v2022 = vadd.f32 %v1960, %v1974
  %v2023 = vadd.f32 %v1961, %v1975
  %v2024 = vadd.f32 %v1962, %v1974
  %v2025 = vadd.f32 %v1963, %v1975
  %v2026 = vadd.f32 %v1964, %v1974
  %v2027 = vadd.f32 %v1965, %v1975
  %v2028 = vadd.f32 %v1966, %v1974
  %v2029 = vadd.f32 %v1967, %v1975
  %v2030 = vadd.f32 %v1968, %v1974
  %v2031 = vadd.f32 %v1969, %v1975
  %v2032 = vadd.f32 %v1970, %v1974
  %v2033 = vadd.f32 %v1971, %v1975
  %v2034 = vmax.f32 %v1978, 0.0
  %v2035 = vmax.f32 %v1979, 0.0
  %v2036 = vmax.f32 %v1980, 0.0
  %v2037 = vmax.f32 %v1981, 0.0
  %v2038 = vmax.f32 %v1982, 0.0
  %v2039 = vmax.f32 %v1983, 0.0
  %v2040 = vmax.f32 %v1984, 0.0
  %v2041 = vmax.f32 %v1985, 0.0
  %v2042 = vmax.f32 %v1986, 0.0
  %v2043 = vmax.f32 %v1987, 0.0
  %v2044 = vmax.f32 %v1988, 0.0
  %v2045 = vmax.f32 %v1989, 0.0
  %v2046 = vmax.f32 %v1990, 0.0
  %v2047 = vmax.f32 %v1991, 0.0
  %v2048 = vmax.f32 %v1992, 0.0
  %v2049 = vmax.f32 %v1993, 0.0
  %v2050 = vmax.f32 %v1994, 0.0
  %v2051 = vmax.f32 %v1995, 0.0
  %v2052 = vmax.f32 %v1996, 0.0
  %v2053 = vmax.f32 %v1997, 0.0
  %v2054 = vmax.f32 %v1998, 0.0
  %v2055 = vmax.f32 %v1999, 0.0
  %v2056 = vmax.f32 %v2000, 0.0
  %v2057 = vmax.f32 %v2001, 0.0
  %v2058 = vmax.f32 %v2002, 0.0
  %v2059 = vmax.f32 %v2003, 0.0
  %v2060 = vmax.f32 %v2004, 0.0
  %v2061 = vmax.f32 %v2005, 0.0
  %v2062 = vmax.f32 %v2006, 0.0
  %v2063 = vmax.f32 %v2007, 0.0
  %v2064 = vmax.f32 %v2008, 0.0
  %v2065 = vmax.f32 %v2009, 0.0
  %v2066 = vmax.f32 %v2010, 0.0
  %v2067 = vmax.f32 %v2011, 0.0
  %v2068 = vmax.f32 %v2012, 0.0
  %v2069 = vmax.f32 %v2013, 0.0
  %v2070 = vmax.f32 %v2014, 0.0
  %v2071 = vmax.f32 %v2015, 0.0
  %v2072 = vmax.f32 %v2016, 0.0
  %v2073 = vmax.f32 %v2017, 0.0
  %v2074 = vmax.f32 %v2018, 0.0
  %v2075 = vmax.f32 %v2019, 0.0
  %v2076 = vmax.f32 %v2020, 0.0
  %v2077 = vmax.f32 %v2021, 0.0
  %v2078 = vmax.f32 %v2022, 0.0
  %v2079 = vmax.f32 %v2023, 0.0
  %v2080 = vmax.f32 %v2024, 0.0
  %v2081 = vmax.f32 %v2025, 0.0
  %v2082 = vmax.f32 %v2026, 0.0
  %v2083 = vmax.f32 %v2027, 0.0
  %v2084 = vmax.f32 %v2028, 0.0
  %v2085 = vmax.f32 %v2029, 0.0
  %v2086 = vmax.f32 %v2030, 0.0
  %v2087 = vmax.f32 %v2031, 0.0
  %v2088 = vmax.f32 %v2032, 0.0
  %v2089 = vmax.f32 %v2033, 0.0
  %v2090 = vmax.f32 %v2034, %v2036
  %v2091 = vmax.f32 %v2035, %v2037
  %v2092 = vmax.f32 %v2036, %v2038
  %v2093 = vmax.f32 %v2037, %v2039
  %v2094 = vmax.f32 %v2038, %v2040
  %v2095 = vmax.f32 %v2039, %v2041
  %v2096 = vmax.f32 %v2040, %v2042
  %v2097 = vmax.f32 %v2041, %v2043
  %v2098 = vmax.f32 %v2042, %v2044
  %v2099 = vmax.f32 %v2043, %v2045
  %v2100 = vmax.f32 %v2044, %v2046
  %v2101 = vmax.f32 %v2045, %v2047
  %v2102 = vmax.f32 %v2046, %v2048
  %v2103 = vmax.f32 %v2047, %v2049
  %v2104 = vmax.f32 %v2048, %v2050
  %v2105 = vmax.f32 %v2049, %v2051
  %v2106 = vmax.f32 %v2050, %v2052
  %v2107 = vmax.f32 %v2051, %v2053
  %v2108 = vmax.f32 %v2052, %v2054
  %v2109 = vmax.f32 %v2053, %v2055
  %v2110 = vmax.f32 %v2054, %v2056
  %v2111 = vmax.f32 %v2055, %v2057
  %v2112 = vmax.f32 %v2056, %v2058
  %v2113 = vmax.f32 %v2057, %v2059
  %v2114 = vmax.f32 %v2058, %v2060
  %v2115 = vmax.f32 %v2059, %v2061
  %v2116 = vmax.f32 %v2060, %v2062
  %v2117 = vmax.f32 %v2061, %v2063
  %v2118 = vmax.f32 %v2062, %v2064
  %v2119 = vmax.f32 %v2063, %v2065
  %v2120 = vmax.f32 %v2064, %v2066
  %v2121 = vmax.f32 %v2065, %v2067
  %v2122 = vmax.f32 %v2066, %v2068
  %v2123 = vmax.f32 %v2067, %v2069
  %v2124 = vmax.f32 %v2068, %v2070
  %v2125 = vmax.f32 %v2069, %v2071
  %v2126 = vmax.f32 %v2070, %v2072
  %v2127 = vmax.f32 %v2071, %v2073
  %v2128 = vmax.f32 %v2072, %v2074
  %v2129 = vmax.f32 %v2073, %v2075
  %v2130 = vmax.f32 %v2074, %v2076
  %v2131 = vmax.f32 %v2075, %v2077
  %v2132 = vmax.f32 %v2076, %v2078
  %v2133 = vmax.f32 %v2077, %v2079
  %v2134 = vmax.f32 %v2078, %v2080
  %v2135 = vmax.f32 %v2079, %v2081
  %v2136 = vmax.f32 %v2080, %v2082
  %v2137 = vmax.f32 %v2081, %v2083
  %v2138 = vmax.f32 %v2082, %v2084
  %v2139 = vmax.f32 %v2083, %v2085
  %v2140 = vmax.f32 %v2084, %v2086
  %v2141 = vmax.f32 %v2085, %v2087
  %v2142 = vmax.f32 %v2086, %v2088
  %v2143 = vmax.f32 %v2087, %v2089
  %v2144 = vpack.c.bf16 %v2092, %v2090
  %v2145 = vpack.c.bf16 %v2093, %v2091
  %v2146 = vpack.c.bf16 %v2096, %v2094
  %v2147 = vpack.c.bf16 %v2097, %v2095
  %v2148 = vpack.c.bf16 %v2100, %v2098
  %v2149 = vpack.c.bf16 %v2101, %v2099
  %v2150 = vpack.c.bf16 %v2104, %v2102
  %v2151 = vpack.c.bf16 %v2105, %v2103
  %v2152 = vpack.c.bf16 %v2108, %v2106
  %v2153 = vpack.c.bf16 %v2109, %v2107
  %v2154 = vpack.c.bf16 %v2112, %v2110
  %v2155 = vpack.c.bf16 %v2113, %v2111
  %v2156 = vpack.c.bf16 %v2116, %v2114
  %v2157 = vpack.c.bf16 %v2117, %v2115
  %v2158 = vpack.c.bf16 %v2120, %v2118
  %v2159 = vpack.c.bf16 %v2121, %v2119
  %v2160 = vpack.c.bf16 %v2124, %v2122
  %v2161 = vpack.c.bf16 %v2125, %v2123
  %v2162 = vpack.c.bf16 %v2128, %v2126
  %v2163 = vpack.c.bf16 %v2129, %v2127
  %v2164 = vpack.c.bf16 %v2132, %v2130
  %v2165 = vpack.c.bf16 %v2133, %v2131
  %v2166 = vpack.c.bf16 %v2136, %v2134
  %v2167 = vpack.c.bf16 %v2137, %v2135
  %v2168 = vpack.c.bf16 %v2140, %v2138
  %v2169 = vpack.c.bf16 %v2141, %v2139
  %v2170 = vpack.c.bf16 %v2142, %v2142
  %v2171 = vpack.c.bf16 %v2143, %v2143
  %v2172 = vld [vmem:[%s3] sm:$0xff]
  %v2173 = vld [vmem:[%s3 + $0x8] sm:$0xff]
  %v2174 = vld [vmem:[%s3 + $0x10] sm:$0xff]
  %v2175 = vld [vmem:[%s3 + $0x18] sm:$0xff]
  %v2176 = vld [vmem:[%s3 + $0x20] sm:$0xff]
  %v2177 = vld [vmem:[%s3 + $0x28] sm:$0xff]
  %v2178 = vld [vmem:[%s3 + $0x30] sm:$0xff]
  %v2179 = vld [vmem:[%s3 + $0x38] sm:$0xff]
  %v2180 = vld [vmem:[%s3 + $0x40] sm:$0xff]
  %v2181 = vld [vmem:[%s3 + $0x48] sm:$0xff]
  %v2182 = vld [vmem:[%s3 + $0x50] sm:$0xff]
  %v2183 = vld [vmem:[%s3 + $0x58] sm:$0xff]
  %v2184 = vld [vmem:[%s3 + $0x60] sm:$0xff]
  %v2185 = vld [vmem:[%s3 + $0x68] sm:$0xff]
  %v2200 = vunpack.c.l.b16 %v2172
  %v2201 = vunpack.c.h.b16 %v2172
  %v2202 = vunpack.c.l.b16 %v2173
  %v2203 = vunpack.c.h.b16 %v2173
  %v2204 = vunpack.c.l.b16 %v2174
  %v2205 = vunpack.c.h.b16 %v2174
  %v2206 = vunpack.c.l.b16 %v2175
  %v2207 = vunpack.c.h.b16 %v2175
  %v2208 = vunpack.c.l.b16 %v2176
  %v2209 = vunpack.c.h.b16 %v2176
  %v2210 = vunpack.c.l.b16 %v2177
  %v2211 = vunpack.c.h.b16 %v2177
  %v2212 = vunpack.c.l.b16 %v2178
  %v2213 = vunpack.c.h.b16 %v2178
  %v2214 = vunpack.c.l.b16 %v2179
  %v2215 = vunpack.c.h.b16 %v2179
  %v2216 = vunpack.c.l.b16 %v2180
  %v2217 = vunpack.c.h.b16 %v2180
  %v2218 = vunpack.c.l.b16 %v2181
  %v2219 = vunpack.c.h.b16 %v2181
  %v2220 = vunpack.c.l.b16 %v2182
  %v2221 = vunpack.c.h.b16 %v2182
  %v2222 = vunpack.c.l.b16 %v2183
  %v2223 = vunpack.c.h.b16 %v2183
  %v2224 = vunpack.c.l.b16 %v2184
  %v2225 = vunpack.c.h.b16 %v2184
  %v2226 = vunpack.c.l.b16 %v2185
  %v2227 = vunpack.c.h.b16 %v2185
  %v2228 = vpack.c.b16 %v2202, %v2200
  %v2229 = vpack.c.b16 %v2203, %v2201
  %v2230 = vpack.c.b16 %v2206, %v2204
  %v2231 = vpack.c.b16 %v2207, %v2205
  %v2232 = vpack.c.b16 %v2210, %v2208
  %v2233 = vpack.c.b16 %v2211, %v2209
  %v2234 = vpack.c.b16 %v2214, %v2212
  %v2235 = vpack.c.b16 %v2215, %v2213
  %v2236 = vpack.c.b16 %v2218, %v2216
  %v2237 = vpack.c.b16 %v2219, %v2217
  %v2238 = vpack.c.b16 %v2222, %v2220
  %v2239 = vpack.c.b16 %v2223, %v2221
  %v2240 = vpack.c.b16 %v2226, %v2224
  %v2241 = vpack.c.b16 %v2227, %v2225
  %vm2249 = vcmask 719872
  %v2251 = vsel %vm2249, %v2229, 0
  %v2254 = vsel %vm2249, %v2231, 0
  %v2257 = vsel %vm2249, %v2233, 0
  %v2260 = vsel %vm2249, %v2235, 0
  %v2263 = vsel %vm2249, %v2237, 0
  %v2266 = vsel %vm2249, %v2239, 0
  %v2269 = vsel %vm2249, %v2241, 0
  %vm2271 = vcmask 1043456
  %v2273 = vsel %vm2271, %v2170, 0
  %v2276 = vsel %vm2271, %v2171, 0
  %2278 = vmatpush.bf16.msra.mxu0 %v2158
  %2279 = vmatpush.bf16.msra.mxu0 %v2156
  %2280 = vmatpush.bf16.msra.mxu0 %v2154
  %2281 = vmatpush.bf16.msra.mxu0 %v2152
  %2282 = vmatpush.bf16.msra.mxu0 %v2150
  %2283 = vmatpush.bf16.msra.mxu0 %v2148
  %2284 = vmatpush.bf16.msra.mxu0 %v2146
  %2285 = vmatpush.bf16.msra.mxu0 %v2144
  %2286 = vmatmul.bf16.gmra.mxu0 %v2228
  %v2287 = vpop.f32.mrf.mxu0
  %v2288 = vadd.f32 0.0, %v2287
  %v2289 = vpop.f32.mrf.mxu0
  %v2290 = vadd.f32 0.0, %v2289
  %2291 = vmatmul.bf16.gmra.mxu0 %v2230
  %v2292 = vpop.f32.mrf.mxu0
  %v2293 = vadd.f32 0.0, %v2292
  %v2294 = vpop.f32.mrf.mxu0
  %v2295 = vadd.f32 0.0, %v2294
  %2296 = vmatmul.bf16.gmra.mxu0 %v2232
  %v2297 = vpop.f32.mrf.mxu0
  %v2298 = vadd.f32 0.0, %v2297
  %v2299 = vpop.f32.mrf.mxu0
  %v2300 = vadd.f32 0.0, %v2299
  %2301 = vmatmul.bf16.gmra.mxu0 %v2234
  %v2302 = vpop.f32.mrf.mxu0
  %v2303 = vadd.f32 0.0, %v2302
  %v2304 = vpop.f32.mrf.mxu0
  %v2305 = vadd.f32 0.0, %v2304
  %2306 = vmatmul.bf16.gmra.mxu0 %v2236
  %v2307 = vpop.f32.mrf.mxu0
  %v2308 = vadd.f32 0.0, %v2307
  %v2309 = vpop.f32.mrf.mxu0
  %v2310 = vadd.f32 0.0, %v2309
  %2311 = vmatmul.bf16.gmra.mxu0 %v2238
  %v2312 = vpop.f32.mrf.mxu0
  %v2313 = vadd.f32 0.0, %v2312
  %v2314 = vpop.f32.mrf.mxu0
  %v2315 = vadd.f32 0.0, %v2314
  %2316 = vmatmul.bf16.gmra.mxu0 %v2240
  %v2317 = vpop.f32.mrf.mxu0
  %v2318 = vadd.f32 0.0, %v2317
  %v2319 = vpop.f32.mrf.mxu0
  %v2320 = vadd.f32 0.0, %v2319
  %2321 = vdwg.mxu0
  %2322 = vmatpush.bf16.msra.mxu0 0
  %2323 = vmatpush.bf16.msra.mxu0 0
  %2324 = vmatpush.bf16.msra.mxu0 %v2273
  %2325 = vmatpush.bf16.msra.mxu0 %v2168
  %2326 = vmatpush.bf16.msra.mxu0 %v2166
  %2327 = vmatpush.bf16.msra.mxu0 %v2164
  %2328 = vmatpush.bf16.msra.mxu0 %v2162
  %2329 = vmatpush.bf16.msra.mxu0 %v2160
  %2330 = vmatmul.bf16.gmra.mxu0 %v2251
  %v2331 = vpop.f32.mrf.mxu0
  %v2332 = vadd.f32 %v2288, %v2331
  %v2333 = vpop.f32.mrf.mxu0
  %v2334 = vadd.f32 %v2290, %v2333
  %2335 = vmatmul.bf16.gmra.mxu0 %v2254
  %v2336 = vpop.f32.mrf.mxu0
  %v2337 = vadd.f32 %v2293, %v2336
  %v2338 = vpop.f32.mrf.mxu0
  %v2339 = vadd.f32 %v2295, %v2338
  %2340 = vmatmul.bf16.gmra.mxu0 %v2257
  %v2341 = vpop.f32.mrf.mxu0
  %v2342 = vadd.f32 %v2298, %v2341
  %v2343 = vpop.f32.mrf.mxu0
  %v2344 = vadd.f32 %v2300, %v2343
  %2345 = vmatmul.bf16.gmra.mxu0 %v2260
  %v2346 = vpop.f32.mrf.mxu0
  %v2347 = vadd.f32 %v2303, %v2346
  %v2348 = vpop.f32.mrf.mxu0
  %v2349 = vadd.f32 %v2305, %v2348
  %2350 = vmatmul.bf16.gmra.mxu0 %v2263
  %v2351 = vpop.f32.mrf.mxu0
  %v2352 = vadd.f32 %v2308, %v2351
  %v2353 = vpop.f32.mrf.mxu0
  %v2354 = vadd.f32 %v2310, %v2353
  %2355 = vmatmul.bf16.gmra.mxu0 %v2266
  %v2356 = vpop.f32.mrf.mxu0
  %v2357 = vadd.f32 %v2313, %v2356
  %v2358 = vpop.f32.mrf.mxu0
  %v2359 = vadd.f32 %v2315, %v2358
  %2360 = vmatmul.bf16.gmra.mxu0 %v2269
  %v2361 = vpop.f32.mrf.mxu0
  %v2362 = vadd.f32 %v2318, %v2361
  %v2363 = vpop.f32.mrf.mxu0
  %v2364 = vadd.f32 %v2320, %v2363
  %2365 = vdwg.mxu0
  %2366 = vmatpush.bf16.msra.mxu0 %v2159
  %2367 = vmatpush.bf16.msra.mxu0 %v2157
  %2368 = vmatpush.bf16.msra.mxu0 %v2155
  %2369 = vmatpush.bf16.msra.mxu0 %v2153
  %2370 = vmatpush.bf16.msra.mxu0 %v2151
  %2371 = vmatpush.bf16.msra.mxu0 %v2149
  %2372 = vmatpush.bf16.msra.mxu0 %v2147
  %2373 = vmatpush.bf16.msra.mxu0 %v2145
  %2374 = vmatmul.bf16.gmra.mxu0 %v2228
  %v2375 = vpop.f32.mrf.mxu0
  %v2376 = vadd.f32 0.0, %v2375
  %v2377 = vpop.f32.mrf.mxu0
  %v2378 = vadd.f32 0.0, %v2377
  %2379 = vmatmul.bf16.gmra.mxu0 %v2230
  %v2380 = vpop.f32.mrf.mxu0
  %v2381 = vadd.f32 0.0, %v2380
  %v2382 = vpop.f32.mrf.mxu0
  %v2383 = vadd.f32 0.0, %v2382
  %2384 = vmatmul.bf16.gmra.mxu0 %v2232
  %v2385 = vpop.f32.mrf.mxu0
  %v2386 = vadd.f32 0.0, %v2385
  %v2387 = vpop.f32.mrf.mxu0
  %v2388 = vadd.f32 0.0, %v2387
  %2389 = vmatmul.bf16.gmra.mxu0 %v2234
  %v2390 = vpop.f32.mrf.mxu0
  %v2391 = vadd.f32 0.0, %v2390
  %v2392 = vpop.f32.mrf.mxu0
  %v2393 = vadd.f32 0.0, %v2392
  %2394 = vmatmul.bf16.gmra.mxu0 %v2236
  %v2395 = vpop.f32.mrf.mxu0
  %v2396 = vadd.f32 0.0, %v2395
  %v2397 = vpop.f32.mrf.mxu0
  %v2398 = vadd.f32 0.0, %v2397
  %2399 = vmatmul.bf16.gmra.mxu0 %v2238
  %v2400 = vpop.f32.mrf.mxu0
  %v2401 = vadd.f32 0.0, %v2400
  %v2402 = vpop.f32.mrf.mxu0
  %v2403 = vadd.f32 0.0, %v2402
  %2404 = vmatmul.bf16.gmra.mxu0 %v2240
  %v2405 = vpop.f32.mrf.mxu0
  %v2406 = vadd.f32 0.0, %v2405
  %v2407 = vpop.f32.mrf.mxu0
  %v2408 = vadd.f32 0.0, %v2407
  %2409 = vdwg.mxu0
  %2410 = vmatpush.bf16.msra.mxu0 0
  %2411 = vmatpush.bf16.msra.mxu0 0
  %2412 = vmatpush.bf16.msra.mxu0 %v2276
  %2413 = vmatpush.bf16.msra.mxu0 %v2169
  %2414 = vmatpush.bf16.msra.mxu0 %v2167
  %2415 = vmatpush.bf16.msra.mxu0 %v2165
  %2416 = vmatpush.bf16.msra.mxu0 %v2163
  %2417 = vmatpush.bf16.msra.mxu0 %v2161
  %2418 = vmatmul.bf16.gmra.mxu0 %v2251
  %v2419 = vpop.f32.mrf.mxu0
  %v2420 = vadd.f32 %v2376, %v2419
  %v2421 = vpop.f32.mrf.mxu0
  %v2422 = vadd.f32 %v2378, %v2421
  %2423 = vmatmul.bf16.gmra.mxu0 %v2254
  %v2424 = vpop.f32.mrf.mxu0
  %v2425 = vadd.f32 %v2381, %v2424
  %v2426 = vpop.f32.mrf.mxu0
  %v2427 = vadd.f32 %v2383, %v2426
  %2428 = vmatmul.bf16.gmra.mxu0 %v2257
  %v2429 = vpop.f32.mrf.mxu0
  %v2430 = vadd.f32 %v2386, %v2429
  %v2431 = vpop.f32.mrf.mxu0
  %v2432 = vadd.f32 %v2388, %v2431
  %2433 = vmatmul.bf16.gmra.mxu0 %v2260
  %v2434 = vpop.f32.mrf.mxu0
  %v2435 = vadd.f32 %v2391, %v2434
  %v2436 = vpop.f32.mrf.mxu0
  %v2437 = vadd.f32 %v2393, %v2436
  %2438 = vmatmul.bf16.gmra.mxu0 %v2263
  %v2439 = vpop.f32.mrf.mxu0
  %v2440 = vadd.f32 %v2396, %v2439
  %v2441 = vpop.f32.mrf.mxu0
  %v2442 = vadd.f32 %v2398, %v2441
  %2443 = vmatmul.bf16.gmra.mxu0 %v2266
  %v2444 = vpop.f32.mrf.mxu0
  %v2445 = vadd.f32 %v2401, %v2444
  %v2446 = vpop.f32.mrf.mxu0
  %v2447 = vadd.f32 %v2403, %v2446
  %2448 = vmatmul.bf16.gmra.mxu0 %v2269
  %v2449 = vpop.f32.mrf.mxu0
  %v2450 = vadd.f32 %v2406, %v2449
  %v2451 = vpop.f32.mrf.mxu0
  %v2452 = vadd.f32 %v2408, %v2451
  %2453 = vdwg.mxu0
  %2482 = vrot.lane.b32.xlu0 %v2332, 122
  %v2483 = vpop.permute.xlu0 %2482
  %2484 = vrot.lane.b32.xlu0 %v2420, 122
  %v2485 = vpop.permute.xlu0 %2484
  %2486 = vrot.lane.b32.xlu0 %v2334, 122
  %v2487 = vpop.permute.xlu0 %2486
  %2488 = vrot.lane.b32.xlu0 %v2422, 122
  %v2489 = vpop.permute.xlu0 %2488
  %2490 = vrot.lane.b32.xlu0 %v2337, 122
  %v2491 = vpop.permute.xlu0 %2490
  %2492 = vrot.lane.b32.xlu0 %v2425, 122
  %v2493 = vpop.permute.xlu0 %2492
  %2494 = vrot.lane.b32.xlu0 %v2339, 122
  %v2495 = vpop.permute.xlu0 %2494
  %2496 = vrot.lane.b32.xlu0 %v2427, 122
  %v2497 = vpop.permute.xlu0 %2496
  %2498 = vrot.lane.b32.xlu0 %v2342, 122
  %v2499 = vpop.permute.xlu0 %2498
  %2500 = vrot.lane.b32.xlu0 %v2430, 122
  %v2501 = vpop.permute.xlu0 %2500
  %2502 = vrot.lane.b32.xlu0 %v2344, 122
  %v2503 = vpop.permute.xlu0 %2502
  %2504 = vrot.lane.b32.xlu0 %v2432, 122
  %v2505 = vpop.permute.xlu0 %2504
  %2506 = vrot.lane.b32.xlu0 %v2347, 122
  %v2507 = vpop.permute.xlu0 %2506
  %2508 = vrot.lane.b32.xlu0 %v2435, 122
  %v2509 = vpop.permute.xlu0 %2508
  %2510 = vrot.lane.b32.xlu0 %v2349, 122
  %v2511 = vpop.permute.xlu0 %2510
  %2512 = vrot.lane.b32.xlu0 %v2437, 122
  %v2513 = vpop.permute.xlu0 %2512
  %2514 = vrot.lane.b32.xlu0 %v2352, 122
  %v2515 = vpop.permute.xlu0 %2514
  %2516 = vrot.lane.b32.xlu0 %v2440, 122
  %v2517 = vpop.permute.xlu0 %2516
  %2518 = vrot.lane.b32.xlu0 %v2354, 122
  %v2519 = vpop.permute.xlu0 %2518
  %2520 = vrot.lane.b32.xlu0 %v2442, 122
  %v2521 = vpop.permute.xlu0 %2520
  %2522 = vrot.lane.b32.xlu0 %v2357, 122
  %v2523 = vpop.permute.xlu0 %2522
  %2524 = vrot.lane.b32.xlu0 %v2445, 122
  %v2525 = vpop.permute.xlu0 %2524
  %2526 = vrot.lane.b32.xlu0 %v2359, 122
  %v2527 = vpop.permute.xlu0 %2526
  %2528 = vrot.lane.b32.xlu0 %v2447, 122
  %v2529 = vpop.permute.xlu0 %2528
  %2530 = vrot.lane.b32.xlu0 %v2362, 122
  %v2531 = vpop.permute.xlu0 %2530
  %2532 = vrot.lane.b32.xlu0 %v2450, 122
  %v2533 = vpop.permute.xlu0 %2532
  %2534 = vrot.lane.b32.xlu0 %v2364, 122
  %v2535 = vpop.permute.xlu0 %2534
  %2536 = vrot.lane.b32.xlu0 %v2452, 122
  %v2537 = vpop.permute.xlu0 %2536
  %vm2538 = vcmask 998400
  %v2539 = vsel %vm2538, %v2483, %v2485
  %v2540 = vsel %vm2538, %v2487, %v2489
  %v2541 = vsel %vm2538, %v2491, %v2493
  %v2542 = vsel %vm2538, %v2495, %v2497
  %v2543 = vsel %vm2538, %v2499, %v2501
  %v2544 = vsel %vm2538, %v2503, %v2505
  %v2545 = vsel %vm2538, %v2507, %v2509
  %v2546 = vsel %vm2538, %v2511, %v2513
  %v2547 = vsel %vm2538, %v2515, %v2517
  %v2548 = vsel %vm2538, %v2519, %v2521
  %v2549 = vsel %vm2538, %v2523, %v2525
  %v2550 = vsel %vm2538, %v2527, %v2529
  %v2551 = vsel %vm2538, %v2531, %v2533
  %v2552 = vsel %vm2538, %v2535, %v2537
  %v2581 = vmax.f32 %v2332, %v2539
  %v2582 = vmax.f32 %v2420, %v2485
  %v2583 = vmax.f32 %v2334, %v2540
  %v2584 = vmax.f32 %v2422, %v2489
  %v2585 = vmax.f32 %v2337, %v2541
  %v2586 = vmax.f32 %v2425, %v2493
  %v2587 = vmax.f32 %v2339, %v2542
  %v2588 = vmax.f32 %v2427, %v2497
  %v2589 = vmax.f32 %v2342, %v2543
  %v2590 = vmax.f32 %v2430, %v2501
  %v2591 = vmax.f32 %v2344, %v2544
  %v2592 = vmax.f32 %v2432, %v2505
  %v2593 = vmax.f32 %v2347, %v2545
  %v2594 = vmax.f32 %v2435, %v2509
  %v2595 = vmax.f32 %v2349, %v2546
  %v2596 = vmax.f32 %v2437, %v2513
  %v2597 = vmax.f32 %v2352, %v2547
  %v2598 = vmax.f32 %v2440, %v2517
  %v2599 = vmax.f32 %v2354, %v2548
  %v2600 = vmax.f32 %v2442, %v2521
  %v2601 = vmax.f32 %v2357, %v2549
  %v2602 = vmax.f32 %v2445, %v2525
  %v2603 = vmax.f32 %v2359, %v2550
  %v2604 = vmax.f32 %v2447, %v2529
  %v2605 = vmax.f32 %v2362, %v2551
  %v2606 = vmax.f32 %v2450, %v2533
  %v2607 = vmax.f32 %v2364, %v2552
  %v2608 = vmax.f32 %v2452, %v2537
  %v2609 = vpack.c.bf16 %v2583, %v2581
  %v2610 = vpack.c.bf16 %v2584, %v2582
  %v2611 = vpack.c.bf16 %v2587, %v2585
  %v2612 = vpack.c.bf16 %v2588, %v2586
  %v2613 = vpack.c.bf16 %v2591, %v2589
  %v2614 = vpack.c.bf16 %v2592, %v2590
  %v2615 = vpack.c.bf16 %v2595, %v2593
  %v2616 = vpack.c.bf16 %v2596, %v2594
  %v2617 = vpack.c.bf16 %v2599, %v2597
  %v2618 = vpack.c.bf16 %v2600, %v2598
  %v2619 = vpack.c.bf16 %v2603, %v2601
  %v2620 = vpack.c.bf16 %v2604, %v2602
  %v2621 = vpack.c.bf16 %v2607, %v2605
  %v2622 = vpack.c.bf16 %v2608, %v2606
  %v2623 = vld [vmem:[%s4] sm:$0xf]
  %v2624 = vld [vmem:[%s4 + $0x4] sm:$0xf]
  %v2625 = vld [vmem:[%s4 + $0x8] sm:$0xf]
  %v2626 = vld [vmem:[%s4 + $0xc] sm:$0xf]
  %v2627 = vld [vmem:[%s4 + $0x10] sm:$0xf]
  %v2628 = vld [vmem:[%s4 + $0x14] sm:$0xf]
  %v2629 = vld [vmem:[%s4 + $0x18] sm:$0xf]
  %v2630 = vld [vmem:[%s4 + $0x1c] sm:$0xf]
  %v2631 = vld [vmem:[%s4 + $0x20] sm:$0xf]
  %v2632 = vld [vmem:[%s4 + $0x24] sm:$0xf]
  %v2633 = vld [vmem:[%s4 + $0x28] sm:$0xf]
  %v2634 = vld [vmem:[%s4 + $0x2c] sm:$0xf]
  %v2635 = vld [vmem:[%s4 + $0x30] sm:$0xf]
  %v2636 = vld [vmem:[%s4 + $0x34] sm:$0xf]
  %v2637 = vld [vmem:[%s4 + $0x38] sm:$0xf]
  %v2638 = vld [vmem:[%s4 + $0x3c] sm:$0xf]
  %v2639 = vld [vmem:[%s4 + $0x40] sm:$0xf]
  %v2640 = vld [vmem:[%s4 + $0x44] sm:$0xf]
  %v2641 = vld [vmem:[%s4 + $0x48] sm:$0xf]
  %v2642 = vld [vmem:[%s4 + $0x4c] sm:$0xf]
  %v2643 = vld [vmem:[%s4 + $0x50] sm:$0x1]
  %v2665 = vunpack.c.l.b16 %v2623
  %v2666 = vunpack.c.l.b16 %v2624
  %v2667 = vunpack.c.l.b16 %v2625
  %v2668 = vunpack.c.l.b16 %v2626
  %v2669 = vunpack.c.l.b16 %v2627
  %v2670 = vunpack.c.l.b16 %v2628
  %v2671 = vunpack.c.l.b16 %v2629
  %v2672 = vunpack.c.l.b16 %v2630
  %v2673 = vunpack.c.l.b16 %v2631
  %v2674 = vunpack.c.l.b16 %v2632
  %v2675 = vunpack.c.l.b16 %v2633
  %v2676 = vunpack.c.l.b16 %v2634
  %v2677 = vunpack.c.l.b16 %v2635
  %v2678 = vunpack.c.l.b16 %v2636
  %v2679 = vunpack.c.l.b16 %v2637
  %v2680 = vunpack.c.l.b16 %v2638
  %v2681 = vunpack.c.l.b16 %v2639
  %v2682 = vunpack.c.l.b16 %v2640
  %v2683 = vunpack.c.l.b16 %v2641
  %v2684 = vunpack.c.l.b16 %v2642
  %v2685 = vunpack.c.l.b16 %v2643
  %v2686 = vpack.c.b16 %v2666, %v2665
  %v2687 = vpack.c.b16 %v2668, %v2667
  %v2688 = vpack.c.b16 %v2670, %v2669
  %v2689 = vpack.c.b16 %v2672, %v2671
  %v2690 = vpack.c.b16 %v2674, %v2673
  %v2691 = vpack.c.b16 %v2676, %v2675
  %v2692 = vpack.c.b16 %v2678, %v2677
  %v2693 = vpack.c.b16 %v2680, %v2679
  %v2694 = vpack.c.b16 %v2682, %v2681
  %v2695 = vpack.c.b16 %v2684, %v2683
  %v2696 = vpack.c.b16 %v2685, %v2685
  %vm2707 = vcmask 277504
  %v2709 = vsel %vm2707, %v2610, 0
  %v2712 = vsel %vm2707, %v2612, 0
  %v2715 = vsel %vm2707, %v2614, 0
  %v2718 = vsel %vm2707, %v2616, 0
  %v2721 = vsel %vm2707, %v2618, 0
  %v2724 = vsel %vm2707, %v2620, 0
  %v2727 = vsel %vm2707, %v2622, 0
  %vm2729 = vcmask 1040384
  %v2731 = vsel %vm2729, %v2696, 0
  %2733 = vmatpush.bf16.msra.mxu0 %v2693
  %2734 = vmatpush.bf16.msra.mxu0 %v2692
  %2735 = vmatpush.bf16.msra.mxu0 %v2691
  %2736 = vmatpush.bf16.msra.mxu0 %v2690
  %2737 = vmatpush.bf16.msra.mxu0 %v2689
  %2738 = vmatpush.bf16.msra.mxu0 %v2688
  %2739 = vmatpush.bf16.msra.mxu0 %v2687
  %2740 = vmatpush.bf16.msra.mxu0 %v2686
  %2741 = vmatmul.bf16.gmra.mxu0 %v2609
  %v2742 = vpop.f32.mrf.mxu0
  %v2743 = vadd.f32 0.0, %v2742
  %v2744 = vpop.f32.mrf.mxu0
  %v2745 = vadd.f32 0.0, %v2744
  %2746 = vmatmul.bf16.gmra.mxu0 %v2611
  %v2747 = vpop.f32.mrf.mxu0
  %v2748 = vadd.f32 0.0, %v2747
  %v2749 = vpop.f32.mrf.mxu0
  %v2750 = vadd.f32 0.0, %v2749
  %2751 = vmatmul.bf16.gmra.mxu0 %v2613
  %v2752 = vpop.f32.mrf.mxu0
  %v2753 = vadd.f32 0.0, %v2752
  %v2754 = vpop.f32.mrf.mxu0
  %v2755 = vadd.f32 0.0, %v2754
  %2756 = vmatmul.bf16.gmra.mxu0 %v2615
  %v2757 = vpop.f32.mrf.mxu0
  %v2758 = vadd.f32 0.0, %v2757
  %v2759 = vpop.f32.mrf.mxu0
  %v2760 = vadd.f32 0.0, %v2759
  %2761 = vmatmul.bf16.gmra.mxu0 %v2617
  %v2762 = vpop.f32.mrf.mxu0
  %v2763 = vadd.f32 0.0, %v2762
  %v2764 = vpop.f32.mrf.mxu0
  %v2765 = vadd.f32 0.0, %v2764
  %2766 = vmatmul.bf16.gmra.mxu0 %v2619
  %v2767 = vpop.f32.mrf.mxu0
  %v2768 = vadd.f32 0.0, %v2767
  %v2769 = vpop.f32.mrf.mxu0
  %v2770 = vadd.f32 0.0, %v2769
  %2771 = vmatmul.bf16.gmra.mxu0 %v2621
  %v2772 = vpop.f32.mrf.mxu0
  %v2773 = vadd.f32 0.0, %v2772
  %v2774 = vpop.f32.mrf.mxu0
  %v2775 = vadd.f32 0.0, %v2774
  %2776 = vdwg.mxu0
  %2777 = vmatpush.bf16.msra.mxu0 0
  %2778 = vmatpush.bf16.msra.mxu0 0
  %2779 = vmatpush.bf16.msra.mxu0 0
  %2780 = vmatpush.bf16.msra.mxu0 0
  %2781 = vmatpush.bf16.msra.mxu0 0
  %2782 = vmatpush.bf16.msra.mxu0 %v2731
  %2783 = vmatpush.bf16.msra.mxu0 %v2695
  %2784 = vmatpush.bf16.msra.mxu0 %v2694
  %2785 = vmatmul.bf16.gmra.mxu0 %v2709
  %v2786 = vpop.f32.mrf.mxu0
  %v2787 = vadd.f32 %v2743, %v2786
  %v2788 = vpop.f32.mrf.mxu0
  %v2789 = vadd.f32 %v2745, %v2788
  %2790 = vmatmul.bf16.gmra.mxu0 %v2712
  %v2791 = vpop.f32.mrf.mxu0
  %v2792 = vadd.f32 %v2748, %v2791
  %v2793 = vpop.f32.mrf.mxu0
  %v2794 = vadd.f32 %v2750, %v2793
  %2795 = vmatmul.bf16.gmra.mxu0 %v2715
  %v2796 = vpop.f32.mrf.mxu0
  %v2797 = vadd.f32 %v2753, %v2796
  %v2798 = vpop.f32.mrf.mxu0
  %v2799 = vadd.f32 %v2755, %v2798
  %2800 = vmatmul.bf16.gmra.mxu0 %v2718
  %v2801 = vpop.f32.mrf.mxu0
  %v2802 = vadd.f32 %v2758, %v2801
  %v2803 = vpop.f32.mrf.mxu0
  %v2804 = vadd.f32 %v2760, %v2803
  %2805 = vmatmul.bf16.gmra.mxu0 %v2721
  %v2806 = vpop.f32.mrf.mxu0
  %v2807 = vadd.f32 %v2763, %v2806
  %v2808 = vpop.f32.mrf.mxu0
  %v2809 = vadd.f32 %v2765, %v2808
  %2810 = vmatmul.bf16.gmra.mxu0 %v2724
  %v2811 = vpop.f32.mrf.mxu0
  %v2812 = vadd.f32 %v2768, %v2811
  %v2813 = vpop.f32.mrf.mxu0
  %v2814 = vadd.f32 %v2770, %v2813
  %2815 = vmatmul.bf16.gmra.mxu0 %v2727
  %v2816 = vpop.f32.mrf.mxu0
  %v2817 = vadd.f32 %v2773, %v2816
  %v2818 = vpop.f32.mrf.mxu0
  %v2819 = vadd.f32 %v2775, %v2818
  %2820 = vdwg.mxu0
  %v2821 = vpack.c.bf16 %v2787, %v2787
  %v2822 = vpack.c.bf16 %v2789, %v2789
  %v2823 = vpack.c.bf16 %v2792, %v2792
  %v2824 = vpack.c.bf16 %v2794, %v2794
  %v2825 = vpack.c.bf16 %v2797, %v2797
  %v2826 = vpack.c.bf16 %v2799, %v2799
  %v2827 = vpack.c.bf16 %v2802, %v2802
  %v2828 = vpack.c.bf16 %v2804, %v2804
  %v2829 = vpack.c.bf16 %v2807, %v2807
  %v2830 = vpack.c.bf16 %v2809, %v2809
  %v2831 = vpack.c.bf16 %v2812, %v2812
  %v2832 = vpack.c.bf16 %v2814, %v2814
  %v2833 = vpack.c.bf16 %v2817, %v2817
  %v2834 = vpack.c.bf16 %v2819, %v2819
  %v2835 = vld [vmem:[%s5] sm:$0xff]
  %v2836 = vld [vmem:[%s5 + $0x8] sm:$0xff]
  %v2837 = vld [vmem:[%s5 + $0x10] sm:$0xff]
  %v2838 = vld [vmem:[%s5 + $0x18] sm:$0xff]
  %v2839 = vld [vmem:[%s5 + $0x20] sm:$0xff]
  %v2840 = vld [vmem:[%s5 + $0x28] sm:$0xff]
  %v2841 = vld [vmem:[%s5 + $0x30] sm:$0xff]
  %v2842 = vld [vmem:[%s5 + $0x38] sm:$0xff]
  %v2843 = vld [vmem:[%s5 + $0x40] sm:$0xff]
  %v2844 = vld [vmem:[%s5 + $0x48] sm:$0xff]
  %v2845 = vld [vmem:[%s5 + $0x50] sm:$0x33]
  %s2846 = scalar_lea.vmem %s5, 88
  %v2847 = vld [vmem:[%s2846] sm:$0xff]
  %v2848 = vld [vmem:[%s2846 + $0x8] sm:$0xff]
  %v2849 = vld [vmem:[%s2846 + $0x10] sm:$0xff]
  %v2850 = vld [vmem:[%s2846 + $0x18] sm:$0xff]
  %v2851 = vld [vmem:[%s2846 + $0x20] sm:$0xff]
  %v2852 = vld [vmem:[%s2846 + $0x28] sm:$0xff]
  %v2853 = vld [vmem:[%s2846 + $0x30] sm:$0xff]
  %v2854 = vld [vmem:[%s2846 + $0x38] sm:$0xff]
  %v2855 = vld [vmem:[%s2846 + $0x40] sm:$0xff]
  %v2856 = vld [vmem:[%s2846 + $0x48] sm:$0xff]
  %v2857 = vld [vmem:[%s2846 + $0x50] sm:$0x33]
  %v2868 = vunpack.c.l.b16 %v2822
  %v2869 = vunpack.c.l.b16 %v2823
  %v2870 = vunpack.c.l.b16 %v2824
  %v2871 = vunpack.c.l.b16 %v2825
  %v2872 = vunpack.c.l.b16 %v2826
  %v2873 = vunpack.c.l.b16 %v2827
  %v2874 = vunpack.c.l.b16 %v2828
  %v2875 = vunpack.c.l.b16 %v2829
  %v2876 = vunpack.c.l.b16 %v2830
  %v2877 = vunpack.c.l.b16 %v2831
  %v2878 = vpack.c.b16 %v2869, %v2868
  %v2879 = vpack.c.b16 %v2871, %v2870
  %v2880 = vpack.c.b16 %v2873, %v2872
  %v2881 = vpack.c.b16 %v2875, %v2874
  %v2882 = vpack.c.b16 %v2877, %v2876
  %v2894 = vunpack.c.l.b16 %v2847
  %v2895 = vunpack.c.h.b16 %v2847
  %v2896 = vunpack.c.l.b16 %v2848
  %v2897 = vunpack.c.h.b16 %v2848
  %v2898 = vunpack.c.l.b16 %v2849
  %v2899 = vunpack.c.h.b16 %v2849
  %v2900 = vunpack.c.l.b16 %v2850
  %v2901 = vunpack.c.h.b16 %v2850
  %v2902 = vunpack.c.l.b16 %v2851
  %v2903 = vunpack.c.h.b16 %v2851
  %v2904 = vunpack.c.l.b16 %v2852
  %v2905 = vunpack.c.h.b16 %v2852
  %v2906 = vunpack.c.l.b16 %v2853
  %v2907 = vunpack.c.h.b16 %v2853
  %v2908 = vunpack.c.l.b16 %v2854
  %v2909 = vunpack.c.h.b16 %v2854
  %v2910 = vunpack.c.l.b16 %v2855
  %v2911 = vunpack.c.h.b16 %v2855
  %v2912 = vunpack.c.l.b16 %v2856
  %v2913 = vunpack.c.h.b16 %v2856
  %v2914 = vunpack.c.l.b16 %v2857
  %v2915 = vunpack.c.h.b16 %v2857
  %v2916 = vpack.c.b16 %v2896, %v2894
  %v2917 = vpack.c.b16 %v2897, %v2895
  %v2918 = vpack.c.b16 %v2900, %v2898
  %v2919 = vpack.c.b16 %v2901, %v2899
  %v2920 = vpack.c.b16 %v2904, %v2902
  %v2921 = vpack.c.b16 %v2905, %v2903
  %v2922 = vpack.c.b16 %v2908, %v2906
  %v2923 = vpack.c.b16 %v2909, %v2907
  %v2924 = vpack.c.b16 %v2912, %v2910
  %v2925 = vpack.c.b16 %v2913, %v2911
  %v2926 = vpack.c.b16 %v2914, %v2914
  %v2927 = vpack.c.b16 %v2915, %v2915
  %vm2938 = vcmask 687104
  %v2940 = vsel %vm2938, %v2878, 0
  %v2943 = vsel %vm2938, %v2879, 0
  %v2946 = vsel %vm2938, %v2880, 0
  %v2949 = vsel %vm2938, %v2881, 0
  %v2952 = vsel %vm2938, %v2882, 0
  %vm2954 = vcmask 1041408
  %v2956 = vsel %vm2954, %v2926, 0
  %v2959 = vsel %vm2954, %v2927, 0
  %2961 = vmatpush.bf16.msra.mxu0 0
  %2962 = vmatpush.bf16.msra.mxu0 0
  %2963 = vmatpush.bf16.msra.mxu0 %v2956
  %2964 = vmatpush.bf16.msra.mxu0 %v2924
  %2965 = vmatpush.bf16.msra.mxu0 %v2922
  %2966 = vmatpush.bf16.msra.mxu0 %v2920
  %2967 = vmatpush.bf16.msra.mxu0 %v2918
  %2968 = vmatpush.bf16.msra.mxu0 %v2916
  %2969 = vmatmul.bf16.gmra.mxu0 %v2940
  %v2970 = vpop.f32.mrf.mxu0
  %v2971 = vadd.f32 0.0, %v2970
  %v2972 = vpop.f32.mrf.mxu0
  %v2973 = vadd.f32 0.0, %v2972
  %2974 = vmatmul.bf16.gmra.mxu0 %v2943
  %v2975 = vpop.f32.mrf.mxu0
  %v2976 = vadd.f32 0.0, %v2975
  %v2977 = vpop.f32.mrf.mxu0
  %v2978 = vadd.f32 0.0, %v2977
  %2979 = vmatmul.bf16.gmra.mxu0 %v2946
  %v2980 = vpop.f32.mrf.mxu0
  %v2981 = vadd.f32 0.0, %v2980
  %v2982 = vpop.f32.mrf.mxu0
  %v2983 = vadd.f32 0.0, %v2982
  %2984 = vmatmul.bf16.gmra.mxu0 %v2949
  %v2985 = vpop.f32.mrf.mxu0
  %v2986 = vadd.f32 0.0, %v2985
  %v2987 = vpop.f32.mrf.mxu0
  %v2988 = vadd.f32 0.0, %v2987
  %2989 = vmatmul.bf16.gmra.mxu0 %v2952
  %v2990 = vpop.f32.mrf.mxu0
  %v2991 = vadd.f32 0.0, %v2990
  %v2992 = vpop.f32.mrf.mxu0
  %v2993 = vadd.f32 0.0, %v2992
  %2994 = vdwg.mxu0
  %2995 = vmatpush.bf16.msra.mxu0 0
  %2996 = vmatpush.bf16.msra.mxu0 0
  %2997 = vmatpush.bf16.msra.mxu0 %v2959
  %2998 = vmatpush.bf16.msra.mxu0 %v2925
  %2999 = vmatpush.bf16.msra.mxu0 %v2923
  %3000 = vmatpush.bf16.msra.mxu0 %v2921
  %3001 = vmatpush.bf16.msra.mxu0 %v2919
  %3002 = vmatpush.bf16.msra.mxu0 %v2917
  %3003 = vmatmul.bf16.gmra.mxu0 %v2940
  %v3004 = vpop.f32.mrf.mxu0
  %v3005 = vadd.f32 0.0, %v3004
  %v3006 = vpop.f32.mrf.mxu0
  %v3007 = vadd.f32 0.0, %v3006
  %3008 = vmatmul.bf16.gmra.mxu0 %v2943
  %v3009 = vpop.f32.mrf.mxu0
  %v3010 = vadd.f32 0.0, %v3009
  %v3011 = vpop.f32.mrf.mxu0
  %v3012 = vadd.f32 0.0, %v3011
  %3013 = vmatmul.bf16.gmra.mxu0 %v2946
  %v3014 = vpop.f32.mrf.mxu0
  %v3015 = vadd.f32 0.0, %v3014
  %v3016 = vpop.f32.mrf.mxu0
  %v3017 = vadd.f32 0.0, %v3016
  %3018 = vmatmul.bf16.gmra.mxu0 %v2949
  %v3019 = vpop.f32.mrf.mxu0
  %v3020 = vadd.f32 0.0, %v3019
  %v3021 = vpop.f32.mrf.mxu0
  %v3022 = vadd.f32 0.0, %v3021
  %3023 = vmatmul.bf16.gmra.mxu0 %v2952
  %v3024 = vpop.f32.mrf.mxu0
  %v3025 = vadd.f32 0.0, %v3024
  %v3026 = vpop.f32.mrf.mxu0
  %v3027 = vadd.f32 0.0, %v3026
  %3028 = vdwg.mxu0
  %v3030 = vunpack.c.l.b16 %v2821
  %v3031 = vpack.c.b16 %v2868, %v3030
  %v3032 = vpack.c.b16 %v2870, %v2869
  %v3033 = vpack.c.b16 %v2872, %v2871
  %v3034 = vpack.c.b16 %v2874, %v2873
  %v3035 = vpack.c.b16 %v2876, %v2875
  %v3047 = vunpack.c.l.b16 %v2835
  %v3048 = vunpack.c.h.b16 %v2835
  %v3049 = vunpack.c.l.b16 %v2836
  %v3050 = vunpack.c.h.b16 %v2836
  %v3051 = vunpack.c.l.b16 %v2837
  %v3052 = vunpack.c.h.b16 %v2837
  %v3053 = vunpack.c.l.b16 %v2838
  %v3054 = vunpack.c.h.b16 %v2838
  %v3055 = vunpack.c.l.b16 %v2839
  %v3056 = vunpack.c.h.b16 %v2839
  %v3057 = vunpack.c.l.b16 %v2840
  %v3058 = vunpack.c.h.b16 %v2840
  %v3059 = vunpack.c.l.b16 %v2841
  %v3060 = vunpack.c.h.b16 %v2841
  %v3061 = vunpack.c.l.b16 %v2842
  %v3062 = vunpack.c.h.b16 %v2842
  %v3063 = vunpack.c.l.b16 %v2843
  %v3064 = vunpack.c.h.b16 %v2843
  %v3065 = vunpack.c.l.b16 %v2844
  %v3066 = vunpack.c.h.b16 %v2844
  %v3067 = vunpack.c.l.b16 %v2845
  %v3068 = vunpack.c.h.b16 %v2845
  %v3069 = vpack.c.b16 %v3049, %v3047
  %v3070 = vpack.c.b16 %v3050, %v3048
  %v3071 = vpack.c.b16 %v3053, %v3051
  %v3072 = vpack.c.b16 %v3054, %v3052
  %v3073 = vpack.c.b16 %v3057, %v3055
  %v3074 = vpack.c.b16 %v3058, %v3056
  %v3075 = vpack.c.b16 %v3061, %v3059
  %v3076 = vpack.c.b16 %v3062, %v3060
  %v3077 = vpack.c.b16 %v3065, %v3063
  %v3078 = vpack.c.b16 %v3066, %v3064
  %v3079 = vpack.c.b16 %v3067, %v3067
  %v3080 = vpack.c.b16 %v3068, %v3068
  %v3092 = vsel %vm2938, %v3031, 0
  %v3095 = vsel %vm2938, %v3032, 0
  %v3098 = vsel %vm2938, %v3033, 0
  %v3101 = vsel %vm2938, %v3034, 0
  %v3104 = vsel %vm2938, %v3035, 0
  %v3107 = vsel %vm2954, %v3079, 0
  %v3110 = vsel %vm2954, %v3080, 0
  %3112 = vmatpush.bf16.msra.mxu0 0
  %3113 = vmatpush.bf16.msra.mxu0 0
  %3114 = vmatpush.bf16.msra.mxu0 %v3107
  %3115 = vmatpush.bf16.msra.mxu0 %v3077
  %3116 = vmatpush.bf16.msra.mxu0 %v3075
  %3117 = vmatpush.bf16.msra.mxu0 %v3073
  %3118 = vmatpush.bf16.msra.mxu0 %v3071
  %3119 = vmatpush.bf16.msra.mxu0 %v3069
  %3120 = vmatmul.bf16.gmra.mxu0 %v3092
  %v3121 = vpop.f32.mrf.mxu0
  %v3122 = vadd.f32 %v2971, %v3121
  %v3123 = vpop.f32.mrf.mxu0
  %v3124 = vadd.f32 %v2973, %v3123
  %3125 = vmatmul.bf16.gmra.mxu0 %v3095
  %v3126 = vpop.f32.mrf.mxu0
  %v3127 = vadd.f32 %v2976, %v3126
  %v3128 = vpop.f32.mrf.mxu0
  %v3129 = vadd.f32 %v2978, %v3128
  %3130 = vmatmul.bf16.gmra.mxu0 %v3098
  %v3131 = vpop.f32.mrf.mxu0
  %v3132 = vadd.f32 %v2981, %v3131
  %v3133 = vpop.f32.mrf.mxu0
  %v3134 = vadd.f32 %v2983, %v3133
  %3135 = vmatmul.bf16.gmra.mxu0 %v3101
  %v3136 = vpop.f32.mrf.mxu0
  %v3137 = vadd.f32 %v2986, %v3136
  %v3138 = vpop.f32.mrf.mxu0
  %v3139 = vadd.f32 %v2988, %v3138
  %3140 = vmatmul.bf16.gmra.mxu0 %v3104
  %v3141 = vpop.f32.mrf.mxu0
  %v3142 = vadd.f32 %v2991, %v3141
  %v3143 = vpop.f32.mrf.mxu0
  %v3144 = vadd.f32 %v2993, %v3143
  %3145 = vdwg.mxu0
  %3146 = vmatpush.bf16.msra.mxu0 0
  %3147 = vmatpush.bf16.msra.mxu0 0
  %3148 = vmatpush.bf16.msra.mxu0 %v3110
  %3149 = vmatpush.bf16.msra.mxu0 %v3078
  %3150 = vmatpush.bf16.msra.mxu0 %v3076
  %3151 = vmatpush.bf16.msra.mxu0 %v3074
  %3152 = vmatpush.bf16.msra.mxu0 %v3072
  %3153 = vmatpush.bf16.msra.mxu0 %v3070
  %3154 = vmatmul.bf16.gmra.mxu0 %v3092
  %v3155 = vpop.f32.mrf.mxu0
  %v3156 = vadd.f32 %v3005, %v3155
  %v3157 = vpop.f32.mrf.mxu0
  %v3158 = vadd.f32 %v3007, %v3157
  %3159 = vmatmul.bf16.gmra.mxu0 %v3095
  %v3160 = vpop.f32.mrf.mxu0
  %v3161 = vadd.f32 %v3010, %v3160
  %v3162 = vpop.f32.mrf.mxu0
  %v3163 = vadd.f32 %v3012, %v3162
  %3164 = vmatmul.bf16.gmra.mxu0 %v3098
  %v3165 = vpop.f32.mrf.mxu0
  %v3166 = vadd.f32 %v3015, %v3165
  %v3167 = vpop.f32.mrf.mxu0
  %v3168 = vadd.f32 %v3017, %v3167
  %3169 = vmatmul.bf16.gmra.mxu0 %v3101
  %v3170 = vpop.f32.mrf.mxu0
  %v3171 = vadd.f32 %v3020, %v3170
  %v3172 = vpop.f32.mrf.mxu0
  %v3173 = vadd.f32 %v3022, %v3172
  %3174 = vmatmul.bf16.gmra.mxu0 %v3104
  %v3175 = vpop.f32.mrf.mxu0
  %v3176 = vadd.f32 %v3025, %v3175
  %v3177 = vpop.f32.mrf.mxu0
  %v3178 = vadd.f32 %v3027, %v3177
  %3179 = vdwg.mxu0
  %s3180 = scalar_lea.vmem %s5, 176
  %v3181 = vld [vmem:[%s3180] sm:$0xff]
  %v3182 = vld [vmem:[%s3180 + $0x8] sm:$0xff]
  %v3183 = vld [vmem:[%s3180 + $0x10] sm:$0xff]
  %v3184 = vld [vmem:[%s3180 + $0x18] sm:$0xff]
  %v3185 = vld [vmem:[%s3180 + $0x20] sm:$0xff]
  %v3186 = vld [vmem:[%s3180 + $0x28] sm:$0xff]
  %v3187 = vld [vmem:[%s3180 + $0x30] sm:$0xff]
  %v3188 = vld [vmem:[%s3180 + $0x38] sm:$0xff]
  %v3189 = vld [vmem:[%s3180 + $0x40] sm:$0xff]
  %v3190 = vld [vmem:[%s3180 + $0x48] sm:$0xff]
  %v3191 = vld [vmem:[%s3180 + $0x50] sm:$0x33]
  %v3193 = vunpack.c.l.b16 %v2832
  %v3194 = vpack.c.b16 %v3193, %v2877
  %v3206 = vunpack.c.l.b16 %v3181
  %v3207 = vunpack.c.h.b16 %v3181
  %v3208 = vunpack.c.l.b16 %v3182
  %v3209 = vunpack.c.h.b16 %v3182
  %v3210 = vunpack.c.l.b16 %v3183
  %v3211 = vunpack.c.h.b16 %v3183
  %v3212 = vunpack.c.l.b16 %v3184
  %v3213 = vunpack.c.h.b16 %v3184
  %v3214 = vunpack.c.l.b16 %v3185
  %v3215 = vunpack.c.h.b16 %v3185
  %v3216 = vunpack.c.l.b16 %v3186
  %v3217 = vunpack.c.h.b16 %v3186
  %v3218 = vunpack.c.l.b16 %v3187
  %v3219 = vunpack.c.h.b16 %v3187
  %v3220 = vunpack.c.l.b16 %v3188
  %v3221 = vunpack.c.h.b16 %v3188
  %v3222 = vunpack.c.l.b16 %v3189
  %v3223 = vunpack.c.h.b16 %v3189
  %v3224 = vunpack.c.l.b16 %v3190
  %v3225 = vunpack.c.h.b16 %v3190
  %v3226 = vunpack.c.l.b16 %v3191
  %v3227 = vunpack.c.h.b16 %v3191
  %v3228 = vpack.c.b16 %v3208, %v3206
  %v3229 = vpack.c.b16 %v3209, %v3207
  %v3230 = vpack.c.b16 %v3212, %v3210
  %v3231 = vpack.c.b16 %v3213, %v3211
  %v3232 = vpack.c.b16 %v3216, %v3214
  %v3233 = vpack.c.b16 %v3217, %v3215
  %v3234 = vpack.c.b16 %v3220, %v3218
  %v3235 = vpack.c.b16 %v3221, %v3219
  %v3236 = vpack.c.b16 %v3224, %v3222
  %v3237 = vpack.c.b16 %v3225, %v3223
  %v3238 = vpack.c.b16 %v3226, %v3226
  %v3239 = vpack.c.b16 %v3227, %v3227
  %v3251 = vsel %vm2938, %v3194, 0
  %v3254 = vsel %vm2954, %v3238, 0
  %v3257 = vsel %vm2954, %v3239, 0
  %3259 = vmatpush.bf16.msra.mxu0 0
  %3260 = vmatpush.bf16.msra.mxu0 0
  %3261 = vmatpush.bf16.msra.mxu0 %v3254
  %3262 = vmatpush.bf16.msra.mxu0 %v3236
  %3263 = vmatpush.bf16.msra.mxu0 %v3234
  %3264 = vmatpush.bf16.msra.mxu0 %v3232
  %3265 = vmatpush.bf16.msra.mxu0 %v3230
  %3266 = vmatpush.bf16.msra.mxu0 %v3228
  %3267 = vmatmul.bf16.gmra.mxu0 %v3095
  %v3268 = vpop.f32.mrf.mxu0
  %v3269 = vadd.f32 0.0, %v3268
  %v3270 = vpop.f32.mrf.mxu0
  %v3271 = vadd.f32 0.0, %v3270
  %3272 = vmatmul.bf16.gmra.mxu0 %v3098
  %v3273 = vpop.f32.mrf.mxu0
  %v3274 = vadd.f32 0.0, %v3273
  %v3275 = vpop.f32.mrf.mxu0
  %v3276 = vadd.f32 0.0, %v3275
  %3277 = vmatmul.bf16.gmra.mxu0 %v3101
  %v3278 = vpop.f32.mrf.mxu0
  %v3279 = vadd.f32 0.0, %v3278
  %v3280 = vpop.f32.mrf.mxu0
  %v3281 = vadd.f32 0.0, %v3280
  %3282 = vmatmul.bf16.gmra.mxu0 %v3104
  %v3283 = vpop.f32.mrf.mxu0
  %v3284 = vadd.f32 0.0, %v3283
  %v3285 = vpop.f32.mrf.mxu0
  %v3286 = vadd.f32 0.0, %v3285
  %3287 = vmatmul.bf16.gmra.mxu0 %v3251
  %v3288 = vpop.f32.mrf.mxu0
  %v3289 = vadd.f32 0.0, %v3288
  %v3290 = vpop.f32.mrf.mxu0
  %v3291 = vadd.f32 0.0, %v3290
  %3292 = vdwg.mxu0
  %3293 = vmatpush.bf16.msra.mxu0 0
  %3294 = vmatpush.bf16.msra.mxu0 0
  %3295 = vmatpush.bf16.msra.mxu0 %v3257
  %3296 = vmatpush.bf16.msra.mxu0 %v3237
  %3297 = vmatpush.bf16.msra.mxu0 %v3235
  %3298 = vmatpush.bf16.msra.mxu0 %v3233
  %3299 = vmatpush.bf16.msra.mxu0 %v3231
  %3300 = vmatpush.bf16.msra.mxu0 %v3229
  %3301 = vmatmul.bf16.gmra.mxu0 %v3095
  %v3302 = vpop.f32.mrf.mxu0
  %v3303 = vadd.f32 0.0, %v3302
  %v3304 = vpop.f32.mrf.mxu0
  %v3305 = vadd.f32 0.0, %v3304
  %3306 = vmatmul.bf16.gmra.mxu0 %v3098
  %v3307 = vpop.f32.mrf.mxu0
  %v3308 = vadd.f32 0.0, %v3307
  %v3309 = vpop.f32.mrf.mxu0
  %v3310 = vadd.f32 0.0, %v3309
  %3311 = vmatmul.bf16.gmra.mxu0 %v3101
  %v3312 = vpop.f32.mrf.mxu0
  %v3313 = vadd.f32 0.0, %v3312
  %v3314 = vpop.f32.mrf.mxu0
  %v3315 = vadd.f32 0.0, %v3314
  %3316 = vmatmul.bf16.gmra.mxu0 %v3104
  %v3317 = vpop.f32.mrf.mxu0
  %v3318 = vadd.f32 0.0, %v3317
  %v3319 = vpop.f32.mrf.mxu0
  %v3320 = vadd.f32 0.0, %v3319
  %3321 = vmatmul.bf16.gmra.mxu0 %v3251
  %v3322 = vpop.f32.mrf.mxu0
  %v3323 = vadd.f32 0.0, %v3322
  %v3324 = vpop.f32.mrf.mxu0
  %v3325 = vadd.f32 0.0, %v3324
  %3326 = vdwg.mxu0
  %v3327 = vadd.f32 %v3122, %v3269
  %v3328 = vadd.f32 %v3156, %v3303
  %v3329 = vadd.f32 %v3124, %v3271
  %v3330 = vadd.f32 %v3158, %v3305
  %v3331 = vadd.f32 %v3127, %v3274
  %v3332 = vadd.f32 %v3161, %v3308
  %v3333 = vadd.f32 %v3129, %v3276
  %v3334 = vadd.f32 %v3163, %v3310
  %v3335 = vadd.f32 %v3132, %v3279
  %v3336 = vadd.f32 %v3166, %v3313
  %v3337 = vadd.f32 %v3134, %v3281
  %v3338 = vadd.f32 %v3168, %v3315
  %v3339 = vadd.f32 %v3137, %v3284
  %v3340 = vadd.f32 %v3171, %v3318
  %v3341 = vadd.f32 %v3139, %v3286
  %v3342 = vadd.f32 %v3173, %v3320
  %v3343 = vadd.f32 %v3142, %v3289
  %v3344 = vadd.f32 %v3176, %v3323
  %v3345 = vadd.f32 %v3144, %v3291
  %v3346 = vadd.f32 %v3178, %v3325
  %s3347 = scalar_lea.vmem %s5, 264
  %v3348 = vld [vmem:[%s3347] sm:$0xff]
  %v3349 = vld [vmem:[%s3347 + $0x8] sm:$0xff]
  %v3350 = vld [vmem:[%s3347 + $0x10] sm:$0xff]
  %v3351 = vld [vmem:[%s3347 + $0x18] sm:$0xff]
  %v3352 = vld [vmem:[%s3347 + $0x20] sm:$0xff]
  %v3353 = vld [vmem:[%s3347 + $0x28] sm:$0xff]
  %v3354 = vld [vmem:[%s3347 + $0x30] sm:$0xff]
  %v3355 = vld [vmem:[%s3347 + $0x38] sm:$0xff]
  %v3356 = vld [vmem:[%s3347 + $0x40] sm:$0xff]
  %v3357 = vld [vmem:[%s3347 + $0x48] sm:$0xff]
  %v3358 = vld [vmem:[%s3347 + $0x50] sm:$0x33]
  %v3360 = vunpack.c.l.b16 %v2833
  %v3361 = vpack.c.b16 %v3360, %v3193
  %v3373 = vunpack.c.l.b16 %v3348
  %v3374 = vunpack.c.h.b16 %v3348
  %v3375 = vunpack.c.l.b16 %v3349
  %v3376 = vunpack.c.h.b16 %v3349
  %v3377 = vunpack.c.l.b16 %v3350
  %v3378 = vunpack.c.h.b16 %v3350
  %v3379 = vunpack.c.l.b16 %v3351
  %v3380 = vunpack.c.h.b16 %v3351
  %v3381 = vunpack.c.l.b16 %v3352
  %v3382 = vunpack.c.h.b16 %v3352
  %v3383 = vunpack.c.l.b16 %v3353
  %v3384 = vunpack.c.h.b16 %v3353
  %v3385 = vunpack.c.l.b16 %v3354
  %v3386 = vunpack.c.h.b16 %v3354
  %v3387 = vunpack.c.l.b16 %v3355
  %v3388 = vunpack.c.h.b16 %v3355
  %v3389 = vunpack.c.l.b16 %v3356
  %v3390 = vunpack.c.h.b16 %v3356
  %v3391 = vunpack.c.l.b16 %v3357
  %v3392 = vunpack.c.h.b16 %v3357
  %v3393 = vunpack.c.l.b16 %v3358
  %v3394 = vunpack.c.h.b16 %v3358
  %v3395 = vpack.c.b16 %v3375, %v3373
  %v3396 = vpack.c.b16 %v3376, %v3374
  %v3397 = vpack.c.b16 %v3379, %v3377
  %v3398 = vpack.c.b16 %v3380, %v3378
  %v3399 = vpack.c.b16 %v3383, %v3381
  %v3400 = vpack.c.b16 %v3384, %v3382
  %v3401 = vpack.c.b16 %v3387, %v3385
  %v3402 = vpack.c.b16 %v3388, %v3386
  %v3403 = vpack.c.b16 %v3391, %v3389
  %v3404 = vpack.c.b16 %v3392, %v3390
  %v3405 = vpack.c.b16 %v3393, %v3393
  %v3406 = vpack.c.b16 %v3394, %v3394
  %v3418 = vsel %vm2938, %v3361, 0
  %v3421 = vsel %vm2954, %v3405, 0
  %v3424 = vsel %vm2954, %v3406, 0
  %3426 = vmatpush.bf16.msra.mxu0 0
  %3427 = vmatpush.bf16.msra.mxu0 0
  %3428 = vmatpush.bf16.msra.mxu0 %v3421
  %3429 = vmatpush.bf16.msra.mxu0 %v3403
  %3430 = vmatpush.bf16.msra.mxu0 %v3401
  %3431 = vmatpush.bf16.msra.mxu0 %v3399
  %3432 = vmatpush.bf16.msra.mxu0 %v3397
  %3433 = vmatpush.bf16.msra.mxu0 %v3395
  %3434 = vmatmul.bf16.gmra.mxu0 %v2943
  %v3435 = vpop.f32.mrf.mxu0
  %v3436 = vadd.f32 0.0, %v3435
  %v3437 = vpop.f32.mrf.mxu0
  %v3438 = vadd.f32 0.0, %v3437
  %3439 = vmatmul.bf16.gmra.mxu0 %v2946
  %v3440 = vpop.f32.mrf.mxu0
  %v3441 = vadd.f32 0.0, %v3440
  %v3442 = vpop.f32.mrf.mxu0
  %v3443 = vadd.f32 0.0, %v3442
  %3444 = vmatmul.bf16.gmra.mxu0 %v2949
  %v3445 = vpop.f32.mrf.mxu0
  %v3446 = vadd.f32 0.0, %v3445
  %v3447 = vpop.f32.mrf.mxu0
  %v3448 = vadd.f32 0.0, %v3447
  %3449 = vmatmul.bf16.gmra.mxu0 %v2952
  %v3450 = vpop.f32.mrf.mxu0
  %v3451 = vadd.f32 0.0, %v3450
  %v3452 = vpop.f32.mrf.mxu0
  %v3453 = vadd.f32 0.0, %v3452
  %3454 = vmatmul.bf16.gmra.mxu0 %v3418
  %v3455 = vpop.f32.mrf.mxu0
  %v3456 = vadd.f32 0.0, %v3455
  %v3457 = vpop.f32.mrf.mxu0
  %v3458 = vadd.f32 0.0, %v3457
  %3459 = vdwg.mxu0
  %3460 = vmatpush.bf16.msra.mxu0 0
  %3461 = vmatpush.bf16.msra.mxu0 0
  %3462 = vmatpush.bf16.msra.mxu0 %v3424
  %3463 = vmatpush.bf16.msra.mxu0 %v3404
  %3464 = vmatpush.bf16.msra.mxu0 %v3402
  %3465 = vmatpush.bf16.msra.mxu0 %v3400
  %3466 = vmatpush.bf16.msra.mxu0 %v3398
  %3467 = vmatpush.bf16.msra.mxu0 %v3396
  %3468 = vmatmul.bf16.gmra.mxu0 %v2943
  %v3469 = vpop.f32.mrf.mxu0
  %v3470 = vadd.f32 0.0, %v3469
  %v3471 = vpop.f32.mrf.mxu0
  %v3472 = vadd.f32 0.0, %v3471
  %3473 = vmatmul.bf16.gmra.mxu0 %v2946
  %v3474 = vpop.f32.mrf.mxu0
  %v3475 = vadd.f32 0.0, %v3474
  %v3476 = vpop.f32.mrf.mxu0
  %v3477 = vadd.f32 0.0, %v3476
  %3478 = vmatmul.bf16.gmra.mxu0 %v2949
  %v3479 = vpop.f32.mrf.mxu0
  %v3480 = vadd.f32 0.0, %v3479
  %v3481 = vpop.f32.mrf.mxu0
  %v3482 = vadd.f32 0.0, %v3481
  %3483 = vmatmul.bf16.gmra.mxu0 %v2952
  %v3484 = vpop.f32.mrf.mxu0
  %v3485 = vadd.f32 0.0, %v3484
  %v3486 = vpop.f32.mrf.mxu0
  %v3487 = vadd.f32 0.0, %v3486
  %3488 = vmatmul.bf16.gmra.mxu0 %v3418
  %v3489 = vpop.f32.mrf.mxu0
  %v3490 = vadd.f32 0.0, %v3489
  %v3491 = vpop.f32.mrf.mxu0
  %v3492 = vadd.f32 0.0, %v3491
  %3493 = vdwg.mxu0
  %v3494 = vadd.f32 %v3327, %v3436
  %v3495 = vadd.f32 %v3328, %v3470
  %v3496 = vadd.f32 %v3329, %v3438
  %v3497 = vadd.f32 %v3330, %v3472
  %v3498 = vadd.f32 %v3331, %v3441
  %v3499 = vadd.f32 %v3332, %v3475
  %v3500 = vadd.f32 %v3333, %v3443
  %v3501 = vadd.f32 %v3334, %v3477
  %v3502 = vadd.f32 %v3335, %v3446
  %v3503 = vadd.f32 %v3336, %v3480
  %v3504 = vadd.f32 %v3337, %v3448
  %v3505 = vadd.f32 %v3338, %v3482
  %v3506 = vadd.f32 %v3339, %v3451
  %v3507 = vadd.f32 %v3340, %v3485
  %v3508 = vadd.f32 %v3341, %v3453
  %v3509 = vadd.f32 %v3342, %v3487
  %v3510 = vadd.f32 %v3343, %v3456
  %v3511 = vadd.f32 %v3344, %v3490
  %v3512 = vadd.f32 %v3345, %v3458
  %v3513 = vadd.f32 %v3346, %v3492
  %s3514 = scalar_lea.vmem %s5, 352
  %v3515 = vld [vmem:[%s3514] sm:$0xff]
  %v3516 = vld [vmem:[%s3514 + $0x8] sm:$0xff]
  %v3517 = vld [vmem:[%s3514 + $0x10] sm:$0xff]
  %v3518 = vld [vmem:[%s3514 + $0x18] sm:$0xff]
  %v3519 = vld [vmem:[%s3514 + $0x20] sm:$0xff]
  %v3520 = vld [vmem:[%s3514 + $0x28] sm:$0xff]
  %v3521 = vld [vmem:[%s3514 + $0x30] sm:$0xff]
  %v3522 = vld [vmem:[%s3514 + $0x38] sm:$0xff]
  %v3523 = vld [vmem:[%s3514 + $0x40] sm:$0xff]
  %v3524 = vld [vmem:[%s3514 + $0x48] sm:$0xff]
  %v3525 = vld [vmem:[%s3514 + $0x50] sm:$0x33]
  %v3527 = vunpack.c.l.b16 %v2834
  %v3528 = vpack.c.b16 %v3527, %v3360
  %v3540 = vunpack.c.l.b16 %v3515
  %v3541 = vunpack.c.h.b16 %v3515
  %v3542 = vunpack.c.l.b16 %v3516
  %v3543 = vunpack.c.h.b16 %v3516
  %v3544 = vunpack.c.l.b16 %v3517
  %v3545 = vunpack.c.h.b16 %v3517
  %v3546 = vunpack.c.l.b16 %v3518
  %v3547 = vunpack.c.h.b16 %v3518
  %v3548 = vunpack.c.l.b16 %v3519
  %v3549 = vunpack.c.h.b16 %v3519
  %v3550 = vunpack.c.l.b16 %v3520
  %v3551 = vunpack.c.h.b16 %v3520
  %v3552 = vunpack.c.l.b16 %v3521
  %v3553 = vunpack.c.h.b16 %v3521
  %v3554 = vunpack.c.l.b16 %v3522
  %v3555 = vunpack.c.h.b16 %v3522
  %v3556 = vunpack.c.l.b16 %v3523
  %v3557 = vunpack.c.h.b16 %v3523
  %v3558 = vunpack.c.l.b16 %v3524
  %v3559 = vunpack.c.h.b16 %v3524
  %v3560 = vunpack.c.l.b16 %v3525
  %v3561 = vunpack.c.h.b16 %v3525
  %v3562 = vpack.c.b16 %v3542, %v3540
  %v3563 = vpack.c.b16 %v3543, %v3541
  %v3564 = vpack.c.b16 %v3546, %v3544
  %v3565 = vpack.c.b16 %v3547, %v3545
  %v3566 = vpack.c.b16 %v3550, %v3548
  %v3567 = vpack.c.b16 %v3551, %v3549
  %v3568 = vpack.c.b16 %v3554, %v3552
  %v3569 = vpack.c.b16 %v3555, %v3553
  %v3570 = vpack.c.b16 %v3558, %v3556
  %v3571 = vpack.c.b16 %v3559, %v3557
  %v3572 = vpack.c.b16 %v3560, %v3560
  %v3573 = vpack.c.b16 %v3561, %v3561
  %v3585 = vsel %vm2938, %v3528, 0
  %v3588 = vsel %vm2954, %v3572, 0
  %v3591 = vsel %vm2954, %v3573, 0
  %3593 = vmatpush.bf16.msra.mxu0 0
  %3594 = vmatpush.bf16.msra.mxu0 0
  %3595 = vmatpush.bf16.msra.mxu0 %v3588
  %3596 = vmatpush.bf16.msra.mxu0 %v3570
  %3597 = vmatpush.bf16.msra.mxu0 %v3568
  %3598 = vmatpush.bf16.msra.mxu0 %v3566
  %3599 = vmatpush.bf16.msra.mxu0 %v3564
  %3600 = vmatpush.bf16.msra.mxu0 %v3562
  %3601 = vmatmul.bf16.gmra.mxu0 %v3098
  %v3602 = vpop.f32.mrf.mxu0
  %v3603 = vadd.f32 0.0, %v3602
  %v3604 = vpop.f32.mrf.mxu0
  %v3605 = vadd.f32 0.0, %v3604
  %3606 = vmatmul.bf16.gmra.mxu0 %v3101
  %v3607 = vpop.f32.mrf.mxu0
  %v3608 = vadd.f32 0.0, %v3607
  %v3609 = vpop.f32.mrf.mxu0
  %v3610 = vadd.f32 0.0, %v3609
  %3611 = vmatmul.bf16.gmra.mxu0 %v3104
  %v3612 = vpop.f32.mrf.mxu0
  %v3613 = vadd.f32 0.0, %v3612
  %v3614 = vpop.f32.mrf.mxu0
  %v3615 = vadd.f32 0.0, %v3614
  %3616 = vmatmul.bf16.gmra.mxu0 %v3251
  %v3617 = vpop.f32.mrf.mxu0
  %v3618 = vadd.f32 0.0, %v3617
  %v3619 = vpop.f32.mrf.mxu0
  %v3620 = vadd.f32 0.0, %v3619
  %3621 = vmatmul.bf16.gmra.mxu0 %v3585
  %v3622 = vpop.f32.mrf.mxu0
  %v3623 = vadd.f32 0.0, %v3622
  %v3624 = vpop.f32.mrf.mxu0
  %v3625 = vadd.f32 0.0, %v3624
  %3626 = vdwg.mxu0
  %3627 = vmatpush.bf16.msra.mxu0 0
  %3628 = vmatpush.bf16.msra.mxu0 0
  %3629 = vmatpush.bf16.msra.mxu0 %v3591
  %3630 = vmatpush.bf16.msra.mxu0 %v3571
  %3631 = vmatpush.bf16.msra.mxu0 %v3569
  %3632 = vmatpush.bf16.msra.mxu0 %v3567
  %3633 = vmatpush.bf16.msra.mxu0 %v3565
  %3634 = vmatpush.bf16.msra.mxu0 %v3563
  %3635 = vmatmul.bf16.gmra.mxu0 %v3098
  %v3636 = vpop.f32.mrf.mxu0
  %v3637 = vadd.f32 0.0, %v3636
  %v3638 = vpop.f32.mrf.mxu0
  %v3639 = vadd.f32 0.0, %v3638
  %3640 = vmatmul.bf16.gmra.mxu0 %v3101
  %v3641 = vpop.f32.mrf.mxu0
  %v3642 = vadd.f32 0.0, %v3641
  %v3643 = vpop.f32.mrf.mxu0
  %v3644 = vadd.f32 0.0, %v3643
  %3645 = vmatmul.bf16.gmra.mxu0 %v3104
  %v3646 = vpop.f32.mrf.mxu0
  %v3647 = vadd.f32 0.0, %v3646
  %v3648 = vpop.f32.mrf.mxu0
  %v3649 = vadd.f32 0.0, %v3648
  %3650 = vmatmul.bf16.gmra.mxu0 %v3251
  %v3651 = vpop.f32.mrf.mxu0
  %v3652 = vadd.f32 0.0, %v3651
  %v3653 = vpop.f32.mrf.mxu0
  %v3654 = vadd.f32 0.0, %v3653
  %3655 = vmatmul.bf16.gmra.mxu0 %v3585
  %v3656 = vpop.f32.mrf.mxu0
  %v3657 = vadd.f32 0.0, %v3656
  %v3658 = vpop.f32.mrf.mxu0
  %v3659 = vadd.f32 0.0, %v3658
  %3660 = vdwg.mxu0
  %v3661 = vadd.f32 %v3494, %v3603
  %v3662 = vadd.f32 %v3495, %v3637
  %v3663 = vadd.f32 %v3496, %v3605
  %v3664 = vadd.f32 %v3497, %v3639
  %v3665 = vadd.f32 %v3498, %v3608
  %v3666 = vadd.f32 %v3499, %v3642
  %v3667 = vadd.f32 %v3500, %v3610
  %v3668 = vadd.f32 %v3501, %v3644
  %v3669 = vadd.f32 %v3502, %v3613
  %v3670 = vadd.f32 %v3503, %v3647
  %v3671 = vadd.f32 %v3504, %v3615
  %v3672 = vadd.f32 %v3505, %v3649
  %v3673 = vadd.f32 %v3506, %v3618
  %v3674 = vadd.f32 %v3507, %v3652
  %v3675 = vadd.f32 %v3508, %v3620
  %v3676 = vadd.f32 %v3509, %v3654
  %v3677 = vadd.f32 %v3510, %v3623
  %v3678 = vadd.f32 %v3511, %v3657
  %v3679 = vadd.f32 %v3512, %v3625
  %v3680 = vadd.f32 %v3513, %v3659
  %v3681 = vld [vmem:[%s6] sm:$0x3]
  %v3683 = vperm.slane %v3681, 0
  %v3684 = vperm.slane %v3681, 1
  %v3687 = vadd.f32 %v3661, %v3683
  %v3688 = vadd.f32 %v3662, %v3684
  %v3689 = vadd.f32 %v3663, %v3683
  %v3690 = vadd.f32 %v3664, %v3684
  %v3691 = vadd.f32 %v3665, %v3683
  %v3692 = vadd.f32 %v3666, %v3684
  %v3693 = vadd.f32 %v3667, %v3683
  %v3694 = vadd.f32 %v3668, %v3684
  %v3695 = vadd.f32 %v3669, %v3683
  %v3696 = vadd.f32 %v3670, %v3684
  %v3697 = vadd.f32 %v3671, %v3683
  %v3698 = vadd.f32 %v3672, %v3684
  %v3699 = vadd.f32 %v3673, %v3683
  %v3700 = vadd.f32 %v3674, %v3684
  %v3701 = vadd.f32 %v3675, %v3683
  %v3702 = vadd.f32 %v3676, %v3684
  %v3703 = vadd.f32 %v3677, %v3683
  %v3704 = vadd.f32 %v3678, %v3684
  %v3705 = vadd.f32 %v3679, %v3683
  %v3706 = vadd.f32 %v3680, %v3684
  %v3707 = vmax.f32 %v3687, 0.0
  %v3708 = vmax.f32 %v3688, 0.0
  %v3709 = vmax.f32 %v3689, 0.0
  %v3710 = vmax.f32 %v3690, 0.0
  %v3711 = vmax.f32 %v3691, 0.0
  %v3712 = vmax.f32 %v3692, 0.0
  %v3713 = vmax.f32 %v3693, 0.0
  %v3714 = vmax.f32 %v3694, 0.0
  %v3715 = vmax.f32 %v3695, 0.0
  %v3716 = vmax.f32 %v3696, 0.0
  %v3717 = vmax.f32 %v3697, 0.0
  %v3718 = vmax.f32 %v3698, 0.0
  %v3719 = vmax.f32 %v3699, 0.0
  %v3720 = vmax.f32 %v3700, 0.0
  %v3721 = vmax.f32 %v3701, 0.0
  %v3722 = vmax.f32 %v3702, 0.0
  %v3723 = vmax.f32 %v3703, 0.0
  %v3724 = vmax.f32 %v3704, 0.0
  %v3725 = vmax.f32 %v3705, 0.0
  %v3726 = vmax.f32 %v3706, 0.0
  %v3727 = vmax.f32 %v3707, %v3709
  %v3728 = vmax.f32 %v3708, %v3710
  %v3729 = vmax.f32 %v3709, %v3711
  %v3730 = vmax.f32 %v3710, %v3712
  %v3731 = vmax.f32 %v3711, %v3713
  %v3732 = vmax.f32 %v3712, %v3714
  %v3733 = vmax.f32 %v3713, %v3715
  %v3734 = vmax.f32 %v3714, %v3716
  %v3735 = vmax.f32 %v3715, %v3717
  %v3736 = vmax.f32 %v3716, %v3718
  %v3737 = vmax.f32 %v3717, %v3719
  %v3738 = vmax.f32 %v3718, %v3720
  %v3739 = vmax.f32 %v3719, %v3721
  %v3740 = vmax.f32 %v3720, %v3722
  %v3741 = vmax.f32 %v3721, %v3723
  %v3742 = vmax.f32 %v3722, %v3724
  %v3743 = vmax.f32 %v3723, %v3725
  %v3744 = vmax.f32 %v3724, %v3726
  %v3745 = vpack.c.bf16 %v3729, %v3727
  %v3746 = vpack.c.bf16 %v3730, %v3728
  %v3747 = vpack.c.bf16 %v3733, %v3731
  %v3748 = vpack.c.bf16 %v3734, %v3732
  %v3749 = vpack.c.bf16 %v3737, %v3735
  %v3750 = vpack.c.bf16 %v3738, %v3736
  %v3751 = vpack.c.bf16 %v3741, %v3739
  %v3752 = vpack.c.bf16 %v3742, %v3740
  %v3753 = vpack.c.bf16 %v3743, %v3743
  %v3754 = vpack.c.bf16 %v3744, %v3744
  %v3755 = vld [vmem:[%s7] sm:$0xf]
  %v3756 = vld [vmem:[%s7 + $0x4] sm:$0xf]
  %v3757 = vld [vmem:[%s7 + $0x8] sm:$0xf]
  %v3758 = vld [vmem:[%s7 + $0xc] sm:$0xf]
  %v3759 = vld [vmem:[%s7 + $0x10] sm:$0xf]
  %v3765 = vunpack.c.l.b16 %v3755
  %v3766 = vunpack.c.l.b16 %v3756
  %v3767 = vunpack.c.l.b16 %v3757
  %v3768 = vunpack.c.l.b16 %v3758
  %v3769 = vunpack.c.l.b16 %v3759
  %v3770 = vpack.c.b16 %v3766, %v3765
  %v3771 = vpack.c.b16 %v3768, %v3767
  %v3772 = vpack.c.b16 %v3769, %v3769
  %vm3773 = vcmask 588800
  %v3775 = vsel %vm3773, %v3770, 0
  %v3778 = vsel %vm3773, %v3771, 0
  %v3781 = vsel %vm3773, %v3772, 0
  %v3784 = vsel %vm2271, %v3753, 0
  %v3787 = vsel %vm2271, %v3754, 0
  %3789 = vmatpush.bf16.msra.mxu0 0
  %3790 = vmatpush.bf16.msra.mxu0 0
  %3791 = vmatpush.bf16.msra.mxu0 0
  %3792 = vmatpush.bf16.msra.mxu0 %v3784
  %3793 = vmatpush.bf16.msra.mxu0 %v3751
  %3794 = vmatpush.bf16.msra.mxu0 %v3749
  %3795 = vmatpush.bf16.msra.mxu0 %v3747
  %3796 = vmatpush.bf16.msra.mxu0 %v3745
  %3797 = vmatmul.bf16.gmra.mxu0 %v3775
  %v3798 = vpop.f32.mrf.mxu0
  %v3799 = vadd.f32 0.0, %v3798
  %v3800 = vpop.f32.mrf.mxu0
  %v3801 = vadd.f32 0.0, %v3800
  %3802 = vmatmul.bf16.gmra.mxu0 %v3778
  %v3803 = vpop.f32.mrf.mxu0
  %v3804 = vadd.f32 0.0, %v3803
  %v3805 = vpop.f32.mrf.mxu0
  %v3806 = vadd.f32 0.0, %v3805
  %3807 = vmatmul.bf16.gmra.mxu0 %v3781
  %v3808 = vpop.f32.mrf.mxu0
  %v3809 = vadd.f32 0.0, %v3808
  %v3810 = vpop.f32.mrf.mxu0
  %3811 = vdwg.mxu0
  %3812 = vmatpush.bf16.msra.mxu0 0
  %3813 = vmatpush.bf16.msra.mxu0 0
  %3814 = vmatpush.bf16.msra.mxu0 0
  %3815 = vmatpush.bf16.msra.mxu0 %v3787
  %3816 = vmatpush.bf16.msra.mxu0 %v3752
  %3817 = vmatpush.bf16.msra.mxu0 %v3750
  %3818 = vmatpush.bf16.msra.mxu0 %v3748
  %3819 = vmatpush.bf16.msra.mxu0 %v3746
  %3820 = vmatmul.bf16.gmra.mxu0 %v3775
  %v3821 = vpop.f32.mrf.mxu0
  %v3822 = vadd.f32 0.0, %v3821
  %v3823 = vpop.f32.mrf.mxu0
  %v3824 = vadd.f32 0.0, %v3823
  %3825 = vmatmul.bf16.gmra.mxu0 %v3778
  %v3826 = vpop.f32.mrf.mxu0
  %v3827 = vadd.f32 0.0, %v3826
  %v3828 = vpop.f32.mrf.mxu0
  %v3829 = vadd.f32 0.0, %v3828
  %3830 = vmatmul.bf16.gmra.mxu0 %v3781
  %v3831 = vpop.f32.mrf.mxu0
  %v3832 = vadd.f32 0.0, %v3831
  %v3833 = vpop.f32.mrf.mxu0
  %3834 = vdwg.mxu0
  %3845 = vrot.lane.b32.xlu0 %v3799, 112
  %v3846 = vpop.permute.xlu0 %3845
  %3847 = vrot.lane.b32.xlu0 %v3822, 112
  %v3848 = vpop.permute.xlu0 %3847
  %3849 = vrot.lane.b32.xlu0 %v3801, 112
  %v3850 = vpop.permute.xlu0 %3849
  %3851 = vrot.lane.b32.xlu0 %v3824, 112
  %v3852 = vpop.permute.xlu0 %3851
  %3853 = vrot.lane.b32.xlu0 %v3804, 112
  %v3854 = vpop.permute.xlu0 %3853
  %3855 = vrot.lane.b32.xlu0 %v3827, 112
  %v3856 = vpop.permute.xlu0 %3855
  %3857 = vrot.lane.b32.xlu0 %v3806, 112
  %v3858 = vpop.permute.xlu0 %3857
  %3859 = vrot.lane.b32.xlu0 %v3829, 112
  %v3860 = vpop.permute.xlu0 %3859
  %3861 = vrot.lane.b32.xlu0 %v3809, 112
  %v3862 = vpop.permute.xlu0 %3861
  %3863 = vrot.lane.b32.xlu0 %v3832, 112
  %v3864 = vpop.permute.xlu0 %3863
  %vm3865 = vcmask 916480
  %v3866 = vsel %vm3865, %v3846, %v3848
  %v3867 = vsel %vm3865, %v3850, %v3852
  %v3868 = vsel %vm3865, %v3854, %v3856
  %v3869 = vsel %vm3865, %v3858, %v3860
  %v3870 = vsel %vm3865, %v3862, %v3864
  %v3881 = vmax.f32 %v3799, %v3866
  %v3882 = vmax.f32 %v3822, %v3848
  %v3883 = vmax.f32 %v3801, %v3867
  %v3884 = vmax.f32 %v3824, %v3852
  %v3885 = vmax.f32 %v3804, %v3868
  %v3886 = vmax.f32 %v3827, %v3856
  %v3887 = vmax.f32 %v3806, %v3869
  %v3888 = vmax.f32 %v3829, %v3860
  %v3889 = vmax.f32 %v3809, %v3870
  %v3890 = vmax.f32 %v3832, %v3864
  %v3891 = vpack.c.bf16 %v3883, %v3881
  %v3892 = vpack.c.bf16 %v3884, %v3882
  %v3893 = vpack.c.bf16 %v3887, %v3885
  %v3894 = vpack.c.bf16 %v3888, %v3886
  %v3895 = vpack.c.bf16 %v3889, %v3889
  %v3896 = vpack.c.bf16 %v3890, %v3890
  %v3897 = vld [vmem:[%s8] sm:$0xf]
  %v3898 = vld [vmem:[%s8 + $0x4] sm:$0xf]
  %v3899 = vld [vmem:[%s8 + $0x8] sm:$0xf]
  %v3900 = vld [vmem:[%s8 + $0xc] sm:$0xf]
  %v3901 = vld [vmem:[%s8 + $0x10] sm:$0xf]
  %v3902 = vld [vmem:[%s8 + $0x14] sm:$0xf]
  %v3903 = vld [vmem:[%s8 + $0x18] sm:$0xf]
  %v3904 = vld [vmem:[%s8 + $0x1c] sm:$0xf]
  %v3905 = vld [vmem:[%s8 + $0x20] sm:$0xf]
  %v3906 = vld [vmem:[%s8 + $0x24] sm:$0xf]
  %v3907 = vld [vmem:[%s8 + $0x28] sm:$0xf]
  %v3908 = vld [vmem:[%s8 + $0x2c] sm:$0xf]
  %v3909 = vld [vmem:[%s8 + $0x30] sm:$0xf]
  %v3910 = vld [vmem:[%s8 + $0x34] sm:$0xf]
  %v3911 = vld [vmem:[%s8 + $0x38] sm:$0xf]
  %v3912 = vld [vmem:[%s8 + $0x3c] sm:$0xf]
  %v3913 = vld [vmem:[%s8 + $0x40] sm:$0xf]
  %v3914 = vld [vmem:[%s8 + $0x44] sm:$0xf]
  %v3933 = vunpack.c.l.b16 %v3897
  %v3934 = vunpack.c.l.b16 %v3898
  %v3935 = vunpack.c.l.b16 %v3899
  %v3936 = vunpack.c.l.b16 %v3900
  %v3937 = vunpack.c.l.b16 %v3901
  %v3938 = vunpack.c.l.b16 %v3902
  %v3939 = vunpack.c.l.b16 %v3903
  %v3940 = vunpack.c.l.b16 %v3904
  %v3941 = vunpack.c.l.b16 %v3905
  %v3942 = vunpack.c.l.b16 %v3906
  %v3943 = vunpack.c.l.b16 %v3907
  %v3944 = vunpack.c.l.b16 %v3908
  %v3945 = vunpack.c.l.b16 %v3909
  %v3946 = vunpack.c.l.b16 %v3910
  %v3947 = vunpack.c.l.b16 %v3911
  %v3948 = vunpack.c.l.b16 %v3912
  %v3949 = vunpack.c.l.b16 %v3913
  %v3950 = vunpack.c.l.b16 %v3914
  %v3951 = vpack.c.b16 %v3934, %v3933
  %v3952 = vpack.c.b16 %v3936, %v3935
  %v3953 = vpack.c.b16 %v3938, %v3937
  %v3954 = vpack.c.b16 %v3940, %v3939
  %v3955 = vpack.c.b16 %v3942, %v3941
  %v3956 = vpack.c.b16 %v3944, %v3943
  %v3957 = vpack.c.b16 %v3946, %v3945
  %v3958 = vpack.c.b16 %v3948, %v3947
  %v3959 = vpack.c.b16 %v3950, %v3949
  %vm3969 = vcmask 130048
  %v3971 = vsel %vm3969, %v3892, 0
  %v3974 = vsel %vm3969, %v3894, 0
  %v3977 = vsel %vm3969, %v3896, 0
  %3979 = vmatpush.bf16.msra.mxu0 %v3958
  %3980 = vmatpush.bf16.msra.mxu0 %v3957
  %3981 = vmatpush.bf16.msra.mxu0 %v3956
  %3982 = vmatpush.bf16.msra.mxu0 %v3955
  %3983 = vmatpush.bf16.msra.mxu0 %v3954
  %3984 = vmatpush.bf16.msra.mxu0 %v3953
  %3985 = vmatpush.bf16.msra.mxu0 %v3952
  %3986 = vmatpush.bf16.msra.mxu0 %v3951
  %3987 = vmatmul.bf16.gmra.mxu0 %v3891
  %v3988 = vpop.f32.mrf.mxu0
  %v3989 = vadd.f32 0.0, %v3988
  %v3990 = vpop.f32.mrf.mxu0
  %v3991 = vadd.f32 0.0, %v3990
  %3992 = vmatmul.bf16.gmra.mxu0 %v3893
  %v3993 = vpop.f32.mrf.mxu0
  %v3994 = vadd.f32 0.0, %v3993
  %v3995 = vpop.f32.mrf.mxu0
  %v3996 = vadd.f32 0.0, %v3995
  %3997 = vmatmul.bf16.gmra.mxu0 %v3895
  %v3998 = vpop.f32.mrf.mxu0
  %v3999 = vadd.f32 0.0, %v3998
  %v4000 = vpop.f32.mrf.mxu0
  %4001 = vdwg.mxu0
  %4002 = vmatpush.bf16.msra.mxu0 0
  %4003 = vmatpush.bf16.msra.mxu0 0
  %4004 = vmatpush.bf16.msra.mxu0 0
  %4005 = vmatpush.bf16.msra.mxu0 0
  %4006 = vmatpush.bf16.msra.mxu0 0
  %4007 = vmatpush.bf16.msra.mxu0 0
  %4008 = vmatpush.bf16.msra.mxu0 0
  %4009 = vmatpush.bf16.msra.mxu0 %v3959
  %4010 = vmatmul.bf16.gmra.mxu0 %v3971
  %v4011 = vpop.f32.mrf.mxu0
  %v4012 = vadd.f32 %v3989, %v4011
  %v4013 = vpop.f32.mrf.mxu0
  %v4014 = vadd.f32 %v3991, %v4013
  %4015 = vmatmul.bf16.gmra.mxu0 %v3974
  %v4016 = vpop.f32.mrf.mxu0
  %v4017 = vadd.f32 %v3994, %v4016
  %v4018 = vpop.f32.mrf.mxu0
  %v4019 = vadd.f32 %v3996, %v4018
  %4020 = vmatmul.bf16.gmra.mxu0 %v3977
  %v4021 = vpop.f32.mrf.mxu0
  %v4022 = vadd.f32 %v3999, %v4021
  %v4023 = vpop.f32.mrf.mxu0
  %4024 = vdwg.mxu0
  %v4025 = vpack.c.bf16 %v4012, %v4012
  %v4026 = vpack.c.bf16 %v4014, %v4014
  %v4027 = vpack.c.bf16 %v4017, %v4017
  %v4028 = vpack.c.bf16 %v4019, %v4019
  %v4029 = vpack.c.bf16 %v4022, %v4022
  %v4030 = vld [vmem:[%s9] sm:$0xf]
  %v4031 = vld [vmem:[%s9 + $0x4] sm:$0xf]
  %v4032 = vld [vmem:[%s9 + $0x8] sm:$0xf]
  %v4033 = vld [vmem:[%s9 + $0xc] sm:$0xf]
  %v4034 = vld [vmem:[%s9 + $0x10] sm:$0xf]
  %v4035 = vld [vmem:[%s9 + $0x14] sm:$0xf]
  %v4036 = vld [vmem:[%s9 + $0x18] sm:$0xf]
  %v4037 = vld [vmem:[%s9 + $0x1c] sm:$0xf]
  %v4038 = vld [vmem:[%s9 + $0x20] sm:$0xf]
  %v4039 = vld [vmem:[%s9 + $0x24] sm:$0xf]
  %s4040 = scalar_lea.vmem %s9, 40
  %v4041 = vld [vmem:[%s4040] sm:$0xf]
  %v4042 = vld [vmem:[%s4040 + $0x4] sm:$0xf]
  %v4043 = vld [vmem:[%s4040 + $0x8] sm:$0xf]
  %v4044 = vld [vmem:[%s4040 + $0xc] sm:$0xf]
  %v4045 = vld [vmem:[%s4040 + $0x10] sm:$0xf]
  %v4046 = vld [vmem:[%s4040 + $0x14] sm:$0xf]
  %v4047 = vld [vmem:[%s4040 + $0x18] sm:$0xf]
  %v4048 = vld [vmem:[%s4040 + $0x1c] sm:$0xf]
  %v4049 = vld [vmem:[%s4040 + $0x20] sm:$0xf]
  %v4050 = vld [vmem:[%s4040 + $0x24] sm:$0xf]
  %v4061 = vunpack.c.l.b16 %v4041
  %v4062 = vunpack.c.l.b16 %v4042
  %v4063 = vunpack.c.l.b16 %v4043
  %v4064 = vunpack.c.l.b16 %v4044
  %v4065 = vunpack.c.l.b16 %v4045
  %v4066 = vunpack.c.l.b16 %v4046
  %v4067 = vunpack.c.l.b16 %v4047
  %v4068 = vunpack.c.l.b16 %v4048
  %v4069 = vunpack.c.l.b16 %v4049
  %v4070 = vunpack.c.l.b16 %v4050
  %v4071 = vpack.c.b16 %v4062, %v4061
  %v4072 = vpack.c.b16 %v4064, %v4063
  %v4073 = vpack.c.b16 %v4066, %v4065
  %v4074 = vpack.c.b16 %v4068, %v4067
  %v4075 = vpack.c.b16 %v4070, %v4069
  %vm4081 = vcmask 654336
  %v4083 = vsel %vm4081, %v4026, 0
  %4085 = vmatpush.bf16.msra.mxu0 0
  %4086 = vmatpush.bf16.msra.mxu0 0
  %4087 = vmatpush.bf16.msra.mxu0 0
  %4088 = vmatpush.bf16.msra.mxu0 %v4075
  %4089 = vmatpush.bf16.msra.mxu0 %v4074
  %4090 = vmatpush.bf16.msra.mxu0 %v4073
  %4091 = vmatpush.bf16.msra.mxu0 %v4072
  %4092 = vmatpush.bf16.msra.mxu0 %v4071
  %4093 = vmatmul.bf16.gmra.mxu0 %v4083
  %v4094 = vpop.f32.mrf.mxu0
  %v4095 = vadd.f32 0.0, %v4094
  %v4096 = vpop.f32.mrf.mxu0
  %4097 = vdwg.mxu0
  %s4098 = scalar_lea.vmem %s9, 80
  %v4099 = vld [vmem:[%s4098] sm:$0xf]
  %v4100 = vld [vmem:[%s4098 + $0x4] sm:$0xf]
  %v4101 = vld [vmem:[%s4098 + $0x8] sm:$0xf]
  %v4102 = vld [vmem:[%s4098 + $0xc] sm:$0xf]
  %v4103 = vld [vmem:[%s4098 + $0x10] sm:$0xf]
  %v4104 = vld [vmem:[%s4098 + $0x14] sm:$0xf]
  %v4105 = vld [vmem:[%s4098 + $0x18] sm:$0xf]
  %v4106 = vld [vmem:[%s4098 + $0x1c] sm:$0xf]
  %v4107 = vld [vmem:[%s4098 + $0x20] sm:$0xf]
  %v4108 = vld [vmem:[%s4098 + $0x24] sm:$0xf]
  %s4109 = scalar_lea.vmem %s9, 120
  %v4110 = vld [vmem:[%s4109] sm:$0xf]
  %v4111 = vld [vmem:[%s4109 + $0x4] sm:$0xf]
  %v4112 = vld [vmem:[%s4109 + $0x8] sm:$0xf]
  %v4113 = vld [vmem:[%s4109 + $0xc] sm:$0xf]
  %v4114 = vld [vmem:[%s4109 + $0x10] sm:$0xf]
  %v4115 = vld [vmem:[%s4109 + $0x14] sm:$0xf]
  %v4116 = vld [vmem:[%s4109 + $0x18] sm:$0xf]
  %v4117 = vld [vmem:[%s4109 + $0x1c] sm:$0xf]
  %v4118 = vld [vmem:[%s4109 + $0x20] sm:$0xf]
  %v4119 = vld [vmem:[%s4109 + $0x24] sm:$0xf]
  %v4130 = vunpack.c.l.b16 %v4110
  %v4131 = vunpack.c.l.b16 %v4111
  %v4132 = vunpack.c.l.b16 %v4112
  %v4133 = vunpack.c.l.b16 %v4113
  %v4134 = vunpack.c.l.b16 %v4114
  %v4135 = vunpack.c.l.b16 %v4115
  %v4136 = vunpack.c.l.b16 %v4116
  %v4137 = vunpack.c.l.b16 %v4117
  %v4138 = vunpack.c.l.b16 %v4118
  %v4139 = vunpack.c.l.b16 %v4119
  %v4140 = vpack.c.b16 %v4131, %v4130
  %v4141 = vpack.c.b16 %v4133, %v4132
  %v4142 = vpack.c.b16 %v4135, %v4134
  %v4143 = vpack.c.b16 %v4137, %v4136
  %v4144 = vpack.c.b16 %v4139, %v4138
  %v4151 = vsel %vm4081, %v4028, 0
  %4153 = vmatpush.bf16.msra.mxu0 0
  %4154 = vmatpush.bf16.msra.mxu0 0
  %4155 = vmatpush.bf16.msra.mxu0 0
  %4156 = vmatpush.bf16.msra.mxu0 %v4144
  %4157 = vmatpush.bf16.msra.mxu0 %v4143
  %4158 = vmatpush.bf16.msra.mxu0 %v4142
  %4159 = vmatpush.bf16.msra.mxu0 %v4141
  %4160 = vmatpush.bf16.msra.mxu0 %v4140
  %4161 = vmatmul.bf16.gmra.mxu0 %v4151
  %v4162 = vpop.f32.mrf.mxu0
  %v4163 = vadd.f32 0.0, %v4162
  %v4164 = vpop.f32.mrf.mxu0
  %4165 = vdwg.mxu0
  %s4166 = scalar_lea.vmem %s9, 160
  %v4167 = vld [vmem:[%s4166] sm:$0xf]
  %v4168 = vld [vmem:[%s4166 + $0x4] sm:$0xf]
  %v4169 = vld [vmem:[%s4166 + $0x8] sm:$0xf]
  %v4170 = vld [vmem:[%s4166 + $0xc] sm:$0xf]
  %v4171 = vld [vmem:[%s4166 + $0x10] sm:$0xf]
  %v4172 = vld [vmem:[%s4166 + $0x14] sm:$0xf]
  %v4173 = vld [vmem:[%s4166 + $0x18] sm:$0xf]
  %v4174 = vld [vmem:[%s4166 + $0x1c] sm:$0xf]
  %v4175 = vld [vmem:[%s4166 + $0x20] sm:$0xf]
  %v4176 = vld [vmem:[%s4166 + $0x24] sm:$0xf]
  %v4187 = vunpack.c.l.b16 %v4167
  %v4188 = vunpack.c.l.b16 %v4168
  %v4189 = vunpack.c.l.b16 %v4169
  %v4190 = vunpack.c.l.b16 %v4170
  %v4191 = vunpack.c.l.b16 %v4171
  %v4192 = vunpack.c.l.b16 %v4172
  %v4193 = vunpack.c.l.b16 %v4173
  %v4194 = vunpack.c.l.b16 %v4174
  %v4195 = vunpack.c.l.b16 %v4175
  %v4196 = vunpack.c.l.b16 %v4176
  %v4197 = vpack.c.b16 %v4188, %v4187
  %v4198 = vpack.c.b16 %v4190, %v4189
  %v4199 = vpack.c.b16 %v4192, %v4191
  %v4200 = vpack.c.b16 %v4194, %v4193
  %v4201 = vpack.c.b16 %v4196, %v4195
  %v4208 = vsel %vm4081, %v4029, 0
  %4210 = vmatpush.bf16.msra.mxu0 0
  %4211 = vmatpush.bf16.msra.mxu0 0
  %4212 = vmatpush.bf16.msra.mxu0 0
  %4213 = vmatpush.bf16.msra.mxu0 %v4201
  %4214 = vmatpush.bf16.msra.mxu0 %v4200
  %4215 = vmatpush.bf16.msra.mxu0 %v4199
  %4216 = vmatpush.bf16.msra.mxu0 %v4198
  %4217 = vmatpush.bf16.msra.mxu0 %v4197
  %4218 = vmatmul.bf16.gmra.mxu0 %v4208
  %v4219 = vpop.f32.mrf.mxu0
  %v4220 = vadd.f32 0.0, %v4219
  %v4221 = vpop.f32.mrf.mxu0
  %4222 = vdwg.mxu0
  %v4233 = vunpack.c.l.b16 %v4030
  %v4234 = vunpack.c.l.b16 %v4031
  %v4235 = vunpack.c.l.b16 %v4032
  %v4236 = vunpack.c.l.b16 %v4033
  %v4237 = vunpack.c.l.b16 %v4034
  %v4238 = vunpack.c.l.b16 %v4035
  %v4239 = vunpack.c.l.b16 %v4036
  %v4240 = vunpack.c.l.b16 %v4037
  %v4241 = vunpack.c.l.b16 %v4038
  %v4242 = vunpack.c.l.b16 %v4039
  %v4243 = vpack.c.b16 %v4234, %v4233
  %v4244 = vpack.c.b16 %v4236, %v4235
  %v4245 = vpack.c.b16 %v4238, %v4237
  %v4246 = vpack.c.b16 %v4240, %v4239
  %v4247 = vpack.c.b16 %v4242, %v4241
  %v4254 = vsel %vm4081, %v4025, 0
  %4256 = vmatpush.bf16.msra.mxu0 0
  %4257 = vmatpush.bf16.msra.mxu0 0
  %4258 = vmatpush.bf16.msra.mxu0 0
  %4259 = vmatpush.bf16.msra.mxu0 %v4247
  %4260 = vmatpush.bf16.msra.mxu0 %v4246
  %4261 = vmatpush.bf16.msra.mxu0 %v4245
  %4262 = vmatpush.bf16.msra.mxu0 %v4244
  %4263 = vmatpush.bf16.msra.mxu0 %v4243
  %4264 = vmatmul.bf16.gmra.mxu0 %v4254
  %v4265 = vpop.f32.mrf.mxu0
  %v4266 = vadd.f32 %v4095, %v4265
  %v4267 = vpop.f32.mrf.mxu0
  %4268 = vdwg.mxu0
  %v4279 = vunpack.c.l.b16 %v4099
  %v4280 = vunpack.c.l.b16 %v4100
  %v4281 = vunpack.c.l.b16 %v4101
  %v4282 = vunpack.c.l.b16 %v4102
  %v4283 = vunpack.c.l.b16 %v4103
  %v4284 = vunpack.c.l.b16 %v4104
  %v4285 = vunpack.c.l.b16 %v4105
  %v4286 = vunpack.c.l.b16 %v4106
  %v4287 = vunpack.c.l.b16 %v4107
  %v4288 = vunpack.c.l.b16 %v4108
  %v4289 = vpack.c.b16 %v4280, %v4279
  %v4290 = vpack.c.b16 %v4282, %v4281
  %v4291 = vpack.c.b16 %v4284, %v4283
  %v4292 = vpack.c.b16 %v4286, %v4285
  %v4293 = vpack.c.b16 %v4288, %v4287
  %v4300 = vsel %vm4081, %v4027, 0
  %4302 = vmatpush.bf16.msra.mxu0 0
  %4303 = vmatpush.bf16.msra.mxu0 0
  %4304 = vmatpush.bf16.msra.mxu0 0
  %4305 = vmatpush.bf16.msra.mxu0 %v4293
  %4306 = vmatpush.bf16.msra.mxu0 %v4292
  %4307 = vmatpush.bf16.msra.mxu0 %v4291
  %4308 = vmatpush.bf16.msra.mxu0 %v4290
  %4309 = vmatpush.bf16.msra.mxu0 %v4289
  %4310 = vmatmul.bf16.gmra.mxu0 %v4300
  %v4311 = vpop.f32.mrf.mxu0
  %v4312 = vadd.f32 %v4163, %v4311
  %v4313 = vpop.f32.mrf.mxu0
  %4314 = vdwg.mxu0
  %v4315 = vadd.f32 %v4266, %v4312
  %v4316 = vadd.f32 %v4315, %v4220
  %v4317 = vld [vmem:[%s10] sm:$0x1]
  %v4319 = vperm.slane %v4317, 0
  %v4321 = vadd.f32 %v4316, %v4319
  %v4322 = vmax.f32 %v4321, 0.0
  %v4323 = vpack.c.bf16 %v4322, %v4322
  %v4324 = vld [vmem:[%s11] sm:$0xf]
  %v4325 = vld [vmem:[%s11 + $0x4] sm:$0xf]
  %v4326 = vld [vmem:[%s11 + $0x8] sm:$0xf]
  %v4327 = vld [vmem:[%s11 + $0xc] sm:$0xf]
  %v4328 = vld [vmem:[%s11 + $0x10] sm:$0xf]
  %v4329 = vld [vmem:[%s11 + $0x14] sm:$0xf]
  %v4330 = vld [vmem:[%s11 + $0x18] sm:$0xf]
  %v4331 = vld [vmem:[%s11 + $0x1c] sm:$0xf]
  %v4332 = vld [vmem:[%s11 + $0x20] sm:$0xf]
  %v4333 = vld [vmem:[%s11 + $0x24] sm:$0xf]
  %v4334 = vld [vmem:[%s11 + $0x28] sm:$0xf]
  %v4335 = vld [vmem:[%s11 + $0x2c] sm:$0xf]
  %v4336 = vld [vmem:[%s11 + $0x30] sm:$0xf]
  %v4337 = vld [vmem:[%s11 + $0x34] sm:$0xf]
  %v4338 = vld [vmem:[%s11 + $0x38] sm:$0xf]
  %v4339 = vld [vmem:[%s12] sm:$0x1]
  %v4341 = vperm.slane %v4339, 0
  %v4358 = vunpack.c.l.b16 %v4324
  %v4359 = vunpack.c.l.b16 %v4325
  %v4360 = vunpack.c.l.b16 %v4326
  %v4361 = vunpack.c.l.b16 %v4327
  %v4362 = vunpack.c.l.b16 %v4328
  %v4363 = vunpack.c.l.b16 %v4329
  %v4364 = vunpack.c.l.b16 %v4330
  %v4365 = vunpack.c.l.b16 %v4331
  %v4366 = vunpack.c.l.b16 %v4332
  %v4367 = vunpack.c.l.b16 %v4333
  %v4368 = vunpack.c.l.b16 %v4334
  %v4369 = vunpack.c.l.b16 %v4335
  %v4370 = vunpack.c.l.b16 %v4336
  %v4371 = vunpack.c.l.b16 %v4337
  %v4372 = vunpack.c.l.b16 %v4338
  %v4373 = vpack.c.b16 %v4359, %v4358
  %v4374 = vpack.c.b16 %v4361, %v4360
  %v4375 = vpack.c.b16 %v4363, %v4362
  %v4376 = vpack.c.b16 %v4365, %v4364
  %v4377 = vpack.c.b16 %v4367, %v4366
  %v4378 = vpack.c.b16 %v4369, %v4368
  %v4379 = vpack.c.b16 %v4371, %v4370
  %v4380 = vpack.c.b16 %v4372, %v4372
  %vm4388 = vcmask 982016
  %v4390 = vsel %vm4388, %v4323, 0
  %v4393 = vsel %vm2271, %v4380, 0
  %4395 = vmatpush.bf16.msra.mxu0 %v4393
  %4396 = vmatpush.bf16.msra.mxu0 %v4379
  %4397 = vmatpush.bf16.msra.mxu0 %v4378
  %4398 = vmatpush.bf16.msra.mxu0 %v4377
  %4399 = vmatpush.bf16.msra.mxu0 %v4376
  %4400 = vmatpush.bf16.msra.mxu0 %v4375
  %4401 = vmatpush.bf16.msra.mxu0 %v4374
  %4402 = vmatpush.bf16.msra.mxu0 %v4373
  %4403 = vmatmul.bf16.gmra.mxu0 %v4390
  %v4404 = vpop.f32.mrf.mxu0
  %v4405 = vadd.f32 %v4341, %v4404
  %v4406 = vpop.f32.mrf.mxu0
  %4407 = vdwg.mxu0
  %v4408 = vmax.f32 %v4405, 0.0
  %v4409 = vpack.c.bf16 %v4408, %v4408
  %v4410 = vld [vmem:[%s13] sm:$0xf]
  %v4411 = vld [vmem:[%s13 + $0x4] sm:$0xf]
  %v4412 = vld [vmem:[%s13 + $0x8] sm:$0xf]
  %v4413 = vld [vmem:[%s13 + $0xc] sm:$0xf]
  %v4414 = vld [vmem:[%s13 + $0x10] sm:$0xf]
  %v4415 = vld [vmem:[%s13 + $0x14] sm:$0xf]
  %v4416 = vld [vmem:[%s13 + $0x18] sm:$0xf]
  %v4417 = vld [vmem:[%s13 + $0x1c] sm:$0xf]
  %v4418 = vld [vmem:[%s13 + $0x20] sm:$0xf]
  %v4419 = vld [vmem:[%s13 + $0x24] sm:$0xf]
  %v4420 = vld [vmem:[%s13 + $0x28] sm:$0x3]
  %v4421 = vld [vmem:[%s14] sm:$0x1]
  %v4423 = vperm.slane %v4421, 0
  %v4436 = vunpack.c.l.b16 %v4410
  %v4437 = vunpack.c.l.b16 %v4411
  %v4438 = vunpack.c.l.b16 %v4412
  %v4439 = vunpack.c.l.b16 %v4413
  %v4440 = vunpack.c.l.b16 %v4414
  %v4441 = vunpack.c.l.b16 %v4415
  %v4442 = vunpack.c.l.b16 %v4416
  %v4443 = vunpack.c.l.b16 %v4417
  %v4444 = vunpack.c.l.b16 %v4418
  %v4445 = vunpack.c.l.b16 %v4419
  %v4446 = vunpack.c.l.b16 %v4420
  %v4447 = vpack.c.b16 %v4437, %v4436
  %v4448 = vpack.c.b16 %v4439, %v4438
  %v4449 = vpack.c.b16 %v4441, %v4440
  %v4450 = vpack.c.b16 %v4443, %v4442
  %v4451 = vpack.c.b16 %v4445, %v4444
  %v4452 = vpack.c.b16 %v4446, %v4446
  %v4459 = vsel %vm2938, %v4409, 0
  %v4462 = vsel %vm2954, %v4452, 0
  %4464 = vmatpush.bf16.msra.mxu0 0
  %4465 = vmatpush.bf16.msra.mxu0 0
  %4466 = vmatpush.bf16.msra.mxu0 %v4462
  %4467 = vmatpush.bf16.msra.mxu0 %v4451
  %4468 = vmatpush.bf16.msra.mxu0 %v4450
  %4469 = vmatpush.bf16.msra.mxu0 %v4449
  %4470 = vmatpush.bf16.msra.mxu0 %v4448
  %4471 = vmatpush.bf16.msra.mxu0 %v4447
  %4472 = vmatmul.bf16.gmra.mxu0 %v4459
  %v4473 = vpop.f32.mrf.mxu0
  %v4474 = vadd.f32 %v4423, %v4473
  %v4475 = vpop.f32.mrf.mxu0
  %4476 = vdwg.mxu0
  %4477 = vst [vmem:[%s15] sm:$0xff] %v4474
  // Predicated region
  $region62: #{forward.1} parent=0 // pred_check
    _
  $region63: #{forward.1} parent=0 // pred_check_branch
    %4479 = sbr.rel (0) target = $region65
  $region64: #{forward.1} parent=0 // pred_region
    _
  $region65: #{forward.1} parent=0 // pred_fallthru
    _
  // Predicated region
  $region66: #{forward.1} parent=0 // pred_check
    _
  $region67: #{forward.1} parent=0 // pred_check_branch
    %4481 = sbr.rel (0) target = $region69
  $region68: #{forward.1} parent=0 // pred_region
    _
  $region69: #{forward.1} parent=0 // pred_fallthru
    _

</llo_original>
